<compile_context>
chip_gen: v7x
topology: tpu7x:2x2x1
jax: 0.10.0
libtpu: 0.0.40
codegen_flags: <defaults>
</compile_context>

<pallas_src>
import functools

import jax
import jax.numpy as jnp
from jax.experimental import pallas as pl
from jax.experimental.pallas import tpu as pltpu

INPUT_DIM = 4
HIDDEN_DIM = 32
NUM_LAYERS = 2
BATCH = 2
SEQ = 8

_SLAB_ROWS = 72  # 64 fused-weight rows + 1 bias row, padded up to 8k sublanes
_VMEM = pl.BlockSpec(memory_space=pltpu.MemorySpace.VMEM)


# ----------------------------------------------------------------------------
# Fused Pallas kernel: encoder(2, wavefront) -> decoder(2, seeded, wavefront)
# -> per-step fc.  Everything lives in vregs between the 3 DMAs.
# ----------------------------------------------------------------------------
def _fused_forward_kernel(x_ref, w_ref, y_ref, *, seq_len, batch, in_dim,
                          hidden):
    T, B, D, H = seq_len, batch, in_dim, hidden

    def lstm_step(inp, h, c, layer, k):
        """One LSTM cell step: gates = [h | inp] @ [W_hh ; W_xh] + b."""
        w = w_ref[layer, 0:k, :]              # (k, 4H) fused [W_hh; W_xh]
        b = w_ref[layer, 64:65, :]            # (1, 4H) combined bias
        # h stays at lanes [0, H); only the off-chain input absorbs the shift.
        hx = jnp.concatenate([h, inp], axis=1)            # (B, k)
        gates = jnp.dot(hx, w, preferred_element_type=jnp.float32) + b
        # Gate columns pre-permuted to [i | f | o | g]: one sigmoid pass over
        # the first 3H lanes, one tanh over the last H.
        sig = jax.nn.sigmoid(gates[:, :3 * H])
        i_g = sig[:, 0 * H:1 * H]
        f_g = sig[:, 1 * H:2 * H]
        o_g = sig[:, 2 * H:3 * H]
        g_g = jnp.tanh(gates[:, 3 * H:])
        c = f_g * c + i_g * g_g
        h = o_g * jnp.tanh(c)
        return h, c

    zeros = jnp.zeros((B, H), jnp.float32)

    # ---------------- encoder: 2-layer wavefront ---------------------------
    # Wave s runs layer-0 step s and layer-1 step s-1; the two are independent
    # (layer 1 consumes layer-0's output from the previous wave), so the
    # scheduler can overlap their MXU/EUP latency chains.
    h_e0 = c_e0 = h_e1 = c_e1 = zeros
    enc_out = [None] * T
    for s in range(T + 1):
        h_l0_prev = h_e0                      # layer-0 output at step s-1
        if s < T:
            x_t = x_ref[:, s, :]              # (B, D), independent of the chain
            h_e0, c_e0 = lstm_step(x_t, h_e0, c_e0, 0, H + D)
        if s >= 1:
            h_e1, c_e1 = lstm_step(h_l0_prev, h_e1, c_e1, 1, 2 * H)
            enc_out[s - 1] = h_e1             # kept in vregs, no scratch

    # ---------------- decoder: seeded with encoder final (h, c) ------------
    fc_w = w_ref[4, 0:H, 0:D]                 # (H, D)
    fc_b = w_ref[4, H:H + 1, 0:D]             # (1, D)
    h_d0, c_d0 = h_e0, c_e0                   # encoder layer-0 final state
    h_d1, c_d1 = h_e1, c_e1                   # encoder layer-1 final state
    for s in range(T + 1):
        h_l0_prev = h_d0
        if s < T:
            h_d0, c_d0 = lstm_step(enc_out[s], h_d0, c_d0, 2, 2 * H)
        if s >= 1:
            h_d1, c_d1 = lstm_step(h_l0_prev, h_d1, c_d1, 3, 2 * H)
            # Final Linear per decoder output (off the recurrence chain);
            # written straight to the (B, T, D) output ref, never reloaded.
            y_t = jnp.dot(h_d1, fc_w, preferred_element_type=jnp.float32) + fc_b
            y_ref[:, s - 1, :] = y_t


# ----------------------------------------------------------------------------
# Wrapper: one pallas_call for the whole forward; no layout ops outside it.
# ----------------------------------------------------------------------------
@jax.jit
def lstm_anomaly_detector_forward(x_btd, w_slab):
    B, T, D = x_btd.shape
    H = HIDDEN_DIM

    kernel = functools.partial(_fused_forward_kernel,
                               seq_len=T, batch=B, in_dim=D, hidden=H)

    lstm_flops = 2 * B * T * 4 * H * ((H + D) + 3 * (2 * H))
    fc_flops = 2 * B * T * H * D
    cost = pl.CostEstimate(
        flops=lstm_flops + fc_flops,
        transcendentals=4 * T * B * 5 * H,
        bytes_accessed=4 * (x_btd.size + w_slab.size + B * T * D))

    return pl.pallas_call(
        kernel,
        out_shape=jax.ShapeDtypeStruct((B, T, D), jnp.float32),
        in_specs=[_VMEM, _VMEM],
        out_specs=_VMEM,
        cost_estimate=cost,
    )(x_btd, w_slab)


# ----------------------------------------------------------------------------
# Parameter init (PyTorch-style uniform(-1/sqrt(H), 1/sqrt(H))), packed into a
# single (5, 72, 4H) slab so the kernel sees 2 inputs total.
#   slot l in {0: enc0, 1: enc1, 2: dec0, 3: dec1}:
#     rows [0, H)          = W_hh^T                (H, 4H)
#     rows [H, H + in_dim) = W_ih^T                (in_dim, 4H)
#     row  64              = b_ih + b_hh           (4H,)
#   slot 4: rows [0, H) x cols [0, D) = fc.weight^T; row H, cols [0, D) = fc.bias
#   Gate blocks permuted [i, f, g, o] -> [i, f, o, g] consistently.
# ----------------------------------------------------------------------------
def _uniform(key, shape, bound):
    return jax.random.uniform(key, shape, jnp.float32, -bound, bound)


def _reorder_ifgo_to_ifog(m):
    i, f, g, o = jnp.split(m, 4, axis=0)
    return jnp.concatenate([i, f, o, g], axis=0)


def init_params(key, input_dim, hidden):
    D, H = input_dim, hidden
    bound = 1.0 / float(H) ** 0.5
    slab = jnp.zeros((5, _SLAB_ROWS, 4 * H), jnp.float32)
    layers = []
    for idx, d_in in enumerate([D, H, H, H]):       # enc0, enc1, dec0, dec1
        key, k1, k2, k3, k4 = jax.random.split(key, 5)
        w_ih = _uniform(k1, (4 * H, d_in), bound)   # PyTorch layout
        w_hh = _uniform(k2, (4 * H, H), bound)
        b_ih = _uniform(k3, (4 * H,), bound)
        b_hh = _uniform(k4, (4 * H,), bound)
        w_x = _reorder_ifgo_to_ifog(w_ih).T         # (d_in, 4H), cols [i,f,o,g]
        w_h = _reorder_ifgo_to_ifog(w_hh).T         # (H, 4H)
        b = _reorder_ifgo_to_ifog(b_ih + b_hh)      # (4H,)
        slab = slab.at[idx, 0:H, :].set(w_h)
        slab = slab.at[idx, H:H + d_in, :].set(w_x)
        slab = slab.at[idx, 64, :].set(b)
        layers.append((w_x, w_h, b))
    key, k1, k2 = jax.random.split(key, 3)
    fc_w = _uniform(k1, (D, H), bound).T            # (H, D)
    fc_b = _uniform(k2, (D,), bound)                # (D,)
    slab = slab.at[4, 0:H, 0:D].set(fc_w)
    slab = slab.at[4, H, 0:D].set(fc_b)
    return {"w_slab": slab, "layers": layers, "fc_w": fc_w, "fc_b": fc_b}


# ----------------------------------------------------------------------------
# Pure-JAX reference (same permuted parameter layout) for a numerical check.
# ----------------------------------------------------------------------------
def _reference_forward(x_btd, params):
    H = HIDDEN_DIM
    B, T, D = x_btd.shape

    def run_layer(xs, w_x, w_h, b, h, c):
        ys = []
        for t in range(xs.shape[0]):
            gates = xs[t] @ w_x + h @ w_h + b
            i_g = jax.nn.sigmoid(gates[:, 0 * H:1 * H])
            f_g = jax.nn.sigmoid(gates[:, 1 * H:2 * H])
            o_g = jax.nn.sigmoid(gates[:, 2 * H:3 * H])
            g_g = jnp.tanh(gates[:, 3 * H:])
            c = f_g * c + i_g * g_g
            h = o_g * jnp.tanh(c)
            ys.append(h)
        return jnp.stack(ys, axis=0), h, c

    with jax.default_matmul_precision("highest"):
        x = jnp.transpose(x_btd, (1, 0, 2))
        zeros = jnp.zeros((B, H), jnp.float32)
        enc0, enc1, dec0, dec1 = params["layers"]
        out, h0, c0 = run_layer(x, *enc0, zeros, zeros)
        out, h1, c1 = run_layer(out, *enc1, zeros, zeros)
        out, _, _ = run_layer(out, *dec0, h0, c0)
        out, _, _ = run_layer(out, *dec1, h1, c1)
        y = out.reshape(T * B, H) @ params["fc_w"] + params["fc_b"]
        return jnp.transpose(y.reshape(T, B, D), (1, 0, 2))


# ----------------------------------------------------------------------------
if __name__ == "__main__":
    key = jax.random.PRNGKey(0)
    key, pkey, xkey = jax.random.split(key, 3)

    params = init_params(pkey, INPUT_DIM, HIDDEN_DIM)
    x = jax.random.normal(xkey, (BATCH, SEQ, INPUT_DIM), jnp.float32)

    out = lstm_anomaly_detector_forward(x, params["w_slab"])
    jax.block_until_ready(out)

    assert out.shape == (BATCH, SEQ, INPUT_DIM), out.shape
    assert out.dtype == jnp.float32

    ref = _reference_forward(x, params)
    assert jnp.allclose(out, ref, atol=2e-3, rtol=2e-3), \
        float(jnp.max(jnp.abs(out - ref)))

    print("KERNEL_OK")
</pallas_src>

<mosaic_0001>
module attributes {stable_mosaic.version = 11 : i64} {
  func.func @_fused_forward_kernel(%arg0: memref<2x8x4xf32, #tpu.memory_space<vmem>>, %arg1: memref<5x72x128xf32, #tpu.memory_space<vmem>>, %arg2: memref<2x8x4xf32, #tpu.memory_space<vmem>>) attributes {dimension_semantics = [], scalar_prefetch = 0 : i64, scratch_operands = 0 : i64, tpu.core_type = #tpu.core_type<tc>} {
    %cst = arith.constant 0.000000e+00 : f32
    %0 = vector.broadcast %cst : f32 to vector<2x32xf32>
    %c0 = arith.constant 0 : index
    %c0_0 = arith.constant 0 : index
    %c0_1 = arith.constant 0 : index
    %1 = vector.load %arg0[%c0, %c0_0, %c0_1] : memref<2x8x4xf32, #tpu.memory_space<vmem>>, vector<2x1x4xf32>
    %2 = vector.shape_cast %1 : vector<2x1x4xf32> to vector<2x4xf32>
    %c0_2 = arith.constant 0 : index
    %c0_3 = arith.constant 0 : index
    %c0_4 = arith.constant 0 : index
    %3 = vector.load %arg1[%c0_2, %c0_3, %c0_4] : memref<5x72x128xf32, #tpu.memory_space<vmem>>, vector<1x36x128xf32>
    %4 = vector.shape_cast %3 : vector<1x36x128xf32> to vector<36x128xf32>
    %c0_5 = arith.constant 0 : index
    %c64 = arith.constant 64 : index
    %c0_6 = arith.constant 0 : index
    %5 = vector.load %arg1[%c0_5, %c64, %c0_6] : memref<5x72x128xf32, #tpu.memory_space<vmem>>, vector<1x1x128xf32>
    %6 = vector.shape_cast %5 : vector<1x1x128xf32> to vector<1x128xf32>
    %7 = tpu.concatenate %0, %2 in 1 : vector<2x32xf32>, vector<2x4xf32> -> vector<2x36xf32>
    %cst_7 = arith.constant dense<0.000000e+00> : vector<2x128xf32>
    %8 = tpu.matmul %7, %4, %cst_7 {dimension_numbers = #tpu.dot_dimension_numbers<[1], [0], [0], [1], [0, 0, 1, 1], [], []>} : vector<2x36xf32>, vector<36x128xf32>, vector<2x128xf32> -> vector<2x128xf32>
    %9 = vector.broadcast %6 : vector<1x128xf32> to vector<2x128xf32>
    %10 = arith.addf %8, %9 : vector<2x128xf32>
    %11 = vector.extract_strided_slice %10 {offsets = [0, 0], sizes = [2, 96], strides = [1, 1]} : vector<2x128xf32> to vector<2x96xf32>
    %12 = arith.negf %11 : vector<2x96xf32>
    %13 = math.exp %12 : vector<2x96xf32>
    %cst_8 = arith.constant 1.000000e+00 : f32
    %14 = vector.broadcast %cst_8 : f32 to vector<2x96xf32>
    %15 = arith.addf %14, %13 : vector<2x96xf32>
    %16 = arith.divf %14, %15 : vector<2x96xf32>
    %17 = vector.extract_strided_slice %16 {offsets = [0, 0], sizes = [2, 32], strides = [1, 1]} : vector<2x96xf32> to vector<2x32xf32>
    %18 = vector.extract_strided_slice %16 {offsets = [0, 32], sizes = [2, 32], strides = [1, 1]} : vector<2x96xf32> to vector<2x32xf32>
    %19 = vector.extract_strided_slice %16 {offsets = [0, 64], sizes = [2, 32], strides = [1, 1]} : vector<2x96xf32> to vector<2x32xf32>
    %20 = vector.extract_strided_slice %10 {offsets = [0, 96], sizes = [2, 32], strides = [1, 1]} : vector<2x128xf32> to vector<2x32xf32>
    %21 = math.tanh %20 : vector<2x32xf32>
    %22 = arith.mulf %18, %0 : vector<2x32xf32>
    %23 = arith.mulf %17, %21 : vector<2x32xf32>
    %24 = arith.addf %22, %23 : vector<2x32xf32>
    %25 = math.tanh %24 : vector<2x32xf32>
    %26 = arith.mulf %19, %25 : vector<2x32xf32>
    %c0_9 = arith.constant 0 : index
    %c1 = arith.constant 1 : index
    %c0_10 = arith.constant 0 : index
    %27 = vector.load %arg0[%c0_9, %c1, %c0_10] : memref<2x8x4xf32, #tpu.memory_space<vmem>>, vector<2x1x4xf32>
    %28 = vector.shape_cast %27 : vector<2x1x4xf32> to vector<2x4xf32>
    %c0_11 = arith.constant 0 : index
    %c0_12 = arith.constant 0 : index
    %c0_13 = arith.constant 0 : index
    %29 = vector.load %arg1[%c0_11, %c0_12, %c0_13] : memref<5x72x128xf32, #tpu.memory_space<vmem>>, vector<1x36x128xf32>
    %30 = vector.shape_cast %29 : vector<1x36x128xf32> to vector<36x128xf32>
    %c0_14 = arith.constant 0 : index
    %c64_15 = arith.constant 64 : index
    %c0_16 = arith.constant 0 : index
    %31 = vector.load %arg1[%c0_14, %c64_15, %c0_16] : memref<5x72x128xf32, #tpu.memory_space<vmem>>, vector<1x1x128xf32>
    %32 = vector.shape_cast %31 : vector<1x1x128xf32> to vector<1x128xf32>
    %33 = tpu.concatenate %26, %28 in 1 : vector<2x32xf32>, vector<2x4xf32> -> vector<2x36xf32>
    %cst_17 = arith.constant dense<0.000000e+00> : vector<2x128xf32>
    %34 = tpu.matmul %33, %30, %cst_17 {dimension_numbers = #tpu.dot_dimension_numbers<[1], [0], [0], [1], [0, 0, 1, 1], [], []>} : vector<2x36xf32>, vector<36x128xf32>, vector<2x128xf32> -> vector<2x128xf32>
    %35 = vector.broadcast %32 : vector<1x128xf32> to vector<2x128xf32>
    %36 = arith.addf %34, %35 : vector<2x128xf32>
    %37 = vector.extract_strided_slice %36 {offsets = [0, 0], sizes = [2, 96], strides = [1, 1]} : vector<2x128xf32> to vector<2x96xf32>
    %38 = arith.negf %37 : vector<2x96xf32>
    %39 = math.exp %38 : vector<2x96xf32>
    %cst_18 = arith.constant 1.000000e+00 : f32
    %40 = vector.broadcast %cst_18 : f32 to vector<2x96xf32>
    %41 = arith.addf %40, %39 : vector<2x96xf32>
    %42 = arith.divf %40, %41 : vector<2x96xf32>
    %43 = vector.extract_strided_slice %42 {offsets = [0, 0], sizes = [2, 32], strides = [1, 1]} : vector<2x96xf32> to vector<2x32xf32>
    %44 = vector.extract_strided_slice %42 {offsets = [0, 32], sizes = [2, 32], strides = [1, 1]} : vector<2x96xf32> to vector<2x32xf32>
    %45 = vector.extract_strided_slice %42 {offsets = [0, 64], sizes = [2, 32], strides = [1, 1]} : vector<2x96xf32> to vector<2x32xf32>
    %46 = vector.extract_strided_slice %36 {offsets = [0, 96], sizes = [2, 32], strides = [1, 1]} : vector<2x128xf32> to vector<2x32xf32>
    %47 = math.tanh %46 : vector<2x32xf32>
    %48 = arith.mulf %44, %24 : vector<2x32xf32>
    %49 = arith.mulf %43, %47 : vector<2x32xf32>
    %50 = arith.addf %48, %49 : vector<2x32xf32>
    %51 = math.tanh %50 : vector<2x32xf32>
    %52 = arith.mulf %45, %51 : vector<2x32xf32>
    %c1_19 = arith.constant 1 : index
    %c0_20 = arith.constant 0 : index
    %c0_21 = arith.constant 0 : index
    %53 = vector.load %arg1[%c1_19, %c0_20, %c0_21] : memref<5x72x128xf32, #tpu.memory_space<vmem>>, vector<1x64x128xf32>
    %54 = vector.shape_cast %53 : vector<1x64x128xf32> to vector<64x128xf32>
    %c1_22 = arith.constant 1 : index
    %c64_23 = arith.constant 64 : index
    %c0_24 = arith.constant 0 : index
    %55 = vector.load %arg1[%c1_22, %c64_23, %c0_24] : memref<5x72x128xf32, #tpu.memory_space<vmem>>, vector<1x1x128xf32>
    %56 = vector.shape_cast %55 : vector<1x1x128xf32> to vector<1x128xf32>
    %57 = tpu.concatenate %0, %26 in 1 : vector<2x32xf32>, vector<2x32xf32> -> vector<2x64xf32>
    %cst_25 = arith.constant dense<0.000000e+00> : vector<2x128xf32>
    %58 = tpu.matmul %57, %54, %cst_25 {dimension_numbers = #tpu.dot_dimension_numbers<[1], [0], [0], [1], [0, 0, 1, 1], [], []>} : vector<2x64xf32>, vector<64x128xf32>, vector<2x128xf32> -> vector<2x128xf32>
    %59 = vector.broadcast %56 : vector<1x128xf32> to vector<2x128xf32>
    %60 = arith.addf %58, %59 : vector<2x128xf32>
    %61 = vector.extract_strided_slice %60 {offsets = [0, 0], sizes = [2, 96], strides = [1, 1]} : vector<2x128xf32> to vector<2x96xf32>
    %62 = arith.negf %61 : vector<2x96xf32>
    %63 = math.exp %62 : vector<2x96xf32>
    %cst_26 = arith.constant 1.000000e+00 : f32
    %64 = vector.broadcast %cst_26 : f32 to vector<2x96xf32>
    %65 = arith.addf %64, %63 : vector<2x96xf32>
    %66 = arith.divf %64, %65 : vector<2x96xf32>
    %67 = vector.extract_strided_slice %66 {offsets = [0, 0], sizes = [2, 32], strides = [1, 1]} : vector<2x96xf32> to vector<2x32xf32>
    %68 = vector.extract_strided_slice %66 {offsets = [0, 32], sizes = [2, 32], strides = [1, 1]} : vector<2x96xf32> to vector<2x32xf32>
    %69 = vector.extract_strided_slice %66 {offsets = [0, 64], sizes = [2, 32], strides = [1, 1]} : vector<2x96xf32> to vector<2x32xf32>
    %70 = vector.extract_strided_slice %60 {offsets = [0, 96], sizes = [2, 32], strides = [1, 1]} : vector<2x128xf32> to vector<2x32xf32>
    %71 = math.tanh %70 : vector<2x32xf32>
    %72 = arith.mulf %68, %0 : vector<2x32xf32>
    %73 = arith.mulf %67, %71 : vector<2x32xf32>
    %74 = arith.addf %72, %73 : vector<2x32xf32>
    %75 = math.tanh %74 : vector<2x32xf32>
    %76 = arith.mulf %69, %75 : vector<2x32xf32>
    %c0_27 = arith.constant 0 : index
    %c2 = arith.constant 2 : index
    %c0_28 = arith.constant 0 : index
    %77 = vector.load %arg0[%c0_27, %c2, %c0_28] : memref<2x8x4xf32, #tpu.memory_space<vmem>>, vector<2x1x4xf32>
    %78 = vector.shape_cast %77 : vector<2x1x4xf32> to vector<2x4xf32>
    %c0_29 = arith.constant 0 : index
    %c0_30 = arith.constant 0 : index
    %c0_31 = arith.constant 0 : index
    %79 = vector.load %arg1[%c0_29, %c0_30, %c0_31] : memref<5x72x128xf32, #tpu.memory_space<vmem>>, vector<1x36x128xf32>
    %80 = vector.shape_cast %79 : vector<1x36x128xf32> to vector<36x128xf32>
    %c0_32 = arith.constant 0 : index
    %c64_33 = arith.constant 64 : index
    %c0_34 = arith.constant 0 : index
    %81 = vector.load %arg1[%c0_32, %c64_33, %c0_34] : memref<5x72x128xf32, #tpu.memory_space<vmem>>, vector<1x1x128xf32>
    %82 = vector.shape_cast %81 : vector<1x1x128xf32> to vector<1x128xf32>
    %83 = tpu.concatenate %52, %78 in 1 : vector<2x32xf32>, vector<2x4xf32> -> vector<2x36xf32>
    %cst_35 = arith.constant dense<0.000000e+00> : vector<2x128xf32>
    %84 = tpu.matmul %83, %80, %cst_35 {dimension_numbers = #tpu.dot_dimension_numbers<[1], [0], [0], [1], [0, 0, 1, 1], [], []>} : vector<2x36xf32>, vector<36x128xf32>, vector<2x128xf32> -> vector<2x128xf32>
    %85 = vector.broadcast %82 : vector<1x128xf32> to vector<2x128xf32>
    %86 = arith.addf %84, %85 : vector<2x128xf32>
    %87 = vector.extract_strided_slice %86 {offsets = [0, 0], sizes = [2, 96], strides = [1, 1]} : vector<2x128xf32> to vector<2x96xf32>
    %88 = arith.negf %87 : vector<2x96xf32>
    %89 = math.exp %88 : vector<2x96xf32>
    %cst_36 = arith.constant 1.000000e+00 : f32
    %90 = vector.broadcast %cst_36 : f32 to vector<2x96xf32>
    %91 = arith.addf %90, %89 : vector<2x96xf32>
    %92 = arith.divf %90, %91 : vector<2x96xf32>
    %93 = vector.extract_strided_slice %92 {offsets = [0, 0], sizes = [2, 32], strides = [1, 1]} : vector<2x96xf32> to vector<2x32xf32>
    %94 = vector.extract_strided_slice %92 {offsets = [0, 32], sizes = [2, 32], strides = [1, 1]} : vector<2x96xf32> to vector<2x32xf32>
    %95 = vector.extract_strided_slice %92 {offsets = [0, 64], sizes = [2, 32], strides = [1, 1]} : vector<2x96xf32> to vector<2x32xf32>
    %96 = vector.extract_strided_slice %86 {offsets = [0, 96], sizes = [2, 32], strides = [1, 1]} : vector<2x128xf32> to vector<2x32xf32>
    %97 = math.tanh %96 : vector<2x32xf32>
    %98 = arith.mulf %94, %50 : vector<2x32xf32>
    %99 = arith.mulf %93, %97 : vector<2x32xf32>
    %100 = arith.addf %98, %99 : vector<2x32xf32>
    %101 = math.tanh %100 : vector<2x32xf32>
    %102 = arith.mulf %95, %101 : vector<2x32xf32>
    %c1_37 = arith.constant 1 : index
    %c0_38 = arith.constant 0 : index
    %c0_39 = arith.constant 0 : index
    %103 = vector.load %arg1[%c1_37, %c0_38, %c0_39] : memref<5x72x128xf32, #tpu.memory_space<vmem>>, vector<1x64x128xf32>
    %104 = vector.shape_cast %103 : vector<1x64x128xf32> to vector<64x128xf32>
    %c1_40 = arith.constant 1 : index
    %c64_41 = arith.constant 64 : index
    %c0_42 = arith.constant 0 : index
    %105 = vector.load %arg1[%c1_40, %c64_41, %c0_42] : memref<5x72x128xf32, #tpu.memory_space<vmem>>, vector<1x1x128xf32>
    %106 = vector.shape_cast %105 : vector<1x1x128xf32> to vector<1x128xf32>
    %107 = tpu.concatenate %76, %52 in 1 : vector<2x32xf32>, vector<2x32xf32> -> vector<2x64xf32>
    %cst_43 = arith.constant dense<0.000000e+00> : vector<2x128xf32>
    %108 = tpu.matmul %107, %104, %cst_43 {dimension_numbers = #tpu.dot_dimension_numbers<[1], [0], [0], [1], [0, 0, 1, 1], [], []>} : vector<2x64xf32>, vector<64x128xf32>, vector<2x128xf32> -> vector<2x128xf32>
    %109 = vector.broadcast %106 : vector<1x128xf32> to vector<2x128xf32>
    %110 = arith.addf %108, %109 : vector<2x128xf32>
    %111 = vector.extract_strided_slice %110 {offsets = [0, 0], sizes = [2, 96], strides = [1, 1]} : vector<2x128xf32> to vector<2x96xf32>
    %112 = arith.negf %111 : vector<2x96xf32>
    %113 = math.exp %112 : vector<2x96xf32>
    %cst_44 = arith.constant 1.000000e+00 : f32
    %114 = vector.broadcast %cst_44 : f32 to vector<2x96xf32>
    %115 = arith.addf %114, %113 : vector<2x96xf32>
    %116 = arith.divf %114, %115 : vector<2x96xf32>
    %117 = vector.extract_strided_slice %116 {offsets = [0, 0], sizes = [2, 32], strides = [1, 1]} : vector<2x96xf32> to vector<2x32xf32>
    %118 = vector.extract_strided_slice %116 {offsets = [0, 32], sizes = [2, 32], strides = [1, 1]} : vector<2x96xf32> to vector<2x32xf32>
    %119 = vector.extract_strided_slice %116 {offsets = [0, 64], sizes = [2, 32], strides = [1, 1]} : vector<2x96xf32> to vector<2x32xf32>
    %120 = vector.extract_strided_slice %110 {offsets = [0, 96], sizes = [2, 32], strides = [1, 1]} : vector<2x128xf32> to vector<2x32xf32>
    %121 = math.tanh %120 : vector<2x32xf32>
    %122 = arith.mulf %118, %74 : vector<2x32xf32>
    %123 = arith.mulf %117, %121 : vector<2x32xf32>
    %124 = arith.addf %122, %123 : vector<2x32xf32>
    %125 = math.tanh %124 : vector<2x32xf32>
    %126 = arith.mulf %119, %125 : vector<2x32xf32>
    %c0_45 = arith.constant 0 : index
    %c3 = arith.constant 3 : index
    %c0_46 = arith.constant 0 : index
    %127 = vector.load %arg0[%c0_45, %c3, %c0_46] : memref<2x8x4xf32, #tpu.memory_space<vmem>>, vector<2x1x4xf32>
    %128 = vector.shape_cast %127 : vector<2x1x4xf32> to vector<2x4xf32>
    %c0_47 = arith.constant 0 : index
    %c0_48 = arith.constant 0 : index
    %c0_49 = arith.constant 0 : index
    %129 = vector.load %arg1[%c0_47, %c0_48, %c0_49] : memref<5x72x128xf32, #tpu.memory_space<vmem>>, vector<1x36x128xf32>
    %130 = vector.shape_cast %129 : vector<1x36x128xf32> to vector<36x128xf32>
    %c0_50 = arith.constant 0 : index
    %c64_51 = arith.constant 64 : index
    %c0_52 = arith.constant 0 : index
    %131 = vector.load %arg1[%c0_50, %c64_51, %c0_52] : memref<5x72x128xf32, #tpu.memory_space<vmem>>, vector<1x1x128xf32>
    %132 = vector.shape_cast %131 : vector<1x1x128xf32> to vector<1x128xf32>
    %133 = tpu.concatenate %102, %128 in 1 : vector<2x32xf32>, vector<2x4xf32> -> vector<2x36xf32>
    %cst_53 = arith.constant dense<0.000000e+00> : vector<2x128xf32>
    %134 = tpu.matmul %133, %130, %cst_53 {dimension_numbers = #tpu.dot_dimension_numbers<[1], [0], [0], [1], [0, 0, 1, 1], [], []>} : vector<2x36xf32>, vector<36x128xf32>, vector<2x128xf32> -> vector<2x128xf32>
    %135 = vector.broadcast %132 : vector<1x128xf32> to vector<2x128xf32>
    %136 = arith.addf %134, %135 : vector<2x128xf32>
    %137 = vector.extract_strided_slice %136 {offsets = [0, 0], sizes = [2, 96], strides = [1, 1]} : vector<2x128xf32> to vector<2x96xf32>
    %138 = arith.negf %137 : vector<2x96xf32>
    %139 = math.exp %138 : vector<2x96xf32>
    %cst_54 = arith.constant 1.000000e+00 : f32
    %140 = vector.broadcast %cst_54 : f32 to vector<2x96xf32>
    %141 = arith.addf %140, %139 : vector<2x96xf32>
    %142 = arith.divf %140, %141 : vector<2x96xf32>
    %143 = vector.extract_strided_slice %142 {offsets = [0, 0], sizes = [2, 32], strides = [1, 1]} : vector<2x96xf32> to vector<2x32xf32>
    %144 = vector.extract_strided_slice %142 {offsets = [0, 32], sizes = [2, 32], strides = [1, 1]} : vector<2x96xf32> to vector<2x32xf32>
    %145 = vector.extract_strided_slice %142 {offsets = [0, 64], sizes = [2, 32], strides = [1, 1]} : vector<2x96xf32> to vector<2x32xf32>
    %146 = vector.extract_strided_slice %136 {offsets = [0, 96], sizes = [2, 32], strides = [1, 1]} : vector<2x128xf32> to vector<2x32xf32>
    %147 = math.tanh %146 : vector<2x32xf32>
    %148 = arith.mulf %144, %100 : vector<2x32xf32>
    %149 = arith.mulf %143, %147 : vector<2x32xf32>
    %150 = arith.addf %148, %149 : vector<2x32xf32>
    %151 = math.tanh %150 : vector<2x32xf32>
    %152 = arith.mulf %145, %151 : vector<2x32xf32>
    %c1_55 = arith.constant 1 : index
    %c0_56 = arith.constant 0 : index
    %c0_57 = arith.constant 0 : index
    %153 = vector.load %arg1[%c1_55, %c0_56, %c0_57] : memref<5x72x128xf32, #tpu.memory_space<vmem>>, vector<1x64x128xf32>
    %154 = vector.shape_cast %153 : vector<1x64x128xf32> to vector<64x128xf32>
    %c1_58 = arith.constant 1 : index
    %c64_59 = arith.constant 64 : index
    %c0_60 = arith.constant 0 : index
    %155 = vector.load %arg1[%c1_58, %c64_59, %c0_60] : memref<5x72x128xf32, #tpu.memory_space<vmem>>, vector<1x1x128xf32>
    %156 = vector.shape_cast %155 : vector<1x1x128xf32> to vector<1x128xf32>
    %157 = tpu.concatenate %126, %102 in 1 : vector<2x32xf32>, vector<2x32xf32> -> vector<2x64xf32>
    %cst_61 = arith.constant dense<0.000000e+00> : vector<2x128xf32>
    %158 = tpu.matmul %157, %154, %cst_61 {dimension_numbers = #tpu.dot_dimension_numbers<[1], [0], [0], [1], [0, 0, 1, 1], [], []>} : vector<2x64xf32>, vector<64x128xf32>, vector<2x128xf32> -> vector<2x128xf32>
    %159 = vector.broadcast %156 : vector<1x128xf32> to vector<2x128xf32>
    %160 = arith.addf %158, %159 : vector<2x128xf32>
    %161 = vector.extract_strided_slice %160 {offsets = [0, 0], sizes = [2, 96], strides = [1, 1]} : vector<2x128xf32> to vector<2x96xf32>
    %162 = arith.negf %161 : vector<2x96xf32>
    %163 = math.exp %162 : vector<2x96xf32>
    %cst_62 = arith.constant 1.000000e+00 : f32
    %164 = vector.broadcast %cst_62 : f32 to vector<2x96xf32>
    %165 = arith.addf %164, %163 : vector<2x96xf32>
    %166 = arith.divf %164, %165 : vector<2x96xf32>
    %167 = vector.extract_strided_slice %166 {offsets = [0, 0], sizes = [2, 32], strides = [1, 1]} : vector<2x96xf32> to vector<2x32xf32>
    %168 = vector.extract_strided_slice %166 {offsets = [0, 32], sizes = [2, 32], strides = [1, 1]} : vector<2x96xf32> to vector<2x32xf32>
    %169 = vector.extract_strided_slice %166 {offsets = [0, 64], sizes = [2, 32], strides = [1, 1]} : vector<2x96xf32> to vector<2x32xf32>
    %170 = vector.extract_strided_slice %160 {offsets = [0, 96], sizes = [2, 32], strides = [1, 1]} : vector<2x128xf32> to vector<2x32xf32>
    %171 = math.tanh %170 : vector<2x32xf32>
    %172 = arith.mulf %168, %124 : vector<2x32xf32>
    %173 = arith.mulf %167, %171 : vector<2x32xf32>
    %174 = arith.addf %172, %173 : vector<2x32xf32>
    %175 = math.tanh %174 : vector<2x32xf32>
    %176 = arith.mulf %169, %175 : vector<2x32xf32>
    %c0_63 = arith.constant 0 : index
    %c4 = arith.constant 4 : index
    %c0_64 = arith.constant 0 : index
    %177 = vector.load %arg0[%c0_63, %c4, %c0_64] : memref<2x8x4xf32, #tpu.memory_space<vmem>>, vector<2x1x4xf32>
    %178 = vector.shape_cast %177 : vector<2x1x4xf32> to vector<2x4xf32>
    %c0_65 = arith.constant 0 : index
    %c0_66 = arith.constant 0 : index
    %c0_67 = arith.constant 0 : index
    %179 = vector.load %arg1[%c0_65, %c0_66, %c0_67] : memref<5x72x128xf32, #tpu.memory_space<vmem>>, vector<1x36x128xf32>
    %180 = vector.shape_cast %179 : vector<1x36x128xf32> to vector<36x128xf32>
    %c0_68 = arith.constant 0 : index
    %c64_69 = arith.constant 64 : index
    %c0_70 = arith.constant 0 : index
    %181 = vector.load %arg1[%c0_68, %c64_69, %c0_70] : memref<5x72x128xf32, #tpu.memory_space<vmem>>, vector<1x1x128xf32>
    %182 = vector.shape_cast %181 : vector<1x1x128xf32> to vector<1x128xf32>
    %183 = tpu.concatenate %152, %178 in 1 : vector<2x32xf32>, vector<2x4xf32> -> vector<2x36xf32>
    %cst_71 = arith.constant dense<0.000000e+00> : vector<2x128xf32>
    %184 = tpu.matmul %183, %180, %cst_71 {dimension_numbers = #tpu.dot_dimension_numbers<[1], [0], [0], [1], [0, 0, 1, 1], [], []>} : vector<2x36xf32>, vector<36x128xf32>, vector<2x128xf32> -> vector<2x128xf32>
    %185 = vector.broadcast %182 : vector<1x128xf32> to vector<2x128xf32>
    %186 = arith.addf %184, %185 : vector<2x128xf32>
    %187 = vector.extract_strided_slice %186 {offsets = [0, 0], sizes = [2, 96], strides = [1, 1]} : vector<2x128xf32> to vector<2x96xf32>
    %188 = arith.negf %187 : vector<2x96xf32>
    %189 = math.exp %188 : vector<2x96xf32>
    %cst_72 = arith.constant 1.000000e+00 : f32
    %190 = vector.broadcast %cst_72 : f32 to vector<2x96xf32>
    %191 = arith.addf %190, %189 : vector<2x96xf32>
    %192 = arith.divf %190, %191 : vector<2x96xf32>
    %193 = vector.extract_strided_slice %192 {offsets = [0, 0], sizes = [2, 32], strides = [1, 1]} : vector<2x96xf32> to vector<2x32xf32>
    %194 = vector.extract_strided_slice %192 {offsets = [0, 32], sizes = [2, 32], strides = [1, 1]} : vector<2x96xf32> to vector<2x32xf32>
    %195 = vector.extract_strided_slice %192 {offsets = [0, 64], sizes = [2, 32], strides = [1, 1]} : vector<2x96xf32> to vector<2x32xf32>
    %196 = vector.extract_strided_slice %186 {offsets = [0, 96], sizes = [2, 32], strides = [1, 1]} : vector<2x128xf32> to vector<2x32xf32>
    %197 = math.tanh %196 : vector<2x32xf32>
    %198 = arith.mulf %194, %150 : vector<2x32xf32>
    %199 = arith.mulf %193, %197 : vector<2x32xf32>
    %200 = arith.addf %198, %199 : vector<2x32xf32>
    %201 = math.tanh %200 : vector<2x32xf32>
    %202 = arith.mulf %195, %201 : vector<2x32xf32>
    %c1_73 = arith.constant 1 : index
    %c0_74 = arith.constant 0 : index
    %c0_75 = arith.constant 0 : index
    %203 = vector.load %arg1[%c1_73, %c0_74, %c0_75] : memref<5x72x128xf32, #tpu.memory_space<vmem>>, vector<1x64x128xf32>
    %204 = vector.shape_cast %203 : vector<1x64x128xf32> to vector<64x128xf32>
    %c1_76 = arith.constant 1 : index
    %c64_77 = arith.constant 64 : index
    %c0_78 = arith.constant 0 : index
    %205 = vector.load %arg1[%c1_76, %c64_77, %c0_78] : memref<5x72x128xf32, #tpu.memory_space<vmem>>, vector<1x1x128xf32>
    %206 = vector.shape_cast %205 : vector<1x1x128xf32> to vector<1x128xf32>
    %207 = tpu.concatenate %176, %152 in 1 : vector<2x32xf32>, vector<2x32xf32> -> vector<2x64xf32>
    %cst_79 = arith.constant dense<0.000000e+00> : vector<2x128xf32>
    %208 = tpu.matmul %207, %204, %cst_79 {dimension_numbers = #tpu.dot_dimension_numbers<[1], [0], [0], [1], [0, 0, 1, 1], [], []>} : vector<2x64xf32>, vector<64x128xf32>, vector<2x128xf32> -> vector<2x128xf32>
    %209 = vector.broadcast %206 : vector<1x128xf32> to vector<2x128xf32>
    %210 = arith.addf %208, %209 : vector<2x128xf32>
    %211 = vector.extract_strided_slice %210 {offsets = [0, 0], sizes = [2, 96], strides = [1, 1]} : vector<2x128xf32> to vector<2x96xf32>
    %212 = arith.negf %211 : vector<2x96xf32>
    %213 = math.exp %212 : vector<2x96xf32>
    %cst_80 = arith.constant 1.000000e+00 : f32
    %214 = vector.broadcast %cst_80 : f32 to vector<2x96xf32>
    %215 = arith.addf %214, %213 : vector<2x96xf32>
    %216 = arith.divf %214, %215 : vector<2x96xf32>
    %217 = vector.extract_strided_slice %216 {offsets = [0, 0], sizes = [2, 32], strides = [1, 1]} : vector<2x96xf32> to vector<2x32xf32>
    %218 = vector.extract_strided_slice %216 {offsets = [0, 32], sizes = [2, 32], strides = [1, 1]} : vector<2x96xf32> to vector<2x32xf32>
    %219 = vector.extract_strided_slice %216 {offsets = [0, 64], sizes = [2, 32], strides = [1, 1]} : vector<2x96xf32> to vector<2x32xf32>
    %220 = vector.extract_strided_slice %210 {offsets = [0, 96], sizes = [2, 32], strides = [1, 1]} : vector<2x128xf32> to vector<2x32xf32>
    %221 = math.tanh %220 : vector<2x32xf32>
    %222 = arith.mulf %218, %174 : vector<2x32xf32>
    %223 = arith.mulf %217, %221 : vector<2x32xf32>
    %224 = arith.addf %222, %223 : vector<2x32xf32>
    %225 = math.tanh %224 : vector<2x32xf32>
    %226 = arith.mulf %219, %225 : vector<2x32xf32>
    %c0_81 = arith.constant 0 : index
    %c5 = arith.constant 5 : index
    %c0_82 = arith.constant 0 : index
    %227 = vector.load %arg0[%c0_81, %c5, %c0_82] : memref<2x8x4xf32, #tpu.memory_space<vmem>>, vector<2x1x4xf32>
    %228 = vector.shape_cast %227 : vector<2x1x4xf32> to vector<2x4xf32>
    %c0_83 = arith.constant 0 : index
    %c0_84 = arith.constant 0 : index
    %c0_85 = arith.constant 0 : index
    %229 = vector.load %arg1[%c0_83, %c0_84, %c0_85] : memref<5x72x128xf32, #tpu.memory_space<vmem>>, vector<1x36x128xf32>
    %230 = vector.shape_cast %229 : vector<1x36x128xf32> to vector<36x128xf32>
    %c0_86 = arith.constant 0 : index
    %c64_87 = arith.constant 64 : index
    %c0_88 = arith.constant 0 : index
    %231 = vector.load %arg1[%c0_86, %c64_87, %c0_88] : memref<5x72x128xf32, #tpu.memory_space<vmem>>, vector<1x1x128xf32>
    %232 = vector.shape_cast %231 : vector<1x1x128xf32> to vector<1x128xf32>
    %233 = tpu.concatenate %202, %228 in 1 : vector<2x32xf32>, vector<2x4xf32> -> vector<2x36xf32>
    %cst_89 = arith.constant dense<0.000000e+00> : vector<2x128xf32>
    %234 = tpu.matmul %233, %230, %cst_89 {dimension_numbers = #tpu.dot_dimension_numbers<[1], [0], [0], [1], [0, 0, 1, 1], [], []>} : vector<2x36xf32>, vector<36x128xf32>, vector<2x128xf32> -> vector<2x128xf32>
    %235 = vector.broadcast %232 : vector<1x128xf32> to vector<2x128xf32>
    %236 = arith.addf %234, %235 : vector<2x128xf32>
    %237 = vector.extract_strided_slice %236 {offsets = [0, 0], sizes = [2, 96], strides = [1, 1]} : vector<2x128xf32> to vector<2x96xf32>
    %238 = arith.negf %237 : vector<2x96xf32>
    %239 = math.exp %238 : vector<2x96xf32>
    %cst_90 = arith.constant 1.000000e+00 : f32
    %240 = vector.broadcast %cst_90 : f32 to vector<2x96xf32>
    %241 = arith.addf %240, %239 : vector<2x96xf32>
    %242 = arith.divf %240, %241 : vector<2x96xf32>
    %243 = vector.extract_strided_slice %242 {offsets = [0, 0], sizes = [2, 32], strides = [1, 1]} : vector<2x96xf32> to vector<2x32xf32>
    %244 = vector.extract_strided_slice %242 {offsets = [0, 32], sizes = [2, 32], strides = [1, 1]} : vector<2x96xf32> to vector<2x32xf32>
    %245 = vector.extract_strided_slice %242 {offsets = [0, 64], sizes = [2, 32], strides = [1, 1]} : vector<2x96xf32> to vector<2x32xf32>
    %246 = vector.extract_strided_slice %236 {offsets = [0, 96], sizes = [2, 32], strides = [1, 1]} : vector<2x128xf32> to vector<2x32xf32>
    %247 = math.tanh %246 : vector<2x32xf32>
    %248 = arith.mulf %244, %200 : vector<2x32xf32>
    %249 = arith.mulf %243, %247 : vector<2x32xf32>
    %250 = arith.addf %248, %249 : vector<2x32xf32>
    %251 = math.tanh %250 : vector<2x32xf32>
    %252 = arith.mulf %245, %251 : vector<2x32xf32>
    %c1_91 = arith.constant 1 : index
    %c0_92 = arith.constant 0 : index
    %c0_93 = arith.constant 0 : index
    %253 = vector.load %arg1[%c1_91, %c0_92, %c0_93] : memref<5x72x128xf32, #tpu.memory_space<vmem>>, vector<1x64x128xf32>
    %254 = vector.shape_cast %253 : vector<1x64x128xf32> to vector<64x128xf32>
    %c1_94 = arith.constant 1 : index
    %c64_95 = arith.constant 64 : index
    %c0_96 = arith.constant 0 : index
    %255 = vector.load %arg1[%c1_94, %c64_95, %c0_96] : memref<5x72x128xf32, #tpu.memory_space<vmem>>, vector<1x1x128xf32>
    %256 = vector.shape_cast %255 : vector<1x1x128xf32> to vector<1x128xf32>
    %257 = tpu.concatenate %226, %202 in 1 : vector<2x32xf32>, vector<2x32xf32> -> vector<2x64xf32>
    %cst_97 = arith.constant dense<0.000000e+00> : vector<2x128xf32>
    %258 = tpu.matmul %257, %254, %cst_97 {dimension_numbers = #tpu.dot_dimension_numbers<[1], [0], [0], [1], [0, 0, 1, 1], [], []>} : vector<2x64xf32>, vector<64x128xf32>, vector<2x128xf32> -> vector<2x128xf32>
    %259 = vector.broadcast %256 : vector<1x128xf32> to vector<2x128xf32>
    %260 = arith.addf %258, %259 : vector<2x128xf32>
    %261 = vector.extract_strided_slice %260 {offsets = [0, 0], sizes = [2, 96], strides = [1, 1]} : vector<2x128xf32> to vector<2x96xf32>
    %262 = arith.negf %261 : vector<2x96xf32>
    %263 = math.exp %262 : vector<2x96xf32>
    %cst_98 = arith.constant 1.000000e+00 : f32
    %264 = vector.broadcast %cst_98 : f32 to vector<2x96xf32>
    %265 = arith.addf %264, %263 : vector<2x96xf32>
    %266 = arith.divf %264, %265 : vector<2x96xf32>
    %267 = vector.extract_strided_slice %266 {offsets = [0, 0], sizes = [2, 32], strides = [1, 1]} : vector<2x96xf32> to vector<2x32xf32>
    %268 = vector.extract_strided_slice %266 {offsets = [0, 32], sizes = [2, 32], strides = [1, 1]} : vector<2x96xf32> to vector<2x32xf32>
    %269 = vector.extract_strided_slice %266 {offsets = [0, 64], sizes = [2, 32], strides = [1, 1]} : vector<2x96xf32> to vector<2x32xf32>
    %270 = vector.extract_strided_slice %260 {offsets = [0, 96], sizes = [2, 32], strides = [1, 1]} : vector<2x128xf32> to vector<2x32xf32>
    %271 = math.tanh %270 : vector<2x32xf32>
    %272 = arith.mulf %268, %224 : vector<2x32xf32>
    %273 = arith.mulf %267, %271 : vector<2x32xf32>
    %274 = arith.addf %272, %273 : vector<2x32xf32>
    %275 = math.tanh %274 : vector<2x32xf32>
    %276 = arith.mulf %269, %275 : vector<2x32xf32>
    %c0_99 = arith.constant 0 : index
    %c6 = arith.constant 6 : index
    %c0_100 = arith.constant 0 : index
    %277 = vector.load %arg0[%c0_99, %c6, %c0_100] : memref<2x8x4xf32, #tpu.memory_space<vmem>>, vector<2x1x4xf32>
    %278 = vector.shape_cast %277 : vector<2x1x4xf32> to vector<2x4xf32>
    %c0_101 = arith.constant 0 : index
    %c0_102 = arith.constant 0 : index
    %c0_103 = arith.constant 0 : index
    %279 = vector.load %arg1[%c0_101, %c0_102, %c0_103] : memref<5x72x128xf32, #tpu.memory_space<vmem>>, vector<1x36x128xf32>
    %280 = vector.shape_cast %279 : vector<1x36x128xf32> to vector<36x128xf32>
    %c0_104 = arith.constant 0 : index
    %c64_105 = arith.constant 64 : index
    %c0_106 = arith.constant 0 : index
    %281 = vector.load %arg1[%c0_104, %c64_105, %c0_106] : memref<5x72x128xf32, #tpu.memory_space<vmem>>, vector<1x1x128xf32>
    %282 = vector.shape_cast %281 : vector<1x1x128xf32> to vector<1x128xf32>
    %283 = tpu.concatenate %252, %278 in 1 : vector<2x32xf32>, vector<2x4xf32> -> vector<2x36xf32>
    %cst_107 = arith.constant dense<0.000000e+00> : vector<2x128xf32>
    %284 = tpu.matmul %283, %280, %cst_107 {dimension_numbers = #tpu.dot_dimension_numbers<[1], [0], [0], [1], [0, 0, 1, 1], [], []>} : vector<2x36xf32>, vector<36x128xf32>, vector<2x128xf32> -> vector<2x128xf32>
    %285 = vector.broadcast %282 : vector<1x128xf32> to vector<2x128xf32>
    %286 = arith.addf %284, %285 : vector<2x128xf32>
    %287 = vector.extract_strided_slice %286 {offsets = [0, 0], sizes = [2, 96], strides = [1, 1]} : vector<2x128xf32> to vector<2x96xf32>
    %288 = arith.negf %287 : vector<2x96xf32>
    %289 = math.exp %288 : vector<2x96xf32>
    %cst_108 = arith.constant 1.000000e+00 : f32
    %290 = vector.broadcast %cst_108 : f32 to vector<2x96xf32>
    %291 = arith.addf %290, %289 : vector<2x96xf32>
    %292 = arith.divf %290, %291 : vector<2x96xf32>
    %293 = vector.extract_strided_slice %292 {offsets = [0, 0], sizes = [2, 32], strides = [1, 1]} : vector<2x96xf32> to vector<2x32xf32>
    %294 = vector.extract_strided_slice %292 {offsets = [0, 32], sizes = [2, 32], strides = [1, 1]} : vector<2x96xf32> to vector<2x32xf32>
    %295 = vector.extract_strided_slice %292 {offsets = [0, 64], sizes = [2, 32], strides = [1, 1]} : vector<2x96xf32> to vector<2x32xf32>
    %296 = vector.extract_strided_slice %286 {offsets = [0, 96], sizes = [2, 32], strides = [1, 1]} : vector<2x128xf32> to vector<2x32xf32>
    %297 = math.tanh %296 : vector<2x32xf32>
    %298 = arith.mulf %294, %250 : vector<2x32xf32>
    %299 = arith.mulf %293, %297 : vector<2x32xf32>
    %300 = arith.addf %298, %299 : vector<2x32xf32>
    %301 = math.tanh %300 : vector<2x32xf32>
    %302 = arith.mulf %295, %301 : vector<2x32xf32>
    %c1_109 = arith.constant 1 : index
    %c0_110 = arith.constant 0 : index
    %c0_111 = arith.constant 0 : index
    %303 = vector.load %arg1[%c1_109, %c0_110, %c0_111] : memref<5x72x128xf32, #tpu.memory_space<vmem>>, vector<1x64x128xf32>
    %304 = vector.shape_cast %303 : vector<1x64x128xf32> to vector<64x128xf32>
    %c1_112 = arith.constant 1 : index
    %c64_113 = arith.constant 64 : index
    %c0_114 = arith.constant 0 : index
    %305 = vector.load %arg1[%c1_112, %c64_113, %c0_114] : memref<5x72x128xf32, #tpu.memory_space<vmem>>, vector<1x1x128xf32>
    %306 = vector.shape_cast %305 : vector<1x1x128xf32> to vector<1x128xf32>
    %307 = tpu.concatenate %276, %252 in 1 : vector<2x32xf32>, vector<2x32xf32> -> vector<2x64xf32>
    %cst_115 = arith.constant dense<0.000000e+00> : vector<2x128xf32>
    %308 = tpu.matmul %307, %304, %cst_115 {dimension_numbers = #tpu.dot_dimension_numbers<[1], [0], [0], [1], [0, 0, 1, 1], [], []>} : vector<2x64xf32>, vector<64x128xf32>, vector<2x128xf32> -> vector<2x128xf32>
    %309 = vector.broadcast %306 : vector<1x128xf32> to vector<2x128xf32>
    %310 = arith.addf %308, %309 : vector<2x128xf32>
    %311 = vector.extract_strided_slice %310 {offsets = [0, 0], sizes = [2, 96], strides = [1, 1]} : vector<2x128xf32> to vector<2x96xf32>
    %312 = arith.negf %311 : vector<2x96xf32>
    %313 = math.exp %312 : vector<2x96xf32>
    %cst_116 = arith.constant 1.000000e+00 : f32
    %314 = vector.broadcast %cst_116 : f32 to vector<2x96xf32>
    %315 = arith.addf %314, %313 : vector<2x96xf32>
    %316 = arith.divf %314, %315 : vector<2x96xf32>
    %317 = vector.extract_strided_slice %316 {offsets = [0, 0], sizes = [2, 32], strides = [1, 1]} : vector<2x96xf32> to vector<2x32xf32>
    %318 = vector.extract_strided_slice %316 {offsets = [0, 32], sizes = [2, 32], strides = [1, 1]} : vector<2x96xf32> to vector<2x32xf32>
    %319 = vector.extract_strided_slice %316 {offsets = [0, 64], sizes = [2, 32], strides = [1, 1]} : vector<2x96xf32> to vector<2x32xf32>
    %320 = vector.extract_strided_slice %310 {offsets = [0, 96], sizes = [2, 32], strides = [1, 1]} : vector<2x128xf32> to vector<2x32xf32>
    %321 = math.tanh %320 : vector<2x32xf32>
    %322 = arith.mulf %318, %274 : vector<2x32xf32>
    %323 = arith.mulf %317, %321 : vector<2x32xf32>
    %324 = arith.addf %322, %323 : vector<2x32xf32>
    %325 = math.tanh %324 : vector<2x32xf32>
    %326 = arith.mulf %319, %325 : vector<2x32xf32>
    %c0_117 = arith.constant 0 : index
    %c7 = arith.constant 7 : index
    %c0_118 = arith.constant 0 : index
    %327 = vector.load %arg0[%c0_117, %c7, %c0_118] : memref<2x8x4xf32, #tpu.memory_space<vmem>>, vector<2x1x4xf32>
    %328 = vector.shape_cast %327 : vector<2x1x4xf32> to vector<2x4xf32>
    %c0_119 = arith.constant 0 : index
    %c0_120 = arith.constant 0 : index
    %c0_121 = arith.constant 0 : index
    %329 = vector.load %arg1[%c0_119, %c0_120, %c0_121] : memref<5x72x128xf32, #tpu.memory_space<vmem>>, vector<1x36x128xf32>
    %330 = vector.shape_cast %329 : vector<1x36x128xf32> to vector<36x128xf32>
    %c0_122 = arith.constant 0 : index
    %c64_123 = arith.constant 64 : index
    %c0_124 = arith.constant 0 : index
    %331 = vector.load %arg1[%c0_122, %c64_123, %c0_124] : memref<5x72x128xf32, #tpu.memory_space<vmem>>, vector<1x1x128xf32>
    %332 = vector.shape_cast %331 : vector<1x1x128xf32> to vector<1x128xf32>
    %333 = tpu.concatenate %302, %328 in 1 : vector<2x32xf32>, vector<2x4xf32> -> vector<2x36xf32>
    %cst_125 = arith.constant dense<0.000000e+00> : vector<2x128xf32>
    %334 = tpu.matmul %333, %330, %cst_125 {dimension_numbers = #tpu.dot_dimension_numbers<[1], [0], [0], [1], [0, 0, 1, 1], [], []>} : vector<2x36xf32>, vector<36x128xf32>, vector<2x128xf32> -> vector<2x128xf32>
    %335 = vector.broadcast %332 : vector<1x128xf32> to vector<2x128xf32>
    %336 = arith.addf %334, %335 : vector<2x128xf32>
    %337 = vector.extract_strided_slice %336 {offsets = [0, 0], sizes = [2, 96], strides = [1, 1]} : vector<2x128xf32> to vector<2x96xf32>
    %338 = arith.negf %337 : vector<2x96xf32>
    %339 = math.exp %338 : vector<2x96xf32>
    %cst_126 = arith.constant 1.000000e+00 : f32
    %340 = vector.broadcast %cst_126 : f32 to vector<2x96xf32>
    %341 = arith.addf %340, %339 : vector<2x96xf32>
    %342 = arith.divf %340, %341 : vector<2x96xf32>
    %343 = vector.extract_strided_slice %342 {offsets = [0, 0], sizes = [2, 32], strides = [1, 1]} : vector<2x96xf32> to vector<2x32xf32>
    %344 = vector.extract_strided_slice %342 {offsets = [0, 32], sizes = [2, 32], strides = [1, 1]} : vector<2x96xf32> to vector<2x32xf32>
    %345 = vector.extract_strided_slice %342 {offsets = [0, 64], sizes = [2, 32], strides = [1, 1]} : vector<2x96xf32> to vector<2x32xf32>
    %346 = vector.extract_strided_slice %336 {offsets = [0, 96], sizes = [2, 32], strides = [1, 1]} : vector<2x128xf32> to vector<2x32xf32>
    %347 = math.tanh %346 : vector<2x32xf32>
    %348 = arith.mulf %344, %300 : vector<2x32xf32>
    %349 = arith.mulf %343, %347 : vector<2x32xf32>
    %350 = arith.addf %348, %349 : vector<2x32xf32>
    %351 = math.tanh %350 : vector<2x32xf32>
    %352 = arith.mulf %345, %351 : vector<2x32xf32>
    %c1_127 = arith.constant 1 : index
    %c0_128 = arith.constant 0 : index
    %c0_129 = arith.constant 0 : index
    %353 = vector.load %arg1[%c1_127, %c0_128, %c0_129] : memref<5x72x128xf32, #tpu.memory_space<vmem>>, vector<1x64x128xf32>
    %354 = vector.shape_cast %353 : vector<1x64x128xf32> to vector<64x128xf32>
    %c1_130 = arith.constant 1 : index
    %c64_131 = arith.constant 64 : index
    %c0_132 = arith.constant 0 : index
    %355 = vector.load %arg1[%c1_130, %c64_131, %c0_132] : memref<5x72x128xf32, #tpu.memory_space<vmem>>, vector<1x1x128xf32>
    %356 = vector.shape_cast %355 : vector<1x1x128xf32> to vector<1x128xf32>
    %357 = tpu.concatenate %326, %302 in 1 : vector<2x32xf32>, vector<2x32xf32> -> vector<2x64xf32>
    %cst_133 = arith.constant dense<0.000000e+00> : vector<2x128xf32>
    %358 = tpu.matmul %357, %354, %cst_133 {dimension_numbers = #tpu.dot_dimension_numbers<[1], [0], [0], [1], [0, 0, 1, 1], [], []>} : vector<2x64xf32>, vector<64x128xf32>, vector<2x128xf32> -> vector<2x128xf32>
    %359 = vector.broadcast %356 : vector<1x128xf32> to vector<2x128xf32>
    %360 = arith.addf %358, %359 : vector<2x128xf32>
    %361 = vector.extract_strided_slice %360 {offsets = [0, 0], sizes = [2, 96], strides = [1, 1]} : vector<2x128xf32> to vector<2x96xf32>
    %362 = arith.negf %361 : vector<2x96xf32>
    %363 = math.exp %362 : vector<2x96xf32>
    %cst_134 = arith.constant 1.000000e+00 : f32
    %364 = vector.broadcast %cst_134 : f32 to vector<2x96xf32>
    %365 = arith.addf %364, %363 : vector<2x96xf32>
    %366 = arith.divf %364, %365 : vector<2x96xf32>
    %367 = vector.extract_strided_slice %366 {offsets = [0, 0], sizes = [2, 32], strides = [1, 1]} : vector<2x96xf32> to vector<2x32xf32>
    %368 = vector.extract_strided_slice %366 {offsets = [0, 32], sizes = [2, 32], strides = [1, 1]} : vector<2x96xf32> to vector<2x32xf32>
    %369 = vector.extract_strided_slice %366 {offsets = [0, 64], sizes = [2, 32], strides = [1, 1]} : vector<2x96xf32> to vector<2x32xf32>
    %370 = vector.extract_strided_slice %360 {offsets = [0, 96], sizes = [2, 32], strides = [1, 1]} : vector<2x128xf32> to vector<2x32xf32>
    %371 = math.tanh %370 : vector<2x32xf32>
    %372 = arith.mulf %368, %324 : vector<2x32xf32>
    %373 = arith.mulf %367, %371 : vector<2x32xf32>
    %374 = arith.addf %372, %373 : vector<2x32xf32>
    %375 = math.tanh %374 : vector<2x32xf32>
    %376 = arith.mulf %369, %375 : vector<2x32xf32>
    %c1_135 = arith.constant 1 : index
    %c0_136 = arith.constant 0 : index
    %c0_137 = arith.constant 0 : index
    %377 = vector.load %arg1[%c1_135, %c0_136, %c0_137] : memref<5x72x128xf32, #tpu.memory_space<vmem>>, vector<1x64x128xf32>
    %378 = vector.shape_cast %377 : vector<1x64x128xf32> to vector<64x128xf32>
    %c1_138 = arith.constant 1 : index
    %c64_139 = arith.constant 64 : index
    %c0_140 = arith.constant 0 : index
    %379 = vector.load %arg1[%c1_138, %c64_139, %c0_140] : memref<5x72x128xf32, #tpu.memory_space<vmem>>, vector<1x1x128xf32>
    %380 = vector.shape_cast %379 : vector<1x1x128xf32> to vector<1x128xf32>
    %381 = tpu.concatenate %376, %352 in 1 : vector<2x32xf32>, vector<2x32xf32> -> vector<2x64xf32>
    %cst_141 = arith.constant dense<0.000000e+00> : vector<2x128xf32>
    %382 = tpu.matmul %381, %378, %cst_141 {dimension_numbers = #tpu.dot_dimension_numbers<[1], [0], [0], [1], [0, 0, 1, 1], [], []>} : vector<2x64xf32>, vector<64x128xf32>, vector<2x128xf32> -> vector<2x128xf32>
    %383 = vector.broadcast %380 : vector<1x128xf32> to vector<2x128xf32>
    %384 = arith.addf %382, %383 : vector<2x128xf32>
    %385 = vector.extract_strided_slice %384 {offsets = [0, 0], sizes = [2, 96], strides = [1, 1]} : vector<2x128xf32> to vector<2x96xf32>
    %386 = arith.negf %385 : vector<2x96xf32>
    %387 = math.exp %386 : vector<2x96xf32>
    %cst_142 = arith.constant 1.000000e+00 : f32
    %388 = vector.broadcast %cst_142 : f32 to vector<2x96xf32>
    %389 = arith.addf %388, %387 : vector<2x96xf32>
    %390 = arith.divf %388, %389 : vector<2x96xf32>
    %391 = vector.extract_strided_slice %390 {offsets = [0, 0], sizes = [2, 32], strides = [1, 1]} : vector<2x96xf32> to vector<2x32xf32>
    %392 = vector.extract_strided_slice %390 {offsets = [0, 32], sizes = [2, 32], strides = [1, 1]} : vector<2x96xf32> to vector<2x32xf32>
    %393 = vector.extract_strided_slice %390 {offsets = [0, 64], sizes = [2, 32], strides = [1, 1]} : vector<2x96xf32> to vector<2x32xf32>
    %394 = vector.extract_strided_slice %384 {offsets = [0, 96], sizes = [2, 32], strides = [1, 1]} : vector<2x128xf32> to vector<2x32xf32>
    %395 = math.tanh %394 : vector<2x32xf32>
    %396 = arith.mulf %392, %374 : vector<2x32xf32>
    %397 = arith.mulf %391, %395 : vector<2x32xf32>
    %398 = arith.addf %396, %397 : vector<2x32xf32>
    %399 = math.tanh %398 : vector<2x32xf32>
    %400 = arith.mulf %393, %399 : vector<2x32xf32>
    %c4_143 = arith.constant 4 : index
    %c0_144 = arith.constant 0 : index
    %c0_145 = arith.constant 0 : index
    %401 = vector.load %arg1[%c4_143, %c0_144, %c0_145] : memref<5x72x128xf32, #tpu.memory_space<vmem>>, vector<1x32x4xf32>
    %402 = vector.shape_cast %401 : vector<1x32x4xf32> to vector<32x4xf32>
    %c4_146 = arith.constant 4 : index
    %c32 = arith.constant 32 : index
    %c0_147 = arith.constant 0 : index
    %403 = vector.load %arg1[%c4_146, %c32, %c0_147] : memref<5x72x128xf32, #tpu.memory_space<vmem>>, vector<1x1x4xf32>
    %404 = vector.shape_cast %403 : vector<1x1x4xf32> to vector<1x4xf32>
    %c2_148 = arith.constant 2 : index
    %c0_149 = arith.constant 0 : index
    %c0_150 = arith.constant 0 : index
    %405 = vector.load %arg1[%c2_148, %c0_149, %c0_150] : memref<5x72x128xf32, #tpu.memory_space<vmem>>, vector<1x64x128xf32>
    %406 = vector.shape_cast %405 : vector<1x64x128xf32> to vector<64x128xf32>
    %c2_151 = arith.constant 2 : index
    %c64_152 = arith.constant 64 : index
    %c0_153 = arith.constant 0 : index
    %407 = vector.load %arg1[%c2_151, %c64_152, %c0_153] : memref<5x72x128xf32, #tpu.memory_space<vmem>>, vector<1x1x128xf32>
    %408 = vector.shape_cast %407 : vector<1x1x128xf32> to vector<1x128xf32>
    %409 = tpu.concatenate %352, %76 in 1 : vector<2x32xf32>, vector<2x32xf32> -> vector<2x64xf32>
    %cst_154 = arith.constant dense<0.000000e+00> : vector<2x128xf32>
    %410 = tpu.matmul %409, %406, %cst_154 {dimension_numbers = #tpu.dot_dimension_numbers<[1], [0], [0], [1], [0, 0, 1, 1], [], []>} : vector<2x64xf32>, vector<64x128xf32>, vector<2x128xf32> -> vector<2x128xf32>
    %411 = vector.broadcast %408 : vector<1x128xf32> to vector<2x128xf32>
    %412 = arith.addf %410, %411 : vector<2x128xf32>
    %413 = vector.extract_strided_slice %412 {offsets = [0, 0], sizes = [2, 96], strides = [1, 1]} : vector<2x128xf32> to vector<2x96xf32>
    %414 = arith.negf %413 : vector<2x96xf32>
    %415 = math.exp %414 : vector<2x96xf32>
    %cst_155 = arith.constant 1.000000e+00 : f32
    %416 = vector.broadcast %cst_155 : f32 to vector<2x96xf32>
    %417 = arith.addf %416, %415 : vector<2x96xf32>
    %418 = arith.divf %416, %417 : vector<2x96xf32>
    %419 = vector.extract_strided_slice %418 {offsets = [0, 0], sizes = [2, 32], strides = [1, 1]} : vector<2x96xf32> to vector<2x32xf32>
    %420 = vector.extract_strided_slice %418 {offsets = [0, 32], sizes = [2, 32], strides = [1, 1]} : vector<2x96xf32> to vector<2x32xf32>
    %421 = vector.extract_strided_slice %418 {offsets = [0, 64], sizes = [2, 32], strides = [1, 1]} : vector<2x96xf32> to vector<2x32xf32>
    %422 = vector.extract_strided_slice %412 {offsets = [0, 96], sizes = [2, 32], strides = [1, 1]} : vector<2x128xf32> to vector<2x32xf32>
    %423 = math.tanh %422 : vector<2x32xf32>
    %424 = arith.mulf %420, %350 : vector<2x32xf32>
    %425 = arith.mulf %419, %423 : vector<2x32xf32>
    %426 = arith.addf %424, %425 : vector<2x32xf32>
    %427 = math.tanh %426 : vector<2x32xf32>
    %428 = arith.mulf %421, %427 : vector<2x32xf32>
    %c2_156 = arith.constant 2 : index
    %c0_157 = arith.constant 0 : index
    %c0_158 = arith.constant 0 : index
    %429 = vector.load %arg1[%c2_156, %c0_157, %c0_158] : memref<5x72x128xf32, #tpu.memory_space<vmem>>, vector<1x64x128xf32>
    %430 = vector.shape_cast %429 : vector<1x64x128xf32> to vector<64x128xf32>
    %c2_159 = arith.constant 2 : index
    %c64_160 = arith.constant 64 : index
    %c0_161 = arith.constant 0 : index
    %431 = vector.load %arg1[%c2_159, %c64_160, %c0_161] : memref<5x72x128xf32, #tpu.memory_space<vmem>>, vector<1x1x128xf32>
    %432 = vector.shape_cast %431 : vector<1x1x128xf32> to vector<1x128xf32>
    %433 = tpu.concatenate %428, %126 in 1 : vector<2x32xf32>, vector<2x32xf32> -> vector<2x64xf32>
    %cst_162 = arith.constant dense<0.000000e+00> : vector<2x128xf32>
    %434 = tpu.matmul %433, %430, %cst_162 {dimension_numbers = #tpu.dot_dimension_numbers<[1], [0], [0], [1], [0, 0, 1, 1], [], []>} : vector<2x64xf32>, vector<64x128xf32>, vector<2x128xf32> -> vector<2x128xf32>
    %435 = vector.broadcast %432 : vector<1x128xf32> to vector<2x128xf32>
    %436 = arith.addf %434, %435 : vector<2x128xf32>
    %437 = vector.extract_strided_slice %436 {offsets = [0, 0], sizes = [2, 96], strides = [1, 1]} : vector<2x128xf32> to vector<2x96xf32>
    %438 = arith.negf %437 : vector<2x96xf32>
    %439 = math.exp %438 : vector<2x96xf32>
    %cst_163 = arith.constant 1.000000e+00 : f32
    %440 = vector.broadcast %cst_163 : f32 to vector<2x96xf32>
    %441 = arith.addf %440, %439 : vector<2x96xf32>
    %442 = arith.divf %440, %441 : vector<2x96xf32>
    %443 = vector.extract_strided_slice %442 {offsets = [0, 0], sizes = [2, 32], strides = [1, 1]} : vector<2x96xf32> to vector<2x32xf32>
    %444 = vector.extract_strided_slice %442 {offsets = [0, 32], sizes = [2, 32], strides = [1, 1]} : vector<2x96xf32> to vector<2x32xf32>
    %445 = vector.extract_strided_slice %442 {offsets = [0, 64], sizes = [2, 32], strides = [1, 1]} : vector<2x96xf32> to vector<2x32xf32>
    %446 = vector.extract_strided_slice %436 {offsets = [0, 96], sizes = [2, 32], strides = [1, 1]} : vector<2x128xf32> to vector<2x32xf32>
    %447 = math.tanh %446 : vector<2x32xf32>
    %448 = arith.mulf %444, %426 : vector<2x32xf32>
    %449 = arith.mulf %443, %447 : vector<2x32xf32>
    %450 = arith.addf %448, %449 : vector<2x32xf32>
    %451 = math.tanh %450 : vector<2x32xf32>
    %452 = arith.mulf %445, %451 : vector<2x32xf32>
    %c3_164 = arith.constant 3 : index
    %c0_165 = arith.constant 0 : index
    %c0_166 = arith.constant 0 : index
    %453 = vector.load %arg1[%c3_164, %c0_165, %c0_166] : memref<5x72x128xf32, #tpu.memory_space<vmem>>, vector<1x64x128xf32>
    %454 = vector.shape_cast %453 : vector<1x64x128xf32> to vector<64x128xf32>
    %c3_167 = arith.constant 3 : index
    %c64_168 = arith.constant 64 : index
    %c0_169 = arith.constant 0 : index
    %455 = vector.load %arg1[%c3_167, %c64_168, %c0_169] : memref<5x72x128xf32, #tpu.memory_space<vmem>>, vector<1x1x128xf32>
    %456 = vector.shape_cast %455 : vector<1x1x128xf32> to vector<1x128xf32>
    %457 = tpu.concatenate %400, %428 in 1 : vector<2x32xf32>, vector<2x32xf32> -> vector<2x64xf32>
    %cst_170 = arith.constant dense<0.000000e+00> : vector<2x128xf32>
    %458 = tpu.matmul %457, %454, %cst_170 {dimension_numbers = #tpu.dot_dimension_numbers<[1], [0], [0], [1], [0, 0, 1, 1], [], []>} : vector<2x64xf32>, vector<64x128xf32>, vector<2x128xf32> -> vector<2x128xf32>
    %459 = vector.broadcast %456 : vector<1x128xf32> to vector<2x128xf32>
    %460 = arith.addf %458, %459 : vector<2x128xf32>
    %461 = vector.extract_strided_slice %460 {offsets = [0, 0], sizes = [2, 96], strides = [1, 1]} : vector<2x128xf32> to vector<2x96xf32>
    %462 = arith.negf %461 : vector<2x96xf32>
    %463 = math.exp %462 : vector<2x96xf32>
    %cst_171 = arith.constant 1.000000e+00 : f32
    %464 = vector.broadcast %cst_171 : f32 to vector<2x96xf32>
    %465 = arith.addf %464, %463 : vector<2x96xf32>
    %466 = arith.divf %464, %465 : vector<2x96xf32>
    %467 = vector.extract_strided_slice %466 {offsets = [0, 0], sizes = [2, 32], strides = [1, 1]} : vector<2x96xf32> to vector<2x32xf32>
    %468 = vector.extract_strided_slice %466 {offsets = [0, 32], sizes = [2, 32], strides = [1, 1]} : vector<2x96xf32> to vector<2x32xf32>
    %469 = vector.extract_strided_slice %466 {offsets = [0, 64], sizes = [2, 32], strides = [1, 1]} : vector<2x96xf32> to vector<2x32xf32>
    %470 = vector.extract_strided_slice %460 {offsets = [0, 96], sizes = [2, 32], strides = [1, 1]} : vector<2x128xf32> to vector<2x32xf32>
    %471 = math.tanh %470 : vector<2x32xf32>
    %472 = arith.mulf %468, %398 : vector<2x32xf32>
    %473 = arith.mulf %467, %471 : vector<2x32xf32>
    %474 = arith.addf %472, %473 : vector<2x32xf32>
    %475 = math.tanh %474 : vector<2x32xf32>
    %476 = arith.mulf %469, %475 : vector<2x32xf32>
    %cst_172 = arith.constant dense<0.000000e+00> : vector<2x4xf32>
    %477 = tpu.matmul %476, %402, %cst_172 {dimension_numbers = #tpu.dot_dimension_numbers<[1], [0], [0], [1], [0, 0, 1, 1], [], []>} : vector<2x32xf32>, vector<32x4xf32>, vector<2x4xf32> -> vector<2x4xf32>
    %478 = vector.broadcast %404 : vector<1x4xf32> to vector<2x4xf32>
    %479 = arith.addf %477, %478 : vector<2x4xf32>
    %c0_173 = arith.constant 0 : index
    %c0_174 = arith.constant 0 : index
    %c0_175 = arith.constant 0 : index
    %480 = vector.load %arg2[%c0_173, %c0_174, %c0_175] : memref<2x8x4xf32, #tpu.memory_space<vmem>>, vector<2x1x4xf32>
    %481 = vector.shape_cast %480 : vector<2x1x4xf32> to vector<2x4xf32>
    %482 = vector.shape_cast %479 : vector<2x4xf32> to vector<2x1x4xf32>
    tpu.vector_store %arg2[%c0_173, %c0_174, %c0_175], %482 {strides = array<i32>} : memref<2x8x4xf32, #tpu.memory_space<vmem>>, vector<2x1x4xf32>,
    %c2_176 = arith.constant 2 : index
    %c0_177 = arith.constant 0 : index
    %c0_178 = arith.constant 0 : index
    %483 = vector.load %arg1[%c2_176, %c0_177, %c0_178] : memref<5x72x128xf32, #tpu.memory_space<vmem>>, vector<1x64x128xf32>
    %484 = vector.shape_cast %483 : vector<1x64x128xf32> to vector<64x128xf32>
    %c2_179 = arith.constant 2 : index
    %c64_180 = arith.constant 64 : index
    %c0_181 = arith.constant 0 : index
    %485 = vector.load %arg1[%c2_179, %c64_180, %c0_181] : memref<5x72x128xf32, #tpu.memory_space<vmem>>, vector<1x1x128xf32>
    %486 = vector.shape_cast %485 : vector<1x1x128xf32> to vector<1x128xf32>
    %487 = tpu.concatenate %452, %176 in 1 : vector<2x32xf32>, vector<2x32xf32> -> vector<2x64xf32>
    %cst_182 = arith.constant dense<0.000000e+00> : vector<2x128xf32>
    %488 = tpu.matmul %487, %484, %cst_182 {dimension_numbers = #tpu.dot_dimension_numbers<[1], [0], [0], [1], [0, 0, 1, 1], [], []>} : vector<2x64xf32>, vector<64x128xf32>, vector<2x128xf32> -> vector<2x128xf32>
    %489 = vector.broadcast %486 : vector<1x128xf32> to vector<2x128xf32>
    %490 = arith.addf %488, %489 : vector<2x128xf32>
    %491 = vector.extract_strided_slice %490 {offsets = [0, 0], sizes = [2, 96], strides = [1, 1]} : vector<2x128xf32> to vector<2x96xf32>
    %492 = arith.negf %491 : vector<2x96xf32>
    %493 = math.exp %492 : vector<2x96xf32>
    %cst_183 = arith.constant 1.000000e+00 : f32
    %494 = vector.broadcast %cst_183 : f32 to vector<2x96xf32>
    %495 = arith.addf %494, %493 : vector<2x96xf32>
    %496 = arith.divf %494, %495 : vector<2x96xf32>
    %497 = vector.extract_strided_slice %496 {offsets = [0, 0], sizes = [2, 32], strides = [1, 1]} : vector<2x96xf32> to vector<2x32xf32>
    %498 = vector.extract_strided_slice %496 {offsets = [0, 32], sizes = [2, 32], strides = [1, 1]} : vector<2x96xf32> to vector<2x32xf32>
    %499 = vector.extract_strided_slice %496 {offsets = [0, 64], sizes = [2, 32], strides = [1, 1]} : vector<2x96xf32> to vector<2x32xf32>
    %500 = vector.extract_strided_slice %490 {offsets = [0, 96], sizes = [2, 32], strides = [1, 1]} : vector<2x128xf32> to vector<2x32xf32>
    %501 = math.tanh %500 : vector<2x32xf32>
    %502 = arith.mulf %498, %450 : vector<2x32xf32>
    %503 = arith.mulf %497, %501 : vector<2x32xf32>
    %504 = arith.addf %502, %503 : vector<2x32xf32>
    %505 = math.tanh %504 : vector<2x32xf32>
    %506 = arith.mulf %499, %505 : vector<2x32xf32>
    %c3_184 = arith.constant 3 : index
    %c0_185 = arith.constant 0 : index
    %c0_186 = arith.constant 0 : index
    %507 = vector.load %arg1[%c3_184, %c0_185, %c0_186] : memref<5x72x128xf32, #tpu.memory_space<vmem>>, vector<1x64x128xf32>
    %508 = vector.shape_cast %507 : vector<1x64x128xf32> to vector<64x128xf32>
    %c3_187 = arith.constant 3 : index
    %c64_188 = arith.constant 64 : index
    %c0_189 = arith.constant 0 : index
    %509 = vector.load %arg1[%c3_187, %c64_188, %c0_189] : memref<5x72x128xf32, #tpu.memory_space<vmem>>, vector<1x1x128xf32>
    %510 = vector.shape_cast %509 : vector<1x1x128xf32> to vector<1x128xf32>
    %511 = tpu.concatenate %476, %452 in 1 : vector<2x32xf32>, vector<2x32xf32> -> vector<2x64xf32>
    %cst_190 = arith.constant dense<0.000000e+00> : vector<2x128xf32>
    %512 = tpu.matmul %511, %508, %cst_190 {dimension_numbers = #tpu.dot_dimension_numbers<[1], [0], [0], [1], [0, 0, 1, 1], [], []>} : vector<2x64xf32>, vector<64x128xf32>, vector<2x128xf32> -> vector<2x128xf32>
    %513 = vector.broadcast %510 : vector<1x128xf32> to vector<2x128xf32>
    %514 = arith.addf %512, %513 : vector<2x128xf32>
    %515 = vector.extract_strided_slice %514 {offsets = [0, 0], sizes = [2, 96], strides = [1, 1]} : vector<2x128xf32> to vector<2x96xf32>
    %516 = arith.negf %515 : vector<2x96xf32>
    %517 = math.exp %516 : vector<2x96xf32>
    %cst_191 = arith.constant 1.000000e+00 : f32
    %518 = vector.broadcast %cst_191 : f32 to vector<2x96xf32>
    %519 = arith.addf %518, %517 : vector<2x96xf32>
    %520 = arith.divf %518, %519 : vector<2x96xf32>
    %521 = vector.extract_strided_slice %520 {offsets = [0, 0], sizes = [2, 32], strides = [1, 1]} : vector<2x96xf32> to vector<2x32xf32>
    %522 = vector.extract_strided_slice %520 {offsets = [0, 32], sizes = [2, 32], strides = [1, 1]} : vector<2x96xf32> to vector<2x32xf32>
    %523 = vector.extract_strided_slice %520 {offsets = [0, 64], sizes = [2, 32], strides = [1, 1]} : vector<2x96xf32> to vector<2x32xf32>
    %524 = vector.extract_strided_slice %514 {offsets = [0, 96], sizes = [2, 32], strides = [1, 1]} : vector<2x128xf32> to vector<2x32xf32>
    %525 = math.tanh %524 : vector<2x32xf32>
    %526 = arith.mulf %522, %474 : vector<2x32xf32>
    %527 = arith.mulf %521, %525 : vector<2x32xf32>
    %528 = arith.addf %526, %527 : vector<2x32xf32>
    %529 = math.tanh %528 : vector<2x32xf32>
    %530 = arith.mulf %523, %529 : vector<2x32xf32>
    %cst_192 = arith.constant dense<0.000000e+00> : vector<2x4xf32>
    %531 = tpu.matmul %530, %402, %cst_192 {dimension_numbers = #tpu.dot_dimension_numbers<[1], [0], [0], [1], [0, 0, 1, 1], [], []>} : vector<2x32xf32>, vector<32x4xf32>, vector<2x4xf32> -> vector<2x4xf32>
    %532 = vector.broadcast %404 : vector<1x4xf32> to vector<2x4xf32>
    %533 = arith.addf %531, %532 : vector<2x4xf32>
    %c0_193 = arith.constant 0 : index
    %c1_194 = arith.constant 1 : index
    %c0_195 = arith.constant 0 : index
    %534 = vector.load %arg2[%c0_193, %c1_194, %c0_195] : memref<2x8x4xf32, #tpu.memory_space<vmem>>, vector<2x1x4xf32>
    %535 = vector.shape_cast %534 : vector<2x1x4xf32> to vector<2x4xf32>
    %536 = vector.shape_cast %533 : vector<2x4xf32> to vector<2x1x4xf32>
    tpu.vector_store %arg2[%c0_193, %c1_194, %c0_195], %536 {strides = array<i32>} : memref<2x8x4xf32, #tpu.memory_space<vmem>>, vector<2x1x4xf32>,
    %c2_196 = arith.constant 2 : index
    %c0_197 = arith.constant 0 : index
    %c0_198 = arith.constant 0 : index
    %537 = vector.load %arg1[%c2_196, %c0_197, %c0_198] : memref<5x72x128xf32, #tpu.memory_space<vmem>>, vector<1x64x128xf32>
    %538 = vector.shape_cast %537 : vector<1x64x128xf32> to vector<64x128xf32>
    %c2_199 = arith.constant 2 : index
    %c64_200 = arith.constant 64 : index
    %c0_201 = arith.constant 0 : index
    %539 = vector.load %arg1[%c2_199, %c64_200, %c0_201] : memref<5x72x128xf32, #tpu.memory_space<vmem>>, vector<1x1x128xf32>
    %540 = vector.shape_cast %539 : vector<1x1x128xf32> to vector<1x128xf32>
    %541 = tpu.concatenate %506, %226 in 1 : vector<2x32xf32>, vector<2x32xf32> -> vector<2x64xf32>
    %cst_202 = arith.constant dense<0.000000e+00> : vector<2x128xf32>
    %542 = tpu.matmul %541, %538, %cst_202 {dimension_numbers = #tpu.dot_dimension_numbers<[1], [0], [0], [1], [0, 0, 1, 1], [], []>} : vector<2x64xf32>, vector<64x128xf32>, vector<2x128xf32> -> vector<2x128xf32>
    %543 = vector.broadcast %540 : vector<1x128xf32> to vector<2x128xf32>
    %544 = arith.addf %542, %543 : vector<2x128xf32>
    %545 = vector.extract_strided_slice %544 {offsets = [0, 0], sizes = [2, 96], strides = [1, 1]} : vector<2x128xf32> to vector<2x96xf32>
    %546 = arith.negf %545 : vector<2x96xf32>
    %547 = math.exp %546 : vector<2x96xf32>
    %cst_203 = arith.constant 1.000000e+00 : f32
    %548 = vector.broadcast %cst_203 : f32 to vector<2x96xf32>
    %549 = arith.addf %548, %547 : vector<2x96xf32>
    %550 = arith.divf %548, %549 : vector<2x96xf32>
    %551 = vector.extract_strided_slice %550 {offsets = [0, 0], sizes = [2, 32], strides = [1, 1]} : vector<2x96xf32> to vector<2x32xf32>
    %552 = vector.extract_strided_slice %550 {offsets = [0, 32], sizes = [2, 32], strides = [1, 1]} : vector<2x96xf32> to vector<2x32xf32>
    %553 = vector.extract_strided_slice %550 {offsets = [0, 64], sizes = [2, 32], strides = [1, 1]} : vector<2x96xf32> to vector<2x32xf32>
    %554 = vector.extract_strided_slice %544 {offsets = [0, 96], sizes = [2, 32], strides = [1, 1]} : vector<2x128xf32> to vector<2x32xf32>
    %555 = math.tanh %554 : vector<2x32xf32>
    %556 = arith.mulf %552, %504 : vector<2x32xf32>
    %557 = arith.mulf %551, %555 : vector<2x32xf32>
    %558 = arith.addf %556, %557 : vector<2x32xf32>
    %559 = math.tanh %558 : vector<2x32xf32>
    %560 = arith.mulf %553, %559 : vector<2x32xf32>
    %c3_204 = arith.constant 3 : index
    %c0_205 = arith.constant 0 : index
    %c0_206 = arith.constant 0 : index
    %561 = vector.load %arg1[%c3_204, %c0_205, %c0_206] : memref<5x72x128xf32, #tpu.memory_space<vmem>>, vector<1x64x128xf32>
    %562 = vector.shape_cast %561 : vector<1x64x128xf32> to vector<64x128xf32>
    %c3_207 = arith.constant 3 : index
    %c64_208 = arith.constant 64 : index
    %c0_209 = arith.constant 0 : index
    %563 = vector.load %arg1[%c3_207, %c64_208, %c0_209] : memref<5x72x128xf32, #tpu.memory_space<vmem>>, vector<1x1x128xf32>
    %564 = vector.shape_cast %563 : vector<1x1x128xf32> to vector<1x128xf32>
    %565 = tpu.concatenate %530, %506 in 1 : vector<2x32xf32>, vector<2x32xf32> -> vector<2x64xf32>
    %cst_210 = arith.constant dense<0.000000e+00> : vector<2x128xf32>
    %566 = tpu.matmul %565, %562, %cst_210 {dimension_numbers = #tpu.dot_dimension_numbers<[1], [0], [0], [1], [0, 0, 1, 1], [], []>} : vector<2x64xf32>, vector<64x128xf32>, vector<2x128xf32> -> vector<2x128xf32>
    %567 = vector.broadcast %564 : vector<1x128xf32> to vector<2x128xf32>
    %568 = arith.addf %566, %567 : vector<2x128xf32>
    %569 = vector.extract_strided_slice %568 {offsets = [0, 0], sizes = [2, 96], strides = [1, 1]} : vector<2x128xf32> to vector<2x96xf32>
    %570 = arith.negf %569 : vector<2x96xf32>
    %571 = math.exp %570 : vector<2x96xf32>
    %cst_211 = arith.constant 1.000000e+00 : f32
    %572 = vector.broadcast %cst_211 : f32 to vector<2x96xf32>
    %573 = arith.addf %572, %571 : vector<2x96xf32>
    %574 = arith.divf %572, %573 : vector<2x96xf32>
    %575 = vector.extract_strided_slice %574 {offsets = [0, 0], sizes = [2, 32], strides = [1, 1]} : vector<2x96xf32> to vector<2x32xf32>
    %576 = vector.extract_strided_slice %574 {offsets = [0, 32], sizes = [2, 32], strides = [1, 1]} : vector<2x96xf32> to vector<2x32xf32>
    %577 = vector.extract_strided_slice %574 {offsets = [0, 64], sizes = [2, 32], strides = [1, 1]} : vector<2x96xf32> to vector<2x32xf32>
    %578 = vector.extract_strided_slice %568 {offsets = [0, 96], sizes = [2, 32], strides = [1, 1]} : vector<2x128xf32> to vector<2x32xf32>
    %579 = math.tanh %578 : vector<2x32xf32>
    %580 = arith.mulf %576, %528 : vector<2x32xf32>
    %581 = arith.mulf %575, %579 : vector<2x32xf32>
    %582 = arith.addf %580, %581 : vector<2x32xf32>
    %583 = math.tanh %582 : vector<2x32xf32>
    %584 = arith.mulf %577, %583 : vector<2x32xf32>
    %cst_212 = arith.constant dense<0.000000e+00> : vector<2x4xf32>
    %585 = tpu.matmul %584, %402, %cst_212 {dimension_numbers = #tpu.dot_dimension_numbers<[1], [0], [0], [1], [0, 0, 1, 1], [], []>} : vector<2x32xf32>, vector<32x4xf32>, vector<2x4xf32> -> vector<2x4xf32>
    %586 = vector.broadcast %404 : vector<1x4xf32> to vector<2x4xf32>
    %587 = arith.addf %585, %586 : vector<2x4xf32>
    %c0_213 = arith.constant 0 : index
    %c2_214 = arith.constant 2 : index
    %c0_215 = arith.constant 0 : index
    %588 = vector.load %arg2[%c0_213, %c2_214, %c0_215] : memref<2x8x4xf32, #tpu.memory_space<vmem>>, vector<2x1x4xf32>
    %589 = vector.shape_cast %588 : vector<2x1x4xf32> to vector<2x4xf32>
    %590 = vector.shape_cast %587 : vector<2x4xf32> to vector<2x1x4xf32>
    tpu.vector_store %arg2[%c0_213, %c2_214, %c0_215], %590 {strides = array<i32>} : memref<2x8x4xf32, #tpu.memory_space<vmem>>, vector<2x1x4xf32>,
    %c2_216 = arith.constant 2 : index
    %c0_217 = arith.constant 0 : index
    %c0_218 = arith.constant 0 : index
    %591 = vector.load %arg1[%c2_216, %c0_217, %c0_218] : memref<5x72x128xf32, #tpu.memory_space<vmem>>, vector<1x64x128xf32>
    %592 = vector.shape_cast %591 : vector<1x64x128xf32> to vector<64x128xf32>
    %c2_219 = arith.constant 2 : index
    %c64_220 = arith.constant 64 : index
    %c0_221 = arith.constant 0 : index
    %593 = vector.load %arg1[%c2_219, %c64_220, %c0_221] : memref<5x72x128xf32, #tpu.memory_space<vmem>>, vector<1x1x128xf32>
    %594 = vector.shape_cast %593 : vector<1x1x128xf32> to vector<1x128xf32>
    %595 = tpu.concatenate %560, %276 in 1 : vector<2x32xf32>, vector<2x32xf32> -> vector<2x64xf32>
    %cst_222 = arith.constant dense<0.000000e+00> : vector<2x128xf32>
    %596 = tpu.matmul %595, %592, %cst_222 {dimension_numbers = #tpu.dot_dimension_numbers<[1], [0], [0], [1], [0, 0, 1, 1], [], []>} : vector<2x64xf32>, vector<64x128xf32>, vector<2x128xf32> -> vector<2x128xf32>
    %597 = vector.broadcast %594 : vector<1x128xf32> to vector<2x128xf32>
    %598 = arith.addf %596, %597 : vector<2x128xf32>
    %599 = vector.extract_strided_slice %598 {offsets = [0, 0], sizes = [2, 96], strides = [1, 1]} : vector<2x128xf32> to vector<2x96xf32>
    %600 = arith.negf %599 : vector<2x96xf32>
    %601 = math.exp %600 : vector<2x96xf32>
    %cst_223 = arith.constant 1.000000e+00 : f32
    %602 = vector.broadcast %cst_223 : f32 to vector<2x96xf32>
    %603 = arith.addf %602, %601 : vector<2x96xf32>
    %604 = arith.divf %602, %603 : vector<2x96xf32>
    %605 = vector.extract_strided_slice %604 {offsets = [0, 0], sizes = [2, 32], strides = [1, 1]} : vector<2x96xf32> to vector<2x32xf32>
    %606 = vector.extract_strided_slice %604 {offsets = [0, 32], sizes = [2, 32], strides = [1, 1]} : vector<2x96xf32> to vector<2x32xf32>
    %607 = vector.extract_strided_slice %604 {offsets = [0, 64], sizes = [2, 32], strides = [1, 1]} : vector<2x96xf32> to vector<2x32xf32>
    %608 = vector.extract_strided_slice %598 {offsets = [0, 96], sizes = [2, 32], strides = [1, 1]} : vector<2x128xf32> to vector<2x32xf32>
    %609 = math.tanh %608 : vector<2x32xf32>
    %610 = arith.mulf %606, %558 : vector<2x32xf32>
    %611 = arith.mulf %605, %609 : vector<2x32xf32>
    %612 = arith.addf %610, %611 : vector<2x32xf32>
    %613 = math.tanh %612 : vector<2x32xf32>
    %614 = arith.mulf %607, %613 : vector<2x32xf32>
    %c3_224 = arith.constant 3 : index
    %c0_225 = arith.constant 0 : index
    %c0_226 = arith.constant 0 : index
    %615 = vector.load %arg1[%c3_224, %c0_225, %c0_226] : memref<5x72x128xf32, #tpu.memory_space<vmem>>, vector<1x64x128xf32>
    %616 = vector.shape_cast %615 : vector<1x64x128xf32> to vector<64x128xf32>
    %c3_227 = arith.constant 3 : index
    %c64_228 = arith.constant 64 : index
    %c0_229 = arith.constant 0 : index
    %617 = vector.load %arg1[%c3_227, %c64_228, %c0_229] : memref<5x72x128xf32, #tpu.memory_space<vmem>>, vector<1x1x128xf32>
    %618 = vector.shape_cast %617 : vector<1x1x128xf32> to vector<1x128xf32>
    %619 = tpu.concatenate %584, %560 in 1 : vector<2x32xf32>, vector<2x32xf32> -> vector<2x64xf32>
    %cst_230 = arith.constant dense<0.000000e+00> : vector<2x128xf32>
    %620 = tpu.matmul %619, %616, %cst_230 {dimension_numbers = #tpu.dot_dimension_numbers<[1], [0], [0], [1], [0, 0, 1, 1], [], []>} : vector<2x64xf32>, vector<64x128xf32>, vector<2x128xf32> -> vector<2x128xf32>
    %621 = vector.broadcast %618 : vector<1x128xf32> to vector<2x128xf32>
    %622 = arith.addf %620, %621 : vector<2x128xf32>
    %623 = vector.extract_strided_slice %622 {offsets = [0, 0], sizes = [2, 96], strides = [1, 1]} : vector<2x128xf32> to vector<2x96xf32>
    %624 = arith.negf %623 : vector<2x96xf32>
    %625 = math.exp %624 : vector<2x96xf32>
    %cst_231 = arith.constant 1.000000e+00 : f32
    %626 = vector.broadcast %cst_231 : f32 to vector<2x96xf32>
    %627 = arith.addf %626, %625 : vector<2x96xf32>
    %628 = arith.divf %626, %627 : vector<2x96xf32>
    %629 = vector.extract_strided_slice %628 {offsets = [0, 0], sizes = [2, 32], strides = [1, 1]} : vector<2x96xf32> to vector<2x32xf32>
    %630 = vector.extract_strided_slice %628 {offsets = [0, 32], sizes = [2, 32], strides = [1, 1]} : vector<2x96xf32> to vector<2x32xf32>
    %631 = vector.extract_strided_slice %628 {offsets = [0, 64], sizes = [2, 32], strides = [1, 1]} : vector<2x96xf32> to vector<2x32xf32>
    %632 = vector.extract_strided_slice %622 {offsets = [0, 96], sizes = [2, 32], strides = [1, 1]} : vector<2x128xf32> to vector<2x32xf32>
    %633 = math.tanh %632 : vector<2x32xf32>
    %634 = arith.mulf %630, %582 : vector<2x32xf32>
    %635 = arith.mulf %629, %633 : vector<2x32xf32>
    %636 = arith.addf %634, %635 : vector<2x32xf32>
    %637 = math.tanh %636 : vector<2x32xf32>
    %638 = arith.mulf %631, %637 : vector<2x32xf32>
    %cst_232 = arith.constant dense<0.000000e+00> : vector<2x4xf32>
    %639 = tpu.matmul %638, %402, %cst_232 {dimension_numbers = #tpu.dot_dimension_numbers<[1], [0], [0], [1], [0, 0, 1, 1], [], []>} : vector<2x32xf32>, vector<32x4xf32>, vector<2x4xf32> -> vector<2x4xf32>
    %640 = vector.broadcast %404 : vector<1x4xf32> to vector<2x4xf32>
    %641 = arith.addf %639, %640 : vector<2x4xf32>
    %c0_233 = arith.constant 0 : index
    %c3_234 = arith.constant 3 : index
    %c0_235 = arith.constant 0 : index
    %642 = vector.load %arg2[%c0_233, %c3_234, %c0_235] : memref<2x8x4xf32, #tpu.memory_space<vmem>>, vector<2x1x4xf32>
    %643 = vector.shape_cast %642 : vector<2x1x4xf32> to vector<2x4xf32>
    %644 = vector.shape_cast %641 : vector<2x4xf32> to vector<2x1x4xf32>
    tpu.vector_store %arg2[%c0_233, %c3_234, %c0_235], %644 {strides = array<i32>} : memref<2x8x4xf32, #tpu.memory_space<vmem>>, vector<2x1x4xf32>,
    %c2_236 = arith.constant 2 : index
    %c0_237 = arith.constant 0 : index
    %c0_238 = arith.constant 0 : index
    %645 = vector.load %arg1[%c2_236, %c0_237, %c0_238] : memref<5x72x128xf32, #tpu.memory_space<vmem>>, vector<1x64x128xf32>
    %646 = vector.shape_cast %645 : vector<1x64x128xf32> to vector<64x128xf32>
    %c2_239 = arith.constant 2 : index
    %c64_240 = arith.constant 64 : index
    %c0_241 = arith.constant 0 : index
    %647 = vector.load %arg1[%c2_239, %c64_240, %c0_241] : memref<5x72x128xf32, #tpu.memory_space<vmem>>, vector<1x1x128xf32>
    %648 = vector.shape_cast %647 : vector<1x1x128xf32> to vector<1x128xf32>
    %649 = tpu.concatenate %614, %326 in 1 : vector<2x32xf32>, vector<2x32xf32> -> vector<2x64xf32>
    %cst_242 = arith.constant dense<0.000000e+00> : vector<2x128xf32>
    %650 = tpu.matmul %649, %646, %cst_242 {dimension_numbers = #tpu.dot_dimension_numbers<[1], [0], [0], [1], [0, 0, 1, 1], [], []>} : vector<2x64xf32>, vector<64x128xf32>, vector<2x128xf32> -> vector<2x128xf32>
    %651 = vector.broadcast %648 : vector<1x128xf32> to vector<2x128xf32>
    %652 = arith.addf %650, %651 : vector<2x128xf32>
    %653 = vector.extract_strided_slice %652 {offsets = [0, 0], sizes = [2, 96], strides = [1, 1]} : vector<2x128xf32> to vector<2x96xf32>
    %654 = arith.negf %653 : vector<2x96xf32>
    %655 = math.exp %654 : vector<2x96xf32>
    %cst_243 = arith.constant 1.000000e+00 : f32
    %656 = vector.broadcast %cst_243 : f32 to vector<2x96xf32>
    %657 = arith.addf %656, %655 : vector<2x96xf32>
    %658 = arith.divf %656, %657 : vector<2x96xf32>
    %659 = vector.extract_strided_slice %658 {offsets = [0, 0], sizes = [2, 32], strides = [1, 1]} : vector<2x96xf32> to vector<2x32xf32>
    %660 = vector.extract_strided_slice %658 {offsets = [0, 32], sizes = [2, 32], strides = [1, 1]} : vector<2x96xf32> to vector<2x32xf32>
    %661 = vector.extract_strided_slice %658 {offsets = [0, 64], sizes = [2, 32], strides = [1, 1]} : vector<2x96xf32> to vector<2x32xf32>
    %662 = vector.extract_strided_slice %652 {offsets = [0, 96], sizes = [2, 32], strides = [1, 1]} : vector<2x128xf32> to vector<2x32xf32>
    %663 = math.tanh %662 : vector<2x32xf32>
    %664 = arith.mulf %660, %612 : vector<2x32xf32>
    %665 = arith.mulf %659, %663 : vector<2x32xf32>
    %666 = arith.addf %664, %665 : vector<2x32xf32>
    %667 = math.tanh %666 : vector<2x32xf32>
    %668 = arith.mulf %661, %667 : vector<2x32xf32>
    %c3_244 = arith.constant 3 : index
    %c0_245 = arith.constant 0 : index
    %c0_246 = arith.constant 0 : index
    %669 = vector.load %arg1[%c3_244, %c0_245, %c0_246] : memref<5x72x128xf32, #tpu.memory_space<vmem>>, vector<1x64x128xf32>
    %670 = vector.shape_cast %669 : vector<1x64x128xf32> to vector<64x128xf32>
    %c3_247 = arith.constant 3 : index
    %c64_248 = arith.constant 64 : index
    %c0_249 = arith.constant 0 : index
    %671 = vector.load %arg1[%c3_247, %c64_248, %c0_249] : memref<5x72x128xf32, #tpu.memory_space<vmem>>, vector<1x1x128xf32>
    %672 = vector.shape_cast %671 : vector<1x1x128xf32> to vector<1x128xf32>
    %673 = tpu.concatenate %638, %614 in 1 : vector<2x32xf32>, vector<2x32xf32> -> vector<2x64xf32>
    %cst_250 = arith.constant dense<0.000000e+00> : vector<2x128xf32>
    %674 = tpu.matmul %673, %670, %cst_250 {dimension_numbers = #tpu.dot_dimension_numbers<[1], [0], [0], [1], [0, 0, 1, 1], [], []>} : vector<2x64xf32>, vector<64x128xf32>, vector<2x128xf32> -> vector<2x128xf32>
    %675 = vector.broadcast %672 : vector<1x128xf32> to vector<2x128xf32>
    %676 = arith.addf %674, %675 : vector<2x128xf32>
    %677 = vector.extract_strided_slice %676 {offsets = [0, 0], sizes = [2, 96], strides = [1, 1]} : vector<2x128xf32> to vector<2x96xf32>
    %678 = arith.negf %677 : vector<2x96xf32>
    %679 = math.exp %678 : vector<2x96xf32>
    %cst_251 = arith.constant 1.000000e+00 : f32
    %680 = vector.broadcast %cst_251 : f32 to vector<2x96xf32>
    %681 = arith.addf %680, %679 : vector<2x96xf32>
    %682 = arith.divf %680, %681 : vector<2x96xf32>
    %683 = vector.extract_strided_slice %682 {offsets = [0, 0], sizes = [2, 32], strides = [1, 1]} : vector<2x96xf32> to vector<2x32xf32>
    %684 = vector.extract_strided_slice %682 {offsets = [0, 32], sizes = [2, 32], strides = [1, 1]} : vector<2x96xf32> to vector<2x32xf32>
    %685 = vector.extract_strided_slice %682 {offsets = [0, 64], sizes = [2, 32], strides = [1, 1]} : vector<2x96xf32> to vector<2x32xf32>
    %686 = vector.extract_strided_slice %676 {offsets = [0, 96], sizes = [2, 32], strides = [1, 1]} : vector<2x128xf32> to vector<2x32xf32>
    %687 = math.tanh %686 : vector<2x32xf32>
    %688 = arith.mulf %684, %636 : vector<2x32xf32>
    %689 = arith.mulf %683, %687 : vector<2x32xf32>
    %690 = arith.addf %688, %689 : vector<2x32xf32>
    %691 = math.tanh %690 : vector<2x32xf32>
    %692 = arith.mulf %685, %691 : vector<2x32xf32>
    %cst_252 = arith.constant dense<0.000000e+00> : vector<2x4xf32>
    %693 = tpu.matmul %692, %402, %cst_252 {dimension_numbers = #tpu.dot_dimension_numbers<[1], [0], [0], [1], [0, 0, 1, 1], [], []>} : vector<2x32xf32>, vector<32x4xf32>, vector<2x4xf32> -> vector<2x4xf32>
    %694 = vector.broadcast %404 : vector<1x4xf32> to vector<2x4xf32>
    %695 = arith.addf %693, %694 : vector<2x4xf32>
    %c0_253 = arith.constant 0 : index
    %c4_254 = arith.constant 4 : index
    %c0_255 = arith.constant 0 : index
    %696 = vector.load %arg2[%c0_253, %c4_254, %c0_255] : memref<2x8x4xf32, #tpu.memory_space<vmem>>, vector<2x1x4xf32>
    %697 = vector.shape_cast %696 : vector<2x1x4xf32> to vector<2x4xf32>
    %698 = vector.shape_cast %695 : vector<2x4xf32> to vector<2x1x4xf32>
    tpu.vector_store %arg2[%c0_253, %c4_254, %c0_255], %698 {strides = array<i32>} : memref<2x8x4xf32, #tpu.memory_space<vmem>>, vector<2x1x4xf32>,
    %c2_256 = arith.constant 2 : index
    %c0_257 = arith.constant 0 : index
    %c0_258 = arith.constant 0 : index
    %699 = vector.load %arg1[%c2_256, %c0_257, %c0_258] : memref<5x72x128xf32, #tpu.memory_space<vmem>>, vector<1x64x128xf32>
    %700 = vector.shape_cast %699 : vector<1x64x128xf32> to vector<64x128xf32>
    %c2_259 = arith.constant 2 : index
    %c64_260 = arith.constant 64 : index
    %c0_261 = arith.constant 0 : index
    %701 = vector.load %arg1[%c2_259, %c64_260, %c0_261] : memref<5x72x128xf32, #tpu.memory_space<vmem>>, vector<1x1x128xf32>
    %702 = vector.shape_cast %701 : vector<1x1x128xf32> to vector<1x128xf32>
    %703 = tpu.concatenate %668, %376 in 1 : vector<2x32xf32>, vector<2x32xf32> -> vector<2x64xf32>
    %cst_262 = arith.constant dense<0.000000e+00> : vector<2x128xf32>
    %704 = tpu.matmul %703, %700, %cst_262 {dimension_numbers = #tpu.dot_dimension_numbers<[1], [0], [0], [1], [0, 0, 1, 1], [], []>} : vector<2x64xf32>, vector<64x128xf32>, vector<2x128xf32> -> vector<2x128xf32>
    %705 = vector.broadcast %702 : vector<1x128xf32> to vector<2x128xf32>
    %706 = arith.addf %704, %705 : vector<2x128xf32>
    %707 = vector.extract_strided_slice %706 {offsets = [0, 0], sizes = [2, 96], strides = [1, 1]} : vector<2x128xf32> to vector<2x96xf32>
    %708 = arith.negf %707 : vector<2x96xf32>
    %709 = math.exp %708 : vector<2x96xf32>
    %cst_263 = arith.constant 1.000000e+00 : f32
    %710 = vector.broadcast %cst_263 : f32 to vector<2x96xf32>
    %711 = arith.addf %710, %709 : vector<2x96xf32>
    %712 = arith.divf %710, %711 : vector<2x96xf32>
    %713 = vector.extract_strided_slice %712 {offsets = [0, 0], sizes = [2, 32], strides = [1, 1]} : vector<2x96xf32> to vector<2x32xf32>
    %714 = vector.extract_strided_slice %712 {offsets = [0, 32], sizes = [2, 32], strides = [1, 1]} : vector<2x96xf32> to vector<2x32xf32>
    %715 = vector.extract_strided_slice %712 {offsets = [0, 64], sizes = [2, 32], strides = [1, 1]} : vector<2x96xf32> to vector<2x32xf32>
    %716 = vector.extract_strided_slice %706 {offsets = [0, 96], sizes = [2, 32], strides = [1, 1]} : vector<2x128xf32> to vector<2x32xf32>
    %717 = math.tanh %716 : vector<2x32xf32>
    %718 = arith.mulf %714, %666 : vector<2x32xf32>
    %719 = arith.mulf %713, %717 : vector<2x32xf32>
    %720 = arith.addf %718, %719 : vector<2x32xf32>
    %721 = math.tanh %720 : vector<2x32xf32>
    %722 = arith.mulf %715, %721 : vector<2x32xf32>
    %c3_264 = arith.constant 3 : index
    %c0_265 = arith.constant 0 : index
    %c0_266 = arith.constant 0 : index
    %723 = vector.load %arg1[%c3_264, %c0_265, %c0_266] : memref<5x72x128xf32, #tpu.memory_space<vmem>>, vector<1x64x128xf32>
    %724 = vector.shape_cast %723 : vector<1x64x128xf32> to vector<64x128xf32>
    %c3_267 = arith.constant 3 : index
    %c64_268 = arith.constant 64 : index
    %c0_269 = arith.constant 0 : index
    %725 = vector.load %arg1[%c3_267, %c64_268, %c0_269] : memref<5x72x128xf32, #tpu.memory_space<vmem>>, vector<1x1x128xf32>
    %726 = vector.shape_cast %725 : vector<1x1x128xf32> to vector<1x128xf32>
    %727 = tpu.concatenate %692, %668 in 1 : vector<2x32xf32>, vector<2x32xf32> -> vector<2x64xf32>
    %cst_270 = arith.constant dense<0.000000e+00> : vector<2x128xf32>
    %728 = tpu.matmul %727, %724, %cst_270 {dimension_numbers = #tpu.dot_dimension_numbers<[1], [0], [0], [1], [0, 0, 1, 1], [], []>} : vector<2x64xf32>, vector<64x128xf32>, vector<2x128xf32> -> vector<2x128xf32>
    %729 = vector.broadcast %726 : vector<1x128xf32> to vector<2x128xf32>
    %730 = arith.addf %728, %729 : vector<2x128xf32>
    %731 = vector.extract_strided_slice %730 {offsets = [0, 0], sizes = [2, 96], strides = [1, 1]} : vector<2x128xf32> to vector<2x96xf32>
    %732 = arith.negf %731 : vector<2x96xf32>
    %733 = math.exp %732 : vector<2x96xf32>
    %cst_271 = arith.constant 1.000000e+00 : f32
    %734 = vector.broadcast %cst_271 : f32 to vector<2x96xf32>
    %735 = arith.addf %734, %733 : vector<2x96xf32>
    %736 = arith.divf %734, %735 : vector<2x96xf32>
    %737 = vector.extract_strided_slice %736 {offsets = [0, 0], sizes = [2, 32], strides = [1, 1]} : vector<2x96xf32> to vector<2x32xf32>
    %738 = vector.extract_strided_slice %736 {offsets = [0, 32], sizes = [2, 32], strides = [1, 1]} : vector<2x96xf32> to vector<2x32xf32>
    %739 = vector.extract_strided_slice %736 {offsets = [0, 64], sizes = [2, 32], strides = [1, 1]} : vector<2x96xf32> to vector<2x32xf32>
    %740 = vector.extract_strided_slice %730 {offsets = [0, 96], sizes = [2, 32], strides = [1, 1]} : vector<2x128xf32> to vector<2x32xf32>
    %741 = math.tanh %740 : vector<2x32xf32>
    %742 = arith.mulf %738, %690 : vector<2x32xf32>
    %743 = arith.mulf %737, %741 : vector<2x32xf32>
    %744 = arith.addf %742, %743 : vector<2x32xf32>
    %745 = math.tanh %744 : vector<2x32xf32>
    %746 = arith.mulf %739, %745 : vector<2x32xf32>
    %cst_272 = arith.constant dense<0.000000e+00> : vector<2x4xf32>
    %747 = tpu.matmul %746, %402, %cst_272 {dimension_numbers = #tpu.dot_dimension_numbers<[1], [0], [0], [1], [0, 0, 1, 1], [], []>} : vector<2x32xf32>, vector<32x4xf32>, vector<2x4xf32> -> vector<2x4xf32>
    %748 = vector.broadcast %404 : vector<1x4xf32> to vector<2x4xf32>
    %749 = arith.addf %747, %748 : vector<2x4xf32>
    %c0_273 = arith.constant 0 : index
    %c5_274 = arith.constant 5 : index
    %c0_275 = arith.constant 0 : index
    %750 = vector.load %arg2[%c0_273, %c5_274, %c0_275] : memref<2x8x4xf32, #tpu.memory_space<vmem>>, vector<2x1x4xf32>
    %751 = vector.shape_cast %750 : vector<2x1x4xf32> to vector<2x4xf32>
    %752 = vector.shape_cast %749 : vector<2x4xf32> to vector<2x1x4xf32>
    tpu.vector_store %arg2[%c0_273, %c5_274, %c0_275], %752 {strides = array<i32>} : memref<2x8x4xf32, #tpu.memory_space<vmem>>, vector<2x1x4xf32>,
    %c2_276 = arith.constant 2 : index
    %c0_277 = arith.constant 0 : index
    %c0_278 = arith.constant 0 : index
    %753 = vector.load %arg1[%c2_276, %c0_277, %c0_278] : memref<5x72x128xf32, #tpu.memory_space<vmem>>, vector<1x64x128xf32>
    %754 = vector.shape_cast %753 : vector<1x64x128xf32> to vector<64x128xf32>
    %c2_279 = arith.constant 2 : index
    %c64_280 = arith.constant 64 : index
    %c0_281 = arith.constant 0 : index
    %755 = vector.load %arg1[%c2_279, %c64_280, %c0_281] : memref<5x72x128xf32, #tpu.memory_space<vmem>>, vector<1x1x128xf32>
    %756 = vector.shape_cast %755 : vector<1x1x128xf32> to vector<1x128xf32>
    %757 = tpu.concatenate %722, %400 in 1 : vector<2x32xf32>, vector<2x32xf32> -> vector<2x64xf32>
    %cst_282 = arith.constant dense<0.000000e+00> : vector<2x128xf32>
    %758 = tpu.matmul %757, %754, %cst_282 {dimension_numbers = #tpu.dot_dimension_numbers<[1], [0], [0], [1], [0, 0, 1, 1], [], []>} : vector<2x64xf32>, vector<64x128xf32>, vector<2x128xf32> -> vector<2x128xf32>
    %759 = vector.broadcast %756 : vector<1x128xf32> to vector<2x128xf32>
    %760 = arith.addf %758, %759 : vector<2x128xf32>
    %761 = vector.extract_strided_slice %760 {offsets = [0, 0], sizes = [2, 96], strides = [1, 1]} : vector<2x128xf32> to vector<2x96xf32>
    %762 = arith.negf %761 : vector<2x96xf32>
    %763 = math.exp %762 : vector<2x96xf32>
    %cst_283 = arith.constant 1.000000e+00 : f32
    %764 = vector.broadcast %cst_283 : f32 to vector<2x96xf32>
    %765 = arith.addf %764, %763 : vector<2x96xf32>
    %766 = arith.divf %764, %765 : vector<2x96xf32>
    %767 = vector.extract_strided_slice %766 {offsets = [0, 0], sizes = [2, 32], strides = [1, 1]} : vector<2x96xf32> to vector<2x32xf32>
    %768 = vector.extract_strided_slice %766 {offsets = [0, 32], sizes = [2, 32], strides = [1, 1]} : vector<2x96xf32> to vector<2x32xf32>
    %769 = vector.extract_strided_slice %766 {offsets = [0, 64], sizes = [2, 32], strides = [1, 1]} : vector<2x96xf32> to vector<2x32xf32>
    %770 = vector.extract_strided_slice %760 {offsets = [0, 96], sizes = [2, 32], strides = [1, 1]} : vector<2x128xf32> to vector<2x32xf32>
    %771 = math.tanh %770 : vector<2x32xf32>
    %772 = arith.mulf %768, %720 : vector<2x32xf32>
    %773 = arith.mulf %767, %771 : vector<2x32xf32>
    %774 = arith.addf %772, %773 : vector<2x32xf32>
    %775 = math.tanh %774 : vector<2x32xf32>
    %776 = arith.mulf %769, %775 : vector<2x32xf32>
    %c3_284 = arith.constant 3 : index
    %c0_285 = arith.constant 0 : index
    %c0_286 = arith.constant 0 : index
    %777 = vector.load %arg1[%c3_284, %c0_285, %c0_286] : memref<5x72x128xf32, #tpu.memory_space<vmem>>, vector<1x64x128xf32>
    %778 = vector.shape_cast %777 : vector<1x64x128xf32> to vector<64x128xf32>
    %c3_287 = arith.constant 3 : index
    %c64_288 = arith.constant 64 : index
    %c0_289 = arith.constant 0 : index
    %779 = vector.load %arg1[%c3_287, %c64_288, %c0_289] : memref<5x72x128xf32, #tpu.memory_space<vmem>>, vector<1x1x128xf32>
    %780 = vector.shape_cast %779 : vector<1x1x128xf32> to vector<1x128xf32>
    %781 = tpu.concatenate %746, %722 in 1 : vector<2x32xf32>, vector<2x32xf32> -> vector<2x64xf32>
    %cst_290 = arith.constant dense<0.000000e+00> : vector<2x128xf32>
    %782 = tpu.matmul %781, %778, %cst_290 {dimension_numbers = #tpu.dot_dimension_numbers<[1], [0], [0], [1], [0, 0, 1, 1], [], []>} : vector<2x64xf32>, vector<64x128xf32>, vector<2x128xf32> -> vector<2x128xf32>
    %783 = vector.broadcast %780 : vector<1x128xf32> to vector<2x128xf32>
    %784 = arith.addf %782, %783 : vector<2x128xf32>
    %785 = vector.extract_strided_slice %784 {offsets = [0, 0], sizes = [2, 96], strides = [1, 1]} : vector<2x128xf32> to vector<2x96xf32>
    %786 = arith.negf %785 : vector<2x96xf32>
    %787 = math.exp %786 : vector<2x96xf32>
    %cst_291 = arith.constant 1.000000e+00 : f32
    %788 = vector.broadcast %cst_291 : f32 to vector<2x96xf32>
    %789 = arith.addf %788, %787 : vector<2x96xf32>
    %790 = arith.divf %788, %789 : vector<2x96xf32>
    %791 = vector.extract_strided_slice %790 {offsets = [0, 0], sizes = [2, 32], strides = [1, 1]} : vector<2x96xf32> to vector<2x32xf32>
    %792 = vector.extract_strided_slice %790 {offsets = [0, 32], sizes = [2, 32], strides = [1, 1]} : vector<2x96xf32> to vector<2x32xf32>
    %793 = vector.extract_strided_slice %790 {offsets = [0, 64], sizes = [2, 32], strides = [1, 1]} : vector<2x96xf32> to vector<2x32xf32>
    %794 = vector.extract_strided_slice %784 {offsets = [0, 96], sizes = [2, 32], strides = [1, 1]} : vector<2x128xf32> to vector<2x32xf32>
    %795 = math.tanh %794 : vector<2x32xf32>
    %796 = arith.mulf %792, %744 : vector<2x32xf32>
    %797 = arith.mulf %791, %795 : vector<2x32xf32>
    %798 = arith.addf %796, %797 : vector<2x32xf32>
    %799 = math.tanh %798 : vector<2x32xf32>
    %800 = arith.mulf %793, %799 : vector<2x32xf32>
    %cst_292 = arith.constant dense<0.000000e+00> : vector<2x4xf32>
    %801 = tpu.matmul %800, %402, %cst_292 {dimension_numbers = #tpu.dot_dimension_numbers<[1], [0], [0], [1], [0, 0, 1, 1], [], []>} : vector<2x32xf32>, vector<32x4xf32>, vector<2x4xf32> -> vector<2x4xf32>
    %802 = vector.broadcast %404 : vector<1x4xf32> to vector<2x4xf32>
    %803 = arith.addf %801, %802 : vector<2x4xf32>
    %c0_293 = arith.constant 0 : index
    %c6_294 = arith.constant 6 : index
    %c0_295 = arith.constant 0 : index
    %804 = vector.load %arg2[%c0_293, %c6_294, %c0_295] : memref<2x8x4xf32, #tpu.memory_space<vmem>>, vector<2x1x4xf32>
    %805 = vector.shape_cast %804 : vector<2x1x4xf32> to vector<2x4xf32>
    %806 = vector.shape_cast %803 : vector<2x4xf32> to vector<2x1x4xf32>
    tpu.vector_store %arg2[%c0_293, %c6_294, %c0_295], %806 {strides = array<i32>} : memref<2x8x4xf32, #tpu.memory_space<vmem>>, vector<2x1x4xf32>,
    %c3_296 = arith.constant 3 : index
    %c0_297 = arith.constant 0 : index
    %c0_298 = arith.constant 0 : index
    %807 = vector.load %arg1[%c3_296, %c0_297, %c0_298] : memref<5x72x128xf32, #tpu.memory_space<vmem>>, vector<1x64x128xf32>
    %808 = vector.shape_cast %807 : vector<1x64x128xf32> to vector<64x128xf32>
    %c3_299 = arith.constant 3 : index
    %c64_300 = arith.constant 64 : index
    %c0_301 = arith.constant 0 : index
    %809 = vector.load %arg1[%c3_299, %c64_300, %c0_301] : memref<5x72x128xf32, #tpu.memory_space<vmem>>, vector<1x1x128xf32>
    %810 = vector.shape_cast %809 : vector<1x1x128xf32> to vector<1x128xf32>
    %811 = tpu.concatenate %800, %776 in 1 : vector<2x32xf32>, vector<2x32xf32> -> vector<2x64xf32>
    %cst_302 = arith.constant dense<0.000000e+00> : vector<2x128xf32>
    %812 = tpu.matmul %811, %808, %cst_302 {dimension_numbers = #tpu.dot_dimension_numbers<[1], [0], [0], [1], [0, 0, 1, 1], [], []>} : vector<2x64xf32>, vector<64x128xf32>, vector<2x128xf32> -> vector<2x128xf32>
    %813 = vector.broadcast %810 : vector<1x128xf32> to vector<2x128xf32>
    %814 = arith.addf %812, %813 : vector<2x128xf32>
    %815 = vector.extract_strided_slice %814 {offsets = [0, 0], sizes = [2, 96], strides = [1, 1]} : vector<2x128xf32> to vector<2x96xf32>
    %816 = arith.negf %815 : vector<2x96xf32>
    %817 = math.exp %816 : vector<2x96xf32>
    %cst_303 = arith.constant 1.000000e+00 : f32
    %818 = vector.broadcast %cst_303 : f32 to vector<2x96xf32>
    %819 = arith.addf %818, %817 : vector<2x96xf32>
    %820 = arith.divf %818, %819 : vector<2x96xf32>
    %821 = vector.extract_strided_slice %820 {offsets = [0, 0], sizes = [2, 32], strides = [1, 1]} : vector<2x96xf32> to vector<2x32xf32>
    %822 = vector.extract_strided_slice %820 {offsets = [0, 32], sizes = [2, 32], strides = [1, 1]} : vector<2x96xf32> to vector<2x32xf32>
    %823 = vector.extract_strided_slice %820 {offsets = [0, 64], sizes = [2, 32], strides = [1, 1]} : vector<2x96xf32> to vector<2x32xf32>
    %824 = vector.extract_strided_slice %814 {offsets = [0, 96], sizes = [2, 32], strides = [1, 1]} : vector<2x128xf32> to vector<2x32xf32>
    %825 = math.tanh %824 : vector<2x32xf32>
    %826 = arith.mulf %822, %798 : vector<2x32xf32>
    %827 = arith.mulf %821, %825 : vector<2x32xf32>
    %828 = arith.addf %826, %827 : vector<2x32xf32>
    %829 = math.tanh %828 : vector<2x32xf32>
    %830 = arith.mulf %823, %829 : vector<2x32xf32>
    %cst_304 = arith.constant dense<0.000000e+00> : vector<2x4xf32>
    %831 = tpu.matmul %830, %402, %cst_304 {dimension_numbers = #tpu.dot_dimension_numbers<[1], [0], [0], [1], [0, 0, 1, 1], [], []>} : vector<2x32xf32>, vector<32x4xf32>, vector<2x4xf32> -> vector<2x4xf32>
    %832 = vector.broadcast %404 : vector<1x4xf32> to vector<2x4xf32>
    %833 = arith.addf %831, %832 : vector<2x4xf32>
    %c0_305 = arith.constant 0 : index
    %c7_306 = arith.constant 7 : index
    %c0_307 = arith.constant 0 : index
    %834 = vector.load %arg2[%c0_305, %c7_306, %c0_307] : memref<2x8x4xf32, #tpu.memory_space<vmem>>, vector<2x1x4xf32>
    %835 = vector.shape_cast %834 : vector<2x1x4xf32> to vector<2x4xf32>
    %836 = vector.shape_cast %833 : vector<2x4xf32> to vector<2x1x4xf32>
    tpu.vector_store %arg2[%c0_305, %c7_306, %c0_307], %836 {strides = array<i32>} : memref<2x8x4xf32, #tpu.memory_space<vmem>>, vector<2x1x4xf32>,
    return
  }
}

</mosaic_0001>

<llo_original>
// kernel: lstm_anomaly_detector_forward.1
$region0: #{lstm_anomaly_detector_forward.1}
  #allocation0 [shape = 'u32[]', space=smem, size = 0x4, offset = 0x4, fixed_abs, tag = 'smem constant byte address 0x4 - core index']
  #allocation1 [shape = 'u32[144,128]{1,0:T(1,128)}', space=vmem, size = 0x12000, scoped, tag = 'internal scratch']
  %s0 = inlined_call_operand.vmem [shape: f32[2,8,4], index: 0, kind: input, shape index: {}]
  %s1 = inlined_call_operand.hbm [shape: f32[5,72,128], index: 1, kind: input, shape index: {}]
  %s2 = inlined_call_operand.vmem [shape: f32[2,8,4], index: 2, kind: output, shape index: {}]
  %s3 = sld [smem:[#allocation0]]
  $region22: #{lstm_anomaly_detector_forward.1} parent=0
    _
  %s5 = ssub.s32 1, %s3
  %s6 = scalar_select 0, %s5, %s3
  $region1: #{lstm_anomaly_detector_forward.1} parent=0
    #allocation2 [shape = 'u8[184320]{0}', space=vmem, size = 0x2d000, scoped, tag = 'input window, operand 1, single buffered']
    #allocation3 [shape = 's32[1]{0}', space=sflag, size = 0x4, scoped, tag = 'scoped memory for lstm_anomaly_detector_forward.1']
    %7 = vsyncpa [#allocation3], 0
    // Predicated region
    $region2: #{lstm_anomaly_detector_forward.1} parent=1 // pred_check
      _
    $region3: #{lstm_anomaly_detector_forward.1} parent=1 // pred_check_branch
      %9 = sbr.rel (0) target = $region5
    $region4: #{lstm_anomaly_detector_forward.1} parent=1 // pred_region
      _
    $region5: #{lstm_anomaly_detector_forward.1} parent=1 // pred_fallthru
      _
    // Predicated region
    $region6: #{lstm_anomaly_detector_forward.1} parent=1 // pred_check
      _
    $region7: #{lstm_anomaly_detector_forward.1} parent=1 // pred_check_branch
      %11 = sbr.rel (0) target = $region9
    $region8: #{lstm_anomaly_detector_forward.1} parent=1 // pred_region
      %s13 = ssub.s32 5760, 5760
      %14 = vsyncadd [#allocation3], %s13
      %s15 = sshll.u32 [#allocation2], 4
      %s16 = int_to_ptr.vmem [resolvable:$true] %s15
      %21 = dma.hbm_to_vmem [thread:$0]  %s1, 5760, %s16, [#allocation3], 128, 128, 8
    $region9: #{lstm_anomaly_detector_forward.1} parent=1 // pred_fallthru
      _
    // Predicated region
    $region10: #{lstm_anomaly_detector_forward.1} parent=1 // pred_check
      _
    $region11: #{lstm_anomaly_detector_forward.1} parent=1 // pred_check_branch
      %23 = sbr.rel (0) target = $region13
    $region12: #{lstm_anomaly_detector_forward.1} parent=1 // pred_region
      %24 = dma.done [#allocation3], 5760
    $region13: #{lstm_anomaly_detector_forward.1} parent=1 // pred_fallthru
      _
    %v25 = vld [vmem:[%s0] sm:$0x1]
    %v26 = vld [vmem:[%s0 + $0x8] sm:$0x1]
    %v27 = vld [vmem:[#allocation2] sm:$0xff]
    %v28 = vld [vmem:[#allocation2 + $0x8] sm:$0xff]
    %v29 = vld [vmem:[#allocation2 + $0x10] sm:$0xff]
    %v30 = vld [vmem:[#allocation2 + $0x18] sm:$0xff]
    %v31 = vld [vmem:[#allocation2 + $0x20] sm:$0xf]
    %v32 = vld [vmem:[#allocation2 + $0x40] sm:$0x1]
    %v35 = vrot.slane %v26, 7
    %vm36 = vcmask 1041409
    %v37 = vsel %vm36, %v35, %v25
    %38 = vrot.lane.b32.xlu0 %v37, 32
    %v39 = vpop.permute.xlu0 %38
    %vm41 = vcmask 261120
    %v42 = vsel %vm41, 0.0, %v39
    %v43 = vlaneseq
    %v44 = vshrl.u32 %v43, 7
    %v45 = vsub.s32 0, %v44
    %v46 = vrot.slane %v32, %v45
    %vm47 = vcmask 293888
    %v49 = vsel %vm47, %v42, 0
    %vm51 = vcmask 1043456
    %v53 = vsel %vm51, %v31, 0
    %55 = vmatprep.subr.mxu0 0.0
    %56 = vmatpush1.msra.mxu0 %v27
    %57 = vmatprep.subr.mxu0 0.0
    %58 = vmatpush1.msra.mxu0 %v28
    %59 = vmatprep.subr.mxu0 0.0
    %60 = vmatpush1.msra.mxu0 %v29
    %61 = vmatprep.subr.mxu0 0.0
    %62 = vmatpush1.msra.mxu0 %v30
    %63 = vmatprep.subr.mxu0 0.0
    %64 = vmatpush1.msra.mxu0 %v53
    %65 = vmatprep.subr.mxu0 0.0
    %66 = vmatpush1.msra.mxu0 0.0
    %67 = vmatprep.subr.mxu0 0.0
    %68 = vmatpush1.msra.mxu0 0.0
    %69 = vmatprep.subr.mxu0 0.0
    %70 = vmatpush1.msra.mxu0 0.0
    %71 = vmatprep.subr.mxu0 0.0
    %72 = vmatpush1.msra.mxu0 0.0
    %73 = vmatprep.subr.mxu0 0.0
    %74 = vmatpush1.msra.mxu0 0.0
    %75 = vmatprep.subr.mxu0 0.0
    %76 = vmatpush1.msra.mxu0 0.0
    %77 = vmatprep.subr.mxu0 0.0
    %78 = vmatpush1.msra.mxu0 0.0
    %79 = vmatprep.subr.mxu0 0.0
    %80 = vmatpush1.msra.mxu0 0.0
    %81 = vmatprep.subr.mxu0 0.0
    %82 = vmatpush1.msra.mxu0 0.0
    %83 = vmatprep.subr.mxu0 0.0
    %84 = vmatpush1.msra.mxu0 0.0
    %85 = vmatprep.subr.mxu0 0.0
    %86 = vmatpush1.msra.mxu0 0.0
    %87 = vmatprep.subr.mxu0 0.0
    %88 = vmatpush1.msra.mxu0 0.0
    %89 = vmatprep.subr.mxu0 0.0
    %90 = vmatpush1.msra.mxu0 0.0
    %91 = vmatprep.subr.mxu0 0.0
    %92 = vmatpush1.msra.mxu0 0.0
    %93 = vmatprep.subr.mxu0 0.0
    %94 = vmatpush1.msra.mxu0 0.0
    %95 = vmatprep.subr.mxu0 0.0
    %96 = vmatpush1.msra.mxu0 0.0
    %97 = vmatprep.subr.mxu0 0.0
    %98 = vmatpush1.msra.mxu0 0.0
    %99 = vmatprep.subr.mxu0 0.0
    %100 = vmatpush1.msra.mxu0 0.0
    %101 = vmatprep.subr.mxu0 0.0
    %102 = vmatpush1.msra.mxu0 0.0
    %103 = vmatprep.subr.mxu0 0.0
    %104 = vmatpush1.msra.mxu0 0.0
    %105 = vmatprep.subr.mxu0 0.0
    %106 = vmatpush1.msra.mxu0 0.0
    %107 = vmatprep.subr.mxu0 0.0
    %108 = vmatpush1.msra.mxu0 0.0
    %109 = vmatprep.subr.mxu0 0.0
    %110 = vmatpush1.msra.mxu0 0.0
    %111 = vmatprep.subr.mxu0 0.0
    %112 = vmatpush1.msra.mxu0 0.0
    %113 = vmatprep.subr.mxu0 0.0
    %114 = vmatpush1.msra.mxu0 0.0
    %115 = vmatprep.subr.mxu0 0.0
    %116 = vmatpush1.msra.mxu0 0.0
    %117 = vmatprep.subr.mxu0 0.0
    %118 = vmatpush1.msra.mxu0 0.0
    %119 = vmatprep.mubr.f32.mxu0 0.0
    %120 = vmatmul.mubr.f32.gmra.mrb[0].mxu0 %v49
    %v121 = vpop.f32.mrb[0].mxu0
    %v122 = vadd.f32 %v46, %v121
    %v123 = vpop.f32.mrb[0].mxu0
    %124 = vdwg.mxu0
    %v125 = vxor.u32 %v122, 2147483648
    %v126 = vmul.f32 %v125, 1.442695
    %v127 = vpow.pop %v126
    %v128 = vadd.f32 %v127, 1.0
    %v129 = vrcp.pop %v128
    %v130 = vmul.f32 1.0, %v129
    %v131 = vtanh.pop %v122
    %v132 = vmul.f32 %v130, 0.0
    %134 = vrot.lane.b32.xlu0 %v131, 32
    %v135 = vpop.permute.xlu0 %134
    %v137 = vmul.f32 %v130, %v135
    %139 = vrot.lane.b32.xlu0 %v137, 32
    %v140 = vpop.permute.xlu0 %139
    %v142 = vadd.f32 %v132, %v140
    %v143 = vtanh.pop %v142
    %145 = vrot.lane.b32.xlu0 %v143, 32
    %v146 = vpop.permute.xlu0 %145
    %v148 = vmul.f32 %v130, %v146
    %v149 = vld [vmem:[%s0 + $0x1] sm:$0x1]
    %v150 = vld [vmem:[%s0 + $0x9] sm:$0x1]
    %152 = vrot.lane.b32.xlu0 %v148, 64
    %v153 = vpop.permute.xlu0 %152
    %v157 = vrot.slane %v150, 7
    %v158 = vsel %vm36, %v157, %v149
    %159 = vrot.lane.b32.xlu0 %v158, 32
    %v160 = vpop.permute.xlu0 %159
    %v162 = vsel %vm41, %v153, %v160
    %v164 = vsel %vm47, %v162, 0
    %166 = vmatprep.subr.mxu0 0.0
    %167 = vmatpush1.msra.mxu0 %v27
    %168 = vmatprep.subr.mxu0 0.0
    %169 = vmatpush1.msra.mxu0 %v28
    %170 = vmatprep.subr.mxu0 0.0
    %171 = vmatpush1.msra.mxu0 %v29
    %172 = vmatprep.subr.mxu0 0.0
    %173 = vmatpush1.msra.mxu0 %v30
    %174 = vmatprep.subr.mxu0 0.0
    %175 = vmatpush1.msra.mxu0 %v53
    %176 = vmatprep.subr.mxu0 0.0
    %177 = vmatpush1.msra.mxu0 0.0
    %178 = vmatprep.subr.mxu0 0.0
    %179 = vmatpush1.msra.mxu0 0.0
    %180 = vmatprep.subr.mxu0 0.0
    %181 = vmatpush1.msra.mxu0 0.0
    %182 = vmatprep.subr.mxu0 0.0
    %183 = vmatpush1.msra.mxu0 0.0
    %184 = vmatprep.subr.mxu0 0.0
    %185 = vmatpush1.msra.mxu0 0.0
    %186 = vmatprep.subr.mxu0 0.0
    %187 = vmatpush1.msra.mxu0 0.0
    %188 = vmatprep.subr.mxu0 0.0
    %189 = vmatpush1.msra.mxu0 0.0
    %190 = vmatprep.subr.mxu0 0.0
    %191 = vmatpush1.msra.mxu0 0.0
    %192 = vmatprep.subr.mxu0 0.0
    %193 = vmatpush1.msra.mxu0 0.0
    %194 = vmatprep.subr.mxu0 0.0
    %195 = vmatpush1.msra.mxu0 0.0
    %196 = vmatprep.subr.mxu0 0.0
    %197 = vmatpush1.msra.mxu0 0.0
    %198 = vmatprep.subr.mxu0 0.0
    %199 = vmatpush1.msra.mxu0 0.0
    %200 = vmatprep.subr.mxu0 0.0
    %201 = vmatpush1.msra.mxu0 0.0
    %202 = vmatprep.subr.mxu0 0.0
    %203 = vmatpush1.msra.mxu0 0.0
    %204 = vmatprep.subr.mxu0 0.0
    %205 = vmatpush1.msra.mxu0 0.0
    %206 = vmatprep.subr.mxu0 0.0
    %207 = vmatpush1.msra.mxu0 0.0
    %208 = vmatprep.subr.mxu0 0.0
    %209 = vmatpush1.msra.mxu0 0.0
    %210 = vmatprep.subr.mxu0 0.0
    %211 = vmatpush1.msra.mxu0 0.0
    %212 = vmatprep.subr.mxu0 0.0
    %213 = vmatpush1.msra.mxu0 0.0
    %214 = vmatprep.subr.mxu0 0.0
    %215 = vmatpush1.msra.mxu0 0.0
    %216 = vmatprep.subr.mxu0 0.0
    %217 = vmatpush1.msra.mxu0 0.0
    %218 = vmatprep.subr.mxu0 0.0
    %219 = vmatpush1.msra.mxu0 0.0
    %220 = vmatprep.subr.mxu0 0.0
    %221 = vmatpush1.msra.mxu0 0.0
    %222 = vmatprep.subr.mxu0 0.0
    %223 = vmatpush1.msra.mxu0 0.0
    %224 = vmatprep.subr.mxu0 0.0
    %225 = vmatpush1.msra.mxu0 0.0
    %226 = vmatprep.subr.mxu0 0.0
    %227 = vmatpush1.msra.mxu0 0.0
    %228 = vmatprep.subr.mxu0 0.0
    %229 = vmatpush1.msra.mxu0 0.0
    %230 = vmatprep.mubr.f32.mxu0 0.0
    %231 = vmatmul.mubr.f32.gmra.mrb[0].mxu0 %v164
    %v232 = vpop.f32.mrb[0].mxu0
    %v233 = vadd.f32 %v46, %v232
    %v234 = vpop.f32.mrb[0].mxu0
    %235 = vdwg.mxu0
    %v236 = vxor.u32 %v233, 2147483648
    %v237 = vmul.f32 %v236, 1.442695
    %v238 = vpow.pop %v237
    %v239 = vadd.f32 %v238, 1.0
    %v240 = vrcp.pop %v239
    %v241 = vmul.f32 1.0, %v240
    %v242 = vtanh.pop %v233
    %v243 = vmul.f32 %v241, %v142
    %245 = vrot.lane.b32.xlu0 %v242, 32
    %v246 = vpop.permute.xlu0 %245
    %v248 = vmul.f32 %v241, %v246
    %250 = vrot.lane.b32.xlu0 %v248, 32
    %v251 = vpop.permute.xlu0 %250
    %v253 = vadd.f32 %v243, %v251
    %v254 = vtanh.pop %v253
    %256 = vrot.lane.b32.xlu0 %v254, 32
    %v257 = vpop.permute.xlu0 %256
    %v259 = vmul.f32 %v241, %v257
    %s260 = scalar_lea.vmem [#allocation2], 72
    %v261 = vld [vmem:[%s260] sm:$0xff]
    %v262 = vld [vmem:[%s260 + $0x8] sm:$0xff]
    %v263 = vld [vmem:[%s260 + $0x10] sm:$0xff]
    %v264 = vld [vmem:[%s260 + $0x18] sm:$0xff]
    %v265 = vld [vmem:[%s260 + $0x20] sm:$0xff]
    %v266 = vld [vmem:[%s260 + $0x28] sm:$0xff]
    %v267 = vld [vmem:[%s260 + $0x30] sm:$0xff]
    %v268 = vld [vmem:[%s260 + $0x38] sm:$0xff]
    %v269 = vld [vmem:[%s260 + $0x40] sm:$0x1]
    %270 = vrot.lane.b32.xlu0 %v148, 96
    %v271 = vpop.permute.xlu0 %270
    %v273 = vsel %vm41, 0.0, %v271
    %v274 = vlaneseq
    %v275 = vshrl.u32 %v274, 7
    %v276 = vsub.s32 0, %v275
    %v277 = vrot.slane %v269, %v276
    %vm278 = vcmask 523264
    %v280 = vsel %vm278, %v273, 0
    %282 = vmatprep.subr.mxu0 0.0
    %283 = vmatpush1.msra.mxu0 %v261
    %284 = vmatprep.subr.mxu0 0.0
    %285 = vmatpush1.msra.mxu0 %v262
    %286 = vmatprep.subr.mxu0 0.0
    %287 = vmatpush1.msra.mxu0 %v263
    %288 = vmatprep.subr.mxu0 0.0
    %289 = vmatpush1.msra.mxu0 %v264
    %290 = vmatprep.subr.mxu0 0.0
    %291 = vmatpush1.msra.mxu0 %v265
    %292 = vmatprep.subr.mxu0 0.0
    %293 = vmatpush1.msra.mxu0 %v266
    %294 = vmatprep.subr.mxu0 0.0
    %295 = vmatpush1.msra.mxu0 %v267
    %296 = vmatprep.subr.mxu0 0.0
    %297 = vmatpush1.msra.mxu0 %v268
    %298 = vmatprep.subr.mxu0 0.0
    %299 = vmatpush1.msra.mxu0 0.0
    %300 = vmatprep.subr.mxu0 0.0
    %301 = vmatpush1.msra.mxu0 0.0
    %302 = vmatprep.subr.mxu0 0.0
    %303 = vmatpush1.msra.mxu0 0.0
    %304 = vmatprep.subr.mxu0 0.0
    %305 = vmatpush1.msra.mxu0 0.0
    %306 = vmatprep.subr.mxu0 0.0
    %307 = vmatpush1.msra.mxu0 0.0
    %308 = vmatprep.subr.mxu0 0.0
    %309 = vmatpush1.msra.mxu0 0.0
    %310 = vmatprep.subr.mxu0 0.0
    %311 = vmatpush1.msra.mxu0 0.0
    %312 = vmatprep.subr.mxu0 0.0
    %313 = vmatpush1.msra.mxu0 0.0
    %314 = vmatprep.subr.mxu0 0.0
    %315 = vmatpush1.msra.mxu0 0.0
    %316 = vmatprep.subr.mxu0 0.0
    %317 = vmatpush1.msra.mxu0 0.0
    %318 = vmatprep.subr.mxu0 0.0
    %319 = vmatpush1.msra.mxu0 0.0
    %320 = vmatprep.subr.mxu0 0.0
    %321 = vmatpush1.msra.mxu0 0.0
    %322 = vmatprep.subr.mxu0 0.0
    %323 = vmatpush1.msra.mxu0 0.0
    %324 = vmatprep.subr.mxu0 0.0
    %325 = vmatpush1.msra.mxu0 0.0
    %326 = vmatprep.subr.mxu0 0.0
    %327 = vmatpush1.msra.mxu0 0.0
    %328 = vmatprep.subr.mxu0 0.0
    %329 = vmatpush1.msra.mxu0 0.0
    %330 = vmatprep.subr.mxu0 0.0
    %331 = vmatpush1.msra.mxu0 0.0
    %332 = vmatprep.subr.mxu0 0.0
    %333 = vmatpush1.msra.mxu0 0.0
    %334 = vmatprep.subr.mxu0 0.0
    %335 = vmatpush1.msra.mxu0 0.0
    %336 = vmatprep.subr.mxu0 0.0
    %337 = vmatpush1.msra.mxu0 0.0
    %338 = vmatprep.subr.mxu0 0.0
    %339 = vmatpush1.msra.mxu0 0.0
    %340 = vmatprep.subr.mxu0 0.0
    %341 = vmatpush1.msra.mxu0 0.0
    %342 = vmatprep.subr.mxu0 0.0
    %343 = vmatpush1.msra.mxu0 0.0
    %344 = vmatprep.subr.mxu0 0.0
    %345 = vmatpush1.msra.mxu0 0.0
    %346 = vmatprep.mubr.f32.mxu0 0.0
    %347 = vmatmul.mubr.f32.gmra.mrb[0].mxu0 %v280
    %v348 = vpop.f32.mrb[0].mxu0
    %v349 = vadd.f32 %v277, %v348
    %v350 = vpop.f32.mrb[0].mxu0
    %351 = vdwg.mxu0
    %v352 = vxor.u32 %v349, 2147483648
    %v353 = vmul.f32 %v352, 1.442695
    %v354 = vpow.pop %v353
    %v355 = vadd.f32 %v354, 1.0
    %v356 = vrcp.pop %v355
    %v357 = vmul.f32 1.0, %v356
    %v358 = vtanh.pop %v349
    %v359 = vmul.f32 %v357, 0.0
    %361 = vrot.lane.b32.xlu0 %v358, 32
    %v362 = vpop.permute.xlu0 %361
    %v364 = vmul.f32 %v357, %v362
    %366 = vrot.lane.b32.xlu0 %v364, 32
    %v367 = vpop.permute.xlu0 %366
    %v369 = vadd.f32 %v359, %v367
    %v370 = vtanh.pop %v369
    %372 = vrot.lane.b32.xlu0 %v370, 32
    %v373 = vpop.permute.xlu0 %372
    %v375 = vmul.f32 %v357, %v373
    %v376 = vld [vmem:[%s0 + $0x2] sm:$0x1]
    %v377 = vld [vmem:[%s0 + $0xa] sm:$0x1]
    %379 = vrot.lane.b32.xlu0 %v259, 64
    %v380 = vpop.permute.xlu0 %379
    %v384 = vrot.slane %v377, 7
    %v385 = vsel %vm36, %v384, %v376
    %386 = vrot.lane.b32.xlu0 %v385, 32
    %v387 = vpop.permute.xlu0 %386
    %v389 = vsel %vm41, %v380, %v387
    %v391 = vsel %vm47, %v389, 0
    %393 = vmatprep.subr.mxu0 0.0
    %394 = vmatpush1.msra.mxu0 %v27
    %395 = vmatprep.subr.mxu0 0.0
    %396 = vmatpush1.msra.mxu0 %v28
    %397 = vmatprep.subr.mxu0 0.0
    %398 = vmatpush1.msra.mxu0 %v29
    %399 = vmatprep.subr.mxu0 0.0
    %400 = vmatpush1.msra.mxu0 %v30
    %401 = vmatprep.subr.mxu0 0.0
    %402 = vmatpush1.msra.mxu0 %v53
    %403 = vmatprep.subr.mxu0 0.0
    %404 = vmatpush1.msra.mxu0 0.0
    %405 = vmatprep.subr.mxu0 0.0
    %406 = vmatpush1.msra.mxu0 0.0
    %407 = vmatprep.subr.mxu0 0.0
    %408 = vmatpush1.msra.mxu0 0.0
    %409 = vmatprep.subr.mxu0 0.0
    %410 = vmatpush1.msra.mxu0 0.0
    %411 = vmatprep.subr.mxu0 0.0
    %412 = vmatpush1.msra.mxu0 0.0
    %413 = vmatprep.subr.mxu0 0.0
    %414 = vmatpush1.msra.mxu0 0.0
    %415 = vmatprep.subr.mxu0 0.0
    %416 = vmatpush1.msra.mxu0 0.0
    %417 = vmatprep.subr.mxu0 0.0
    %418 = vmatpush1.msra.mxu0 0.0
    %419 = vmatprep.subr.mxu0 0.0
    %420 = vmatpush1.msra.mxu0 0.0
    %421 = vmatprep.subr.mxu0 0.0
    %422 = vmatpush1.msra.mxu0 0.0
    %423 = vmatprep.subr.mxu0 0.0
    %424 = vmatpush1.msra.mxu0 0.0
    %425 = vmatprep.subr.mxu0 0.0
    %426 = vmatpush1.msra.mxu0 0.0
    %427 = vmatprep.subr.mxu0 0.0
    %428 = vmatpush1.msra.mxu0 0.0
    %429 = vmatprep.subr.mxu0 0.0
    %430 = vmatpush1.msra.mxu0 0.0
    %431 = vmatprep.subr.mxu0 0.0
    %432 = vmatpush1.msra.mxu0 0.0
    %433 = vmatprep.subr.mxu0 0.0
    %434 = vmatpush1.msra.mxu0 0.0
    %435 = vmatprep.subr.mxu0 0.0
    %436 = vmatpush1.msra.mxu0 0.0
    %437 = vmatprep.subr.mxu0 0.0
    %438 = vmatpush1.msra.mxu0 0.0
    %439 = vmatprep.subr.mxu0 0.0
    %440 = vmatpush1.msra.mxu0 0.0
    %441 = vmatprep.subr.mxu0 0.0
    %442 = vmatpush1.msra.mxu0 0.0
    %443 = vmatprep.subr.mxu0 0.0
    %444 = vmatpush1.msra.mxu0 0.0
    %445 = vmatprep.subr.mxu0 0.0
    %446 = vmatpush1.msra.mxu0 0.0
    %447 = vmatprep.subr.mxu0 0.0
    %448 = vmatpush1.msra.mxu0 0.0
    %449 = vmatprep.subr.mxu0 0.0
    %450 = vmatpush1.msra.mxu0 0.0
    %451 = vmatprep.subr.mxu0 0.0
    %452 = vmatpush1.msra.mxu0 0.0
    %453 = vmatprep.subr.mxu0 0.0
    %454 = vmatpush1.msra.mxu0 0.0
    %455 = vmatprep.subr.mxu0 0.0
    %456 = vmatpush1.msra.mxu0 0.0
    %457 = vmatprep.mubr.f32.mxu0 0.0
    %458 = vmatmul.mubr.f32.gmra.mrb[0].mxu0 %v391
    %v459 = vpop.f32.mrb[0].mxu0
    %v460 = vadd.f32 %v46, %v459
    %v461 = vpop.f32.mrb[0].mxu0
    %462 = vdwg.mxu0
    %v463 = vxor.u32 %v460, 2147483648
    %v464 = vmul.f32 %v463, 1.442695
    %v465 = vpow.pop %v464
    %v466 = vadd.f32 %v465, 1.0
    %v467 = vrcp.pop %v466
    %v468 = vmul.f32 1.0, %v467
    %v469 = vtanh.pop %v460
    %v470 = vmul.f32 %v468, %v253
    %472 = vrot.lane.b32.xlu0 %v469, 32
    %v473 = vpop.permute.xlu0 %472
    %v475 = vmul.f32 %v468, %v473
    %477 = vrot.lane.b32.xlu0 %v475, 32
    %v478 = vpop.permute.xlu0 %477
    %v480 = vadd.f32 %v470, %v478
    %v481 = vtanh.pop %v480
    %483 = vrot.lane.b32.xlu0 %v481, 32
    %v484 = vpop.permute.xlu0 %483
    %v486 = vmul.f32 %v468, %v484
    %488 = vrot.lane.b32.xlu0 %v375, 64
    %v489 = vpop.permute.xlu0 %488
    %491 = vrot.lane.b32.xlu0 %v259, 96
    %v492 = vpop.permute.xlu0 %491
    %v494 = vsel %vm41, %v489, %v492
    %v496 = vsel %vm278, %v494, 0
    %498 = vmatprep.subr.mxu0 0.0
    %499 = vmatpush1.msra.mxu0 %v261
    %500 = vmatprep.subr.mxu0 0.0
    %501 = vmatpush1.msra.mxu0 %v262
    %502 = vmatprep.subr.mxu0 0.0
    %503 = vmatpush1.msra.mxu0 %v263
    %504 = vmatprep.subr.mxu0 0.0
    %505 = vmatpush1.msra.mxu0 %v264
    %506 = vmatprep.subr.mxu0 0.0
    %507 = vmatpush1.msra.mxu0 %v265
    %508 = vmatprep.subr.mxu0 0.0
    %509 = vmatpush1.msra.mxu0 %v266
    %510 = vmatprep.subr.mxu0 0.0
    %511 = vmatpush1.msra.mxu0 %v267
    %512 = vmatprep.subr.mxu0 0.0
    %513 = vmatpush1.msra.mxu0 %v268
    %514 = vmatprep.subr.mxu0 0.0
    %515 = vmatpush1.msra.mxu0 0.0
    %516 = vmatprep.subr.mxu0 0.0
    %517 = vmatpush1.msra.mxu0 0.0
    %518 = vmatprep.subr.mxu0 0.0
    %519 = vmatpush1.msra.mxu0 0.0
    %520 = vmatprep.subr.mxu0 0.0
    %521 = vmatpush1.msra.mxu0 0.0
    %522 = vmatprep.subr.mxu0 0.0
    %523 = vmatpush1.msra.mxu0 0.0
    %524 = vmatprep.subr.mxu0 0.0
    %525 = vmatpush1.msra.mxu0 0.0
    %526 = vmatprep.subr.mxu0 0.0
    %527 = vmatpush1.msra.mxu0 0.0
    %528 = vmatprep.subr.mxu0 0.0
    %529 = vmatpush1.msra.mxu0 0.0
    %530 = vmatprep.subr.mxu0 0.0
    %531 = vmatpush1.msra.mxu0 0.0
    %532 = vmatprep.subr.mxu0 0.0
    %533 = vmatpush1.msra.mxu0 0.0
    %534 = vmatprep.subr.mxu0 0.0
    %535 = vmatpush1.msra.mxu0 0.0
    %536 = vmatprep.subr.mxu0 0.0
    %537 = vmatpush1.msra.mxu0 0.0
    %538 = vmatprep.subr.mxu0 0.0
    %539 = vmatpush1.msra.mxu0 0.0
    %540 = vmatprep.subr.mxu0 0.0
    %541 = vmatpush1.msra.mxu0 0.0
    %542 = vmatprep.subr.mxu0 0.0
    %543 = vmatpush1.msra.mxu0 0.0
    %544 = vmatprep.subr.mxu0 0.0
    %545 = vmatpush1.msra.mxu0 0.0
    %546 = vmatprep.subr.mxu0 0.0
    %547 = vmatpush1.msra.mxu0 0.0
    %548 = vmatprep.subr.mxu0 0.0
    %549 = vmatpush1.msra.mxu0 0.0
    %550 = vmatprep.subr.mxu0 0.0
    %551 = vmatpush1.msra.mxu0 0.0
    %552 = vmatprep.subr.mxu0 0.0
    %553 = vmatpush1.msra.mxu0 0.0
    %554 = vmatprep.subr.mxu0 0.0
    %555 = vmatpush1.msra.mxu0 0.0
    %556 = vmatprep.subr.mxu0 0.0
    %557 = vmatpush1.msra.mxu0 0.0
    %558 = vmatprep.subr.mxu0 0.0
    %559 = vmatpush1.msra.mxu0 0.0
    %560 = vmatprep.subr.mxu0 0.0
    %561 = vmatpush1.msra.mxu0 0.0
    %562 = vmatprep.mubr.f32.mxu0 0.0
    %563 = vmatmul.mubr.f32.gmra.mrb[0].mxu0 %v496
    %v564 = vpop.f32.mrb[0].mxu0
    %v565 = vadd.f32 %v277, %v564
    %v566 = vpop.f32.mrb[0].mxu0
    %567 = vdwg.mxu0
    %v568 = vxor.u32 %v565, 2147483648
    %v569 = vmul.f32 %v568, 1.442695
    %v570 = vpow.pop %v569
    %v571 = vadd.f32 %v570, 1.0
    %v572 = vrcp.pop %v571
    %v573 = vmul.f32 1.0, %v572
    %v574 = vtanh.pop %v565
    %v575 = vmul.f32 %v573, %v369
    %577 = vrot.lane.b32.xlu0 %v574, 32
    %v578 = vpop.permute.xlu0 %577
    %v580 = vmul.f32 %v573, %v578
    %582 = vrot.lane.b32.xlu0 %v580, 32
    %v583 = vpop.permute.xlu0 %582
    %v585 = vadd.f32 %v575, %v583
    %v586 = vtanh.pop %v585
    %588 = vrot.lane.b32.xlu0 %v586, 32
    %v589 = vpop.permute.xlu0 %588
    %v591 = vmul.f32 %v573, %v589
    %v592 = vld [vmem:[%s0 + $0x3] sm:$0x1]
    %v593 = vld [vmem:[%s0 + $0xb] sm:$0x1]
    %595 = vrot.lane.b32.xlu0 %v486, 64
    %v596 = vpop.permute.xlu0 %595
    %v600 = vrot.slane %v593, 7
    %v601 = vsel %vm36, %v600, %v592
    %602 = vrot.lane.b32.xlu0 %v601, 32
    %v603 = vpop.permute.xlu0 %602
    %v605 = vsel %vm41, %v596, %v603
    %v607 = vsel %vm47, %v605, 0
    %609 = vmatprep.subr.mxu0 0.0
    %610 = vmatpush1.msra.mxu0 %v27
    %611 = vmatprep.subr.mxu0 0.0
    %612 = vmatpush1.msra.mxu0 %v28
    %613 = vmatprep.subr.mxu0 0.0
    %614 = vmatpush1.msra.mxu0 %v29
    %615 = vmatprep.subr.mxu0 0.0
    %616 = vmatpush1.msra.mxu0 %v30
    %617 = vmatprep.subr.mxu0 0.0
    %618 = vmatpush1.msra.mxu0 %v53
    %619 = vmatprep.subr.mxu0 0.0
    %620 = vmatpush1.msra.mxu0 0.0
    %621 = vmatprep.subr.mxu0 0.0
    %622 = vmatpush1.msra.mxu0 0.0
    %623 = vmatprep.subr.mxu0 0.0
    %624 = vmatpush1.msra.mxu0 0.0
    %625 = vmatprep.subr.mxu0 0.0
    %626 = vmatpush1.msra.mxu0 0.0
    %627 = vmatprep.subr.mxu0 0.0
    %628 = vmatpush1.msra.mxu0 0.0
    %629 = vmatprep.subr.mxu0 0.0
    %630 = vmatpush1.msra.mxu0 0.0
    %631 = vmatprep.subr.mxu0 0.0
    %632 = vmatpush1.msra.mxu0 0.0
    %633 = vmatprep.subr.mxu0 0.0
    %634 = vmatpush1.msra.mxu0 0.0
    %635 = vmatprep.subr.mxu0 0.0
    %636 = vmatpush1.msra.mxu0 0.0
    %637 = vmatprep.subr.mxu0 0.0
    %638 = vmatpush1.msra.mxu0 0.0
    %639 = vmatprep.subr.mxu0 0.0
    %640 = vmatpush1.msra.mxu0 0.0
    %641 = vmatprep.subr.mxu0 0.0
    %642 = vmatpush1.msra.mxu0 0.0
    %643 = vmatprep.subr.mxu0 0.0
    %644 = vmatpush1.msra.mxu0 0.0
    %645 = vmatprep.subr.mxu0 0.0
    %646 = vmatpush1.msra.mxu0 0.0
    %647 = vmatprep.subr.mxu0 0.0
    %648 = vmatpush1.msra.mxu0 0.0
    %649 = vmatprep.subr.mxu0 0.0
    %650 = vmatpush1.msra.mxu0 0.0
    %651 = vmatprep.subr.mxu0 0.0
    %652 = vmatpush1.msra.mxu0 0.0
    %653 = vmatprep.subr.mxu0 0.0
    %654 = vmatpush1.msra.mxu0 0.0
    %655 = vmatprep.subr.mxu0 0.0
    %656 = vmatpush1.msra.mxu0 0.0
    %657 = vmatprep.subr.mxu0 0.0
    %658 = vmatpush1.msra.mxu0 0.0
    %659 = vmatprep.subr.mxu0 0.0
    %660 = vmatpush1.msra.mxu0 0.0
    %661 = vmatprep.subr.mxu0 0.0
    %662 = vmatpush1.msra.mxu0 0.0
    %663 = vmatprep.subr.mxu0 0.0
    %664 = vmatpush1.msra.mxu0 0.0
    %665 = vmatprep.subr.mxu0 0.0
    %666 = vmatpush1.msra.mxu0 0.0
    %667 = vmatprep.subr.mxu0 0.0
    %668 = vmatpush1.msra.mxu0 0.0
    %669 = vmatprep.subr.mxu0 0.0
    %670 = vmatpush1.msra.mxu0 0.0
    %671 = vmatprep.subr.mxu0 0.0
    %672 = vmatpush1.msra.mxu0 0.0
    %673 = vmatprep.mubr.f32.mxu0 0.0
    %674 = vmatmul.mubr.f32.gmra.mrb[0].mxu0 %v607
    %v675 = vpop.f32.mrb[0].mxu0
    %v676 = vadd.f32 %v46, %v675
    %v677 = vpop.f32.mrb[0].mxu0
    %678 = vdwg.mxu0
    %v679 = vxor.u32 %v676, 2147483648
    %v680 = vmul.f32 %v679, 1.442695
    %v681 = vpow.pop %v680
    %v682 = vadd.f32 %v681, 1.0
    %v683 = vrcp.pop %v682
    %v684 = vmul.f32 1.0, %v683
    %v685 = vtanh.pop %v676
    %v686 = vmul.f32 %v684, %v480
    %688 = vrot.lane.b32.xlu0 %v685, 32
    %v689 = vpop.permute.xlu0 %688
    %v691 = vmul.f32 %v684, %v689
    %693 = vrot.lane.b32.xlu0 %v691, 32
    %v694 = vpop.permute.xlu0 %693
    %v696 = vadd.f32 %v686, %v694
    %v697 = vtanh.pop %v696
    %699 = vrot.lane.b32.xlu0 %v697, 32
    %v700 = vpop.permute.xlu0 %699
    %v702 = vmul.f32 %v684, %v700
    %704 = vrot.lane.b32.xlu0 %v591, 64
    %v705 = vpop.permute.xlu0 %704
    %707 = vrot.lane.b32.xlu0 %v486, 96
    %v708 = vpop.permute.xlu0 %707
    %v710 = vsel %vm41, %v705, %v708
    %v712 = vsel %vm278, %v710, 0
    %714 = vmatprep.subr.mxu0 0.0
    %715 = vmatpush1.msra.mxu0 %v261
    %716 = vmatprep.subr.mxu0 0.0
    %717 = vmatpush1.msra.mxu0 %v262
    %718 = vmatprep.subr.mxu0 0.0
    %719 = vmatpush1.msra.mxu0 %v263
    %720 = vmatprep.subr.mxu0 0.0
    %721 = vmatpush1.msra.mxu0 %v264
    %722 = vmatprep.subr.mxu0 0.0
    %723 = vmatpush1.msra.mxu0 %v265
    %724 = vmatprep.subr.mxu0 0.0
    %725 = vmatpush1.msra.mxu0 %v266
    %726 = vmatprep.subr.mxu0 0.0
    %727 = vmatpush1.msra.mxu0 %v267
    %728 = vmatprep.subr.mxu0 0.0
    %729 = vmatpush1.msra.mxu0 %v268
    %730 = vmatprep.subr.mxu0 0.0
    %731 = vmatpush1.msra.mxu0 0.0
    %732 = vmatprep.subr.mxu0 0.0
    %733 = vmatpush1.msra.mxu0 0.0
    %734 = vmatprep.subr.mxu0 0.0
    %735 = vmatpush1.msra.mxu0 0.0
    %736 = vmatprep.subr.mxu0 0.0
    %737 = vmatpush1.msra.mxu0 0.0
    %738 = vmatprep.subr.mxu0 0.0
    %739 = vmatpush1.msra.mxu0 0.0
    %740 = vmatprep.subr.mxu0 0.0
    %741 = vmatpush1.msra.mxu0 0.0
    %742 = vmatprep.subr.mxu0 0.0
    %743 = vmatpush1.msra.mxu0 0.0
    %744 = vmatprep.subr.mxu0 0.0
    %745 = vmatpush1.msra.mxu0 0.0
    %746 = vmatprep.subr.mxu0 0.0
    %747 = vmatpush1.msra.mxu0 0.0
    %748 = vmatprep.subr.mxu0 0.0
    %749 = vmatpush1.msra.mxu0 0.0
    %750 = vmatprep.subr.mxu0 0.0
    %751 = vmatpush1.msra.mxu0 0.0
    %752 = vmatprep.subr.mxu0 0.0
    %753 = vmatpush1.msra.mxu0 0.0
    %754 = vmatprep.subr.mxu0 0.0
    %755 = vmatpush1.msra.mxu0 0.0
    %756 = vmatprep.subr.mxu0 0.0
    %757 = vmatpush1.msra.mxu0 0.0
    %758 = vmatprep.subr.mxu0 0.0
    %759 = vmatpush1.msra.mxu0 0.0
    %760 = vmatprep.subr.mxu0 0.0
    %761 = vmatpush1.msra.mxu0 0.0
    %762 = vmatprep.subr.mxu0 0.0
    %763 = vmatpush1.msra.mxu0 0.0
    %764 = vmatprep.subr.mxu0 0.0
    %765 = vmatpush1.msra.mxu0 0.0
    %766 = vmatprep.subr.mxu0 0.0
    %767 = vmatpush1.msra.mxu0 0.0
    %768 = vmatprep.subr.mxu0 0.0
    %769 = vmatpush1.msra.mxu0 0.0
    %770 = vmatprep.subr.mxu0 0.0
    %771 = vmatpush1.msra.mxu0 0.0
    %772 = vmatprep.subr.mxu0 0.0
    %773 = vmatpush1.msra.mxu0 0.0
    %774 = vmatprep.subr.mxu0 0.0
    %775 = vmatpush1.msra.mxu0 0.0
    %776 = vmatprep.subr.mxu0 0.0
    %777 = vmatpush1.msra.mxu0 0.0
    %778 = vmatprep.mubr.f32.mxu0 0.0
    %779 = vmatmul.mubr.f32.gmra.mrb[0].mxu0 %v712
    %v780 = vpop.f32.mrb[0].mxu0
    %v781 = vadd.f32 %v277, %v780
    %v782 = vpop.f32.mrb[0].mxu0
    %783 = vdwg.mxu0
    %v784 = vxor.u32 %v781, 2147483648
    %v785 = vmul.f32 %v784, 1.442695
    %v786 = vpow.pop %v785
    %v787 = vadd.f32 %v786, 1.0
    %v788 = vrcp.pop %v787
    %v789 = vmul.f32 1.0, %v788
    %v790 = vtanh.pop %v781
    %v791 = vmul.f32 %v789, %v585
    %793 = vrot.lane.b32.xlu0 %v790, 32
    %v794 = vpop.permute.xlu0 %793
    %v796 = vmul.f32 %v789, %v794
    %798 = vrot.lane.b32.xlu0 %v796, 32
    %v799 = vpop.permute.xlu0 %798
    %v801 = vadd.f32 %v791, %v799
    %v802 = vtanh.pop %v801
    %804 = vrot.lane.b32.xlu0 %v802, 32
    %v805 = vpop.permute.xlu0 %804
    %v807 = vmul.f32 %v789, %v805
    %v808 = vld [vmem:[%s0 + $0x4] sm:$0x1]
    %v809 = vld [vmem:[%s0 + $0xc] sm:$0x1]
    %811 = vrot.lane.b32.xlu0 %v702, 64
    %v812 = vpop.permute.xlu0 %811
    %v816 = vrot.slane %v809, 7
    %v817 = vsel %vm36, %v816, %v808
    %818 = vrot.lane.b32.xlu0 %v817, 32
    %v819 = vpop.permute.xlu0 %818
    %v821 = vsel %vm41, %v812, %v819
    %v823 = vsel %vm47, %v821, 0
    %825 = vmatprep.subr.mxu0 0.0
    %826 = vmatpush1.msra.mxu0 %v27
    %827 = vmatprep.subr.mxu0 0.0
    %828 = vmatpush1.msra.mxu0 %v28
    %829 = vmatprep.subr.mxu0 0.0
    %830 = vmatpush1.msra.mxu0 %v29
    %831 = vmatprep.subr.mxu0 0.0
    %832 = vmatpush1.msra.mxu0 %v30
    %833 = vmatprep.subr.mxu0 0.0
    %834 = vmatpush1.msra.mxu0 %v53
    %835 = vmatprep.subr.mxu0 0.0
    %836 = vmatpush1.msra.mxu0 0.0
    %837 = vmatprep.subr.mxu0 0.0
    %838 = vmatpush1.msra.mxu0 0.0
    %839 = vmatprep.subr.mxu0 0.0
    %840 = vmatpush1.msra.mxu0 0.0
    %841 = vmatprep.subr.mxu0 0.0
    %842 = vmatpush1.msra.mxu0 0.0
    %843 = vmatprep.subr.mxu0 0.0
    %844 = vmatpush1.msra.mxu0 0.0
    %845 = vmatprep.subr.mxu0 0.0
    %846 = vmatpush1.msra.mxu0 0.0
    %847 = vmatprep.subr.mxu0 0.0
    %848 = vmatpush1.msra.mxu0 0.0
    %849 = vmatprep.subr.mxu0 0.0
    %850 = vmatpush1.msra.mxu0 0.0
    %851 = vmatprep.subr.mxu0 0.0
    %852 = vmatpush1.msra.mxu0 0.0
    %853 = vmatprep.subr.mxu0 0.0
    %854 = vmatpush1.msra.mxu0 0.0
    %855 = vmatprep.subr.mxu0 0.0
    %856 = vmatpush1.msra.mxu0 0.0
    %857 = vmatprep.subr.mxu0 0.0
    %858 = vmatpush1.msra.mxu0 0.0
    %859 = vmatprep.subr.mxu0 0.0
    %860 = vmatpush1.msra.mxu0 0.0
    %861 = vmatprep.subr.mxu0 0.0
    %862 = vmatpush1.msra.mxu0 0.0
    %863 = vmatprep.subr.mxu0 0.0
    %864 = vmatpush1.msra.mxu0 0.0
    %865 = vmatprep.subr.mxu0 0.0
    %866 = vmatpush1.msra.mxu0 0.0
    %867 = vmatprep.subr.mxu0 0.0
    %868 = vmatpush1.msra.mxu0 0.0
    %869 = vmatprep.subr.mxu0 0.0
    %870 = vmatpush1.msra.mxu0 0.0
    %871 = vmatprep.subr.mxu0 0.0
    %872 = vmatpush1.msra.mxu0 0.0
    %873 = vmatprep.subr.mxu0 0.0
    %874 = vmatpush1.msra.mxu0 0.0
    %875 = vmatprep.subr.mxu0 0.0
    %876 = vmatpush1.msra.mxu0 0.0
    %877 = vmatprep.subr.mxu0 0.0
    %878 = vmatpush1.msra.mxu0 0.0
    %879 = vmatprep.subr.mxu0 0.0
    %880 = vmatpush1.msra.mxu0 0.0
    %881 = vmatprep.subr.mxu0 0.0
    %882 = vmatpush1.msra.mxu0 0.0
    %883 = vmatprep.subr.mxu0 0.0
    %884 = vmatpush1.msra.mxu0 0.0
    %885 = vmatprep.subr.mxu0 0.0
    %886 = vmatpush1.msra.mxu0 0.0
    %887 = vmatprep.subr.mxu0 0.0
    %888 = vmatpush1.msra.mxu0 0.0
    %889 = vmatprep.mubr.f32.mxu0 0.0
    %890 = vmatmul.mubr.f32.gmra.mrb[0].mxu0 %v823
    %v891 = vpop.f32.mrb[0].mxu0
    %v892 = vadd.f32 %v46, %v891
    %v893 = vpop.f32.mrb[0].mxu0
    %894 = vdwg.mxu0
    %v895 = vxor.u32 %v892, 2147483648
    %v896 = vmul.f32 %v895, 1.442695
    %v897 = vpow.pop %v896
    %v898 = vadd.f32 %v897, 1.0
    %v899 = vrcp.pop %v898
    %v900 = vmul.f32 1.0, %v899
    %v901 = vtanh.pop %v892
    %v902 = vmul.f32 %v900, %v696
    %904 = vrot.lane.b32.xlu0 %v901, 32
    %v905 = vpop.permute.xlu0 %904
    %v907 = vmul.f32 %v900, %v905
    %909 = vrot.lane.b32.xlu0 %v907, 32
    %v910 = vpop.permute.xlu0 %909
    %v912 = vadd.f32 %v902, %v910
    %v913 = vtanh.pop %v912
    %915 = vrot.lane.b32.xlu0 %v913, 32
    %v916 = vpop.permute.xlu0 %915
    %v918 = vmul.f32 %v900, %v916
    %920 = vrot.lane.b32.xlu0 %v807, 64
    %v921 = vpop.permute.xlu0 %920
    %923 = vrot.lane.b32.xlu0 %v702, 96
    %v924 = vpop.permute.xlu0 %923
    %v926 = vsel %vm41, %v921, %v924
    %v928 = vsel %vm278, %v926, 0
    %930 = vmatprep.subr.mxu0 0.0
    %931 = vmatpush1.msra.mxu0 %v261
    %932 = vmatprep.subr.mxu0 0.0
    %933 = vmatpush1.msra.mxu0 %v262
    %934 = vmatprep.subr.mxu0 0.0
    %935 = vmatpush1.msra.mxu0 %v263
    %936 = vmatprep.subr.mxu0 0.0
    %937 = vmatpush1.msra.mxu0 %v264
    %938 = vmatprep.subr.mxu0 0.0
    %939 = vmatpush1.msra.mxu0 %v265
    %940 = vmatprep.subr.mxu0 0.0
    %941 = vmatpush1.msra.mxu0 %v266
    %942 = vmatprep.subr.mxu0 0.0
    %943 = vmatpush1.msra.mxu0 %v267
    %944 = vmatprep.subr.mxu0 0.0
    %945 = vmatpush1.msra.mxu0 %v268
    %946 = vmatprep.subr.mxu0 0.0
    %947 = vmatpush1.msra.mxu0 0.0
    %948 = vmatprep.subr.mxu0 0.0
    %949 = vmatpush1.msra.mxu0 0.0
    %950 = vmatprep.subr.mxu0 0.0
    %951 = vmatpush1.msra.mxu0 0.0
    %952 = vmatprep.subr.mxu0 0.0
    %953 = vmatpush1.msra.mxu0 0.0
    %954 = vmatprep.subr.mxu0 0.0
    %955 = vmatpush1.msra.mxu0 0.0
    %956 = vmatprep.subr.mxu0 0.0
    %957 = vmatpush1.msra.mxu0 0.0
    %958 = vmatprep.subr.mxu0 0.0
    %959 = vmatpush1.msra.mxu0 0.0
    %960 = vmatprep.subr.mxu0 0.0
    %961 = vmatpush1.msra.mxu0 0.0
    %962 = vmatprep.subr.mxu0 0.0
    %963 = vmatpush1.msra.mxu0 0.0
    %964 = vmatprep.subr.mxu0 0.0
    %965 = vmatpush1.msra.mxu0 0.0
    %966 = vmatprep.subr.mxu0 0.0
    %967 = vmatpush1.msra.mxu0 0.0
    %968 = vmatprep.subr.mxu0 0.0
    %969 = vmatpush1.msra.mxu0 0.0
    %970 = vmatprep.subr.mxu0 0.0
    %971 = vmatpush1.msra.mxu0 0.0
    %972 = vmatprep.subr.mxu0 0.0
    %973 = vmatpush1.msra.mxu0 0.0
    %974 = vmatprep.subr.mxu0 0.0
    %975 = vmatpush1.msra.mxu0 0.0
    %976 = vmatprep.subr.mxu0 0.0
    %977 = vmatpush1.msra.mxu0 0.0
    %978 = vmatprep.subr.mxu0 0.0
    %979 = vmatpush1.msra.mxu0 0.0
    %980 = vmatprep.subr.mxu0 0.0
    %981 = vmatpush1.msra.mxu0 0.0
    %982 = vmatprep.subr.mxu0 0.0
    %983 = vmatpush1.msra.mxu0 0.0
    %984 = vmatprep.subr.mxu0 0.0
    %985 = vmatpush1.msra.mxu0 0.0
    %986 = vmatprep.subr.mxu0 0.0
    %987 = vmatpush1.msra.mxu0 0.0
    %988 = vmatprep.subr.mxu0 0.0
    %989 = vmatpush1.msra.mxu0 0.0
    %990 = vmatprep.subr.mxu0 0.0
    %991 = vmatpush1.msra.mxu0 0.0
    %992 = vmatprep.subr.mxu0 0.0
    %993 = vmatpush1.msra.mxu0 0.0
    %994 = vmatprep.mubr.f32.mxu0 0.0
    %995 = vmatmul.mubr.f32.gmra.mrb[0].mxu0 %v928
    %v996 = vpop.f32.mrb[0].mxu0
    %v997 = vadd.f32 %v277, %v996
    %v998 = vpop.f32.mrb[0].mxu0
    %999 = vdwg.mxu0
    %v1000 = vxor.u32 %v997, 2147483648
    %v1001 = vmul.f32 %v1000, 1.442695
    %v1002 = vpow.pop %v1001
    %v1003 = vadd.f32 %v1002, 1.0
    %v1004 = vrcp.pop %v1003
    %v1005 = vmul.f32 1.0, %v1004
    %v1006 = vtanh.pop %v997
    %v1007 = vmul.f32 %v1005, %v801
    %1009 = vrot.lane.b32.xlu0 %v1006, 32
    %v1010 = vpop.permute.xlu0 %1009
    %v1012 = vmul.f32 %v1005, %v1010
    %1014 = vrot.lane.b32.xlu0 %v1012, 32
    %v1015 = vpop.permute.xlu0 %1014
    %v1017 = vadd.f32 %v1007, %v1015
    %v1018 = vtanh.pop %v1017
    %1020 = vrot.lane.b32.xlu0 %v1018, 32
    %v1021 = vpop.permute.xlu0 %1020
    %v1023 = vmul.f32 %v1005, %v1021
    %v1024 = vld [vmem:[%s0 + $0x5] sm:$0x1]
    %v1025 = vld [vmem:[%s0 + $0xd] sm:$0x1]
    %1027 = vrot.lane.b32.xlu0 %v918, 64
    %v1028 = vpop.permute.xlu0 %1027
    %v1032 = vrot.slane %v1025, 7
    %v1033 = vsel %vm36, %v1032, %v1024
    %1034 = vrot.lane.b32.xlu0 %v1033, 32
    %v1035 = vpop.permute.xlu0 %1034
    %v1037 = vsel %vm41, %v1028, %v1035
    %v1039 = vsel %vm47, %v1037, 0
    %1041 = vmatprep.subr.mxu0 0.0
    %1042 = vmatpush1.msra.mxu0 %v27
    %1043 = vmatprep.subr.mxu0 0.0
    %1044 = vmatpush1.msra.mxu0 %v28
    %1045 = vmatprep.subr.mxu0 0.0
    %1046 = vmatpush1.msra.mxu0 %v29
    %1047 = vmatprep.subr.mxu0 0.0
    %1048 = vmatpush1.msra.mxu0 %v30
    %1049 = vmatprep.subr.mxu0 0.0
    %1050 = vmatpush1.msra.mxu0 %v53
    %1051 = vmatprep.subr.mxu0 0.0
    %1052 = vmatpush1.msra.mxu0 0.0
    %1053 = vmatprep.subr.mxu0 0.0
    %1054 = vmatpush1.msra.mxu0 0.0
    %1055 = vmatprep.subr.mxu0 0.0
    %1056 = vmatpush1.msra.mxu0 0.0
    %1057 = vmatprep.subr.mxu0 0.0
    %1058 = vmatpush1.msra.mxu0 0.0
    %1059 = vmatprep.subr.mxu0 0.0
    %1060 = vmatpush1.msra.mxu0 0.0
    %1061 = vmatprep.subr.mxu0 0.0
    %1062 = vmatpush1.msra.mxu0 0.0
    %1063 = vmatprep.subr.mxu0 0.0
    %1064 = vmatpush1.msra.mxu0 0.0
    %1065 = vmatprep.subr.mxu0 0.0
    %1066 = vmatpush1.msra.mxu0 0.0
    %1067 = vmatprep.subr.mxu0 0.0
    %1068 = vmatpush1.msra.mxu0 0.0
    %1069 = vmatprep.subr.mxu0 0.0
    %1070 = vmatpush1.msra.mxu0 0.0
    %1071 = vmatprep.subr.mxu0 0.0
    %1072 = vmatpush1.msra.mxu0 0.0
    %1073 = vmatprep.subr.mxu0 0.0
    %1074 = vmatpush1.msra.mxu0 0.0
    %1075 = vmatprep.subr.mxu0 0.0
    %1076 = vmatpush1.msra.mxu0 0.0
    %1077 = vmatprep.subr.mxu0 0.0
    %1078 = vmatpush1.msra.mxu0 0.0
    %1079 = vmatprep.subr.mxu0 0.0
    %1080 = vmatpush1.msra.mxu0 0.0
    %1081 = vmatprep.subr.mxu0 0.0
    %1082 = vmatpush1.msra.mxu0 0.0
    %1083 = vmatprep.subr.mxu0 0.0
    %1084 = vmatpush1.msra.mxu0 0.0
    %1085 = vmatprep.subr.mxu0 0.0
    %1086 = vmatpush1.msra.mxu0 0.0
    %1087 = vmatprep.subr.mxu0 0.0
    %1088 = vmatpush1.msra.mxu0 0.0
    %1089 = vmatprep.subr.mxu0 0.0
    %1090 = vmatpush1.msra.mxu0 0.0
    %1091 = vmatprep.subr.mxu0 0.0
    %1092 = vmatpush1.msra.mxu0 0.0
    %1093 = vmatprep.subr.mxu0 0.0
    %1094 = vmatpush1.msra.mxu0 0.0
    %1095 = vmatprep.subr.mxu0 0.0
    %1096 = vmatpush1.msra.mxu0 0.0
    %1097 = vmatprep.subr.mxu0 0.0
    %1098 = vmatpush1.msra.mxu0 0.0
    %1099 = vmatprep.subr.mxu0 0.0
    %1100 = vmatpush1.msra.mxu0 0.0
    %1101 = vmatprep.subr.mxu0 0.0
    %1102 = vmatpush1.msra.mxu0 0.0
    %1103 = vmatprep.subr.mxu0 0.0
    %1104 = vmatpush1.msra.mxu0 0.0
    %1105 = vmatprep.mubr.f32.mxu0 0.0
    %1106 = vmatmul.mubr.f32.gmra.mrb[0].mxu0 %v1039
    %v1107 = vpop.f32.mrb[0].mxu0
    %v1108 = vadd.f32 %v46, %v1107
    %v1109 = vpop.f32.mrb[0].mxu0
    %1110 = vdwg.mxu0
    %v1111 = vxor.u32 %v1108, 2147483648
    %v1112 = vmul.f32 %v1111, 1.442695
    %v1113 = vpow.pop %v1112
    %v1114 = vadd.f32 %v1113, 1.0
    %v1115 = vrcp.pop %v1114
    %v1116 = vmul.f32 1.0, %v1115
    %v1117 = vtanh.pop %v1108
    %v1118 = vmul.f32 %v1116, %v912
    %1120 = vrot.lane.b32.xlu0 %v1117, 32
    %v1121 = vpop.permute.xlu0 %1120
    %v1123 = vmul.f32 %v1116, %v1121
    %1125 = vrot.lane.b32.xlu0 %v1123, 32
    %v1126 = vpop.permute.xlu0 %1125
    %v1128 = vadd.f32 %v1118, %v1126
    %v1129 = vtanh.pop %v1128
    %1131 = vrot.lane.b32.xlu0 %v1129, 32
    %v1132 = vpop.permute.xlu0 %1131
    %v1134 = vmul.f32 %v1116, %v1132
    %1136 = vrot.lane.b32.xlu0 %v1023, 64
    %v1137 = vpop.permute.xlu0 %1136
    %1139 = vrot.lane.b32.xlu0 %v918, 96
    %v1140 = vpop.permute.xlu0 %1139
    %v1142 = vsel %vm41, %v1137, %v1140
    %v1144 = vsel %vm278, %v1142, 0
    %1146 = vmatprep.subr.mxu0 0.0
    %1147 = vmatpush1.msra.mxu0 %v261
    %1148 = vmatprep.subr.mxu0 0.0
    %1149 = vmatpush1.msra.mxu0 %v262
    %1150 = vmatprep.subr.mxu0 0.0
    %1151 = vmatpush1.msra.mxu0 %v263
    %1152 = vmatprep.subr.mxu0 0.0
    %1153 = vmatpush1.msra.mxu0 %v264
    %1154 = vmatprep.subr.mxu0 0.0
    %1155 = vmatpush1.msra.mxu0 %v265
    %1156 = vmatprep.subr.mxu0 0.0
    %1157 = vmatpush1.msra.mxu0 %v266
    %1158 = vmatprep.subr.mxu0 0.0
    %1159 = vmatpush1.msra.mxu0 %v267
    %1160 = vmatprep.subr.mxu0 0.0
    %1161 = vmatpush1.msra.mxu0 %v268
    %1162 = vmatprep.subr.mxu0 0.0
    %1163 = vmatpush1.msra.mxu0 0.0
    %1164 = vmatprep.subr.mxu0 0.0
    %1165 = vmatpush1.msra.mxu0 0.0
    %1166 = vmatprep.subr.mxu0 0.0
    %1167 = vmatpush1.msra.mxu0 0.0
    %1168 = vmatprep.subr.mxu0 0.0
    %1169 = vmatpush1.msra.mxu0 0.0
    %1170 = vmatprep.subr.mxu0 0.0
    %1171 = vmatpush1.msra.mxu0 0.0
    %1172 = vmatprep.subr.mxu0 0.0
    %1173 = vmatpush1.msra.mxu0 0.0
    %1174 = vmatprep.subr.mxu0 0.0
    %1175 = vmatpush1.msra.mxu0 0.0
    %1176 = vmatprep.subr.mxu0 0.0
    %1177 = vmatpush1.msra.mxu0 0.0
    %1178 = vmatprep.subr.mxu0 0.0
    %1179 = vmatpush1.msra.mxu0 0.0
    %1180 = vmatprep.subr.mxu0 0.0
    %1181 = vmatpush1.msra.mxu0 0.0
    %1182 = vmatprep.subr.mxu0 0.0
    %1183 = vmatpush1.msra.mxu0 0.0
    %1184 = vmatprep.subr.mxu0 0.0
    %1185 = vmatpush1.msra.mxu0 0.0
    %1186 = vmatprep.subr.mxu0 0.0
    %1187 = vmatpush1.msra.mxu0 0.0
    %1188 = vmatprep.subr.mxu0 0.0
    %1189 = vmatpush1.msra.mxu0 0.0
    %1190 = vmatprep.subr.mxu0 0.0
    %1191 = vmatpush1.msra.mxu0 0.0
    %1192 = vmatprep.subr.mxu0 0.0
    %1193 = vmatpush1.msra.mxu0 0.0
    %1194 = vmatprep.subr.mxu0 0.0
    %1195 = vmatpush1.msra.mxu0 0.0
    %1196 = vmatprep.subr.mxu0 0.0
    %1197 = vmatpush1.msra.mxu0 0.0
    %1198 = vmatprep.subr.mxu0 0.0
    %1199 = vmatpush1.msra.mxu0 0.0
    %1200 = vmatprep.subr.mxu0 0.0
    %1201 = vmatpush1.msra.mxu0 0.0
    %1202 = vmatprep.subr.mxu0 0.0
    %1203 = vmatpush1.msra.mxu0 0.0
    %1204 = vmatprep.subr.mxu0 0.0
    %1205 = vmatpush1.msra.mxu0 0.0
    %1206 = vmatprep.subr.mxu0 0.0
    %1207 = vmatpush1.msra.mxu0 0.0
    %1208 = vmatprep.subr.mxu0 0.0
    %1209 = vmatpush1.msra.mxu0 0.0
    %1210 = vmatprep.mubr.f32.mxu0 0.0
    %1211 = vmatmul.mubr.f32.gmra.mrb[0].mxu0 %v1144
    %v1212 = vpop.f32.mrb[0].mxu0
    %v1213 = vadd.f32 %v277, %v1212
    %v1214 = vpop.f32.mrb[0].mxu0
    %1215 = vdwg.mxu0
    %v1216 = vxor.u32 %v1213, 2147483648
    %v1217 = vmul.f32 %v1216, 1.442695
    %v1218 = vpow.pop %v1217
    %v1219 = vadd.f32 %v1218, 1.0
    %v1220 = vrcp.pop %v1219
    %v1221 = vmul.f32 1.0, %v1220
    %v1222 = vtanh.pop %v1213
    %v1223 = vmul.f32 %v1221, %v1017
    %1225 = vrot.lane.b32.xlu0 %v1222, 32
    %v1226 = vpop.permute.xlu0 %1225
    %v1228 = vmul.f32 %v1221, %v1226
    %1230 = vrot.lane.b32.xlu0 %v1228, 32
    %v1231 = vpop.permute.xlu0 %1230
    %v1233 = vadd.f32 %v1223, %v1231
    %v1234 = vtanh.pop %v1233
    %1236 = vrot.lane.b32.xlu0 %v1234, 32
    %v1237 = vpop.permute.xlu0 %1236
    %v1239 = vmul.f32 %v1221, %v1237
    %v1240 = vld [vmem:[%s0 + $0x6] sm:$0x1]
    %v1241 = vld [vmem:[%s0 + $0xe] sm:$0x1]
    %1243 = vrot.lane.b32.xlu0 %v1134, 64
    %v1244 = vpop.permute.xlu0 %1243
    %v1248 = vrot.slane %v1241, 7
    %v1249 = vsel %vm36, %v1248, %v1240
    %1250 = vrot.lane.b32.xlu0 %v1249, 32
    %v1251 = vpop.permute.xlu0 %1250
    %v1253 = vsel %vm41, %v1244, %v1251
    %v1255 = vsel %vm47, %v1253, 0
    %1257 = vmatprep.subr.mxu0 0.0
    %1258 = vmatpush1.msra.mxu0 %v27
    %1259 = vmatprep.subr.mxu0 0.0
    %1260 = vmatpush1.msra.mxu0 %v28
    %1261 = vmatprep.subr.mxu0 0.0
    %1262 = vmatpush1.msra.mxu0 %v29
    %1263 = vmatprep.subr.mxu0 0.0
    %1264 = vmatpush1.msra.mxu0 %v30
    %1265 = vmatprep.subr.mxu0 0.0
    %1266 = vmatpush1.msra.mxu0 %v53
    %1267 = vmatprep.subr.mxu0 0.0
    %1268 = vmatpush1.msra.mxu0 0.0
    %1269 = vmatprep.subr.mxu0 0.0
    %1270 = vmatpush1.msra.mxu0 0.0
    %1271 = vmatprep.subr.mxu0 0.0
    %1272 = vmatpush1.msra.mxu0 0.0
    %1273 = vmatprep.subr.mxu0 0.0
    %1274 = vmatpush1.msra.mxu0 0.0
    %1275 = vmatprep.subr.mxu0 0.0
    %1276 = vmatpush1.msra.mxu0 0.0
    %1277 = vmatprep.subr.mxu0 0.0
    %1278 = vmatpush1.msra.mxu0 0.0
    %1279 = vmatprep.subr.mxu0 0.0
    %1280 = vmatpush1.msra.mxu0 0.0
    %1281 = vmatprep.subr.mxu0 0.0
    %1282 = vmatpush1.msra.mxu0 0.0
    %1283 = vmatprep.subr.mxu0 0.0
    %1284 = vmatpush1.msra.mxu0 0.0
    %1285 = vmatprep.subr.mxu0 0.0
    %1286 = vmatpush1.msra.mxu0 0.0
    %1287 = vmatprep.subr.mxu0 0.0
    %1288 = vmatpush1.msra.mxu0 0.0
    %1289 = vmatprep.subr.mxu0 0.0
    %1290 = vmatpush1.msra.mxu0 0.0
    %1291 = vmatprep.subr.mxu0 0.0
    %1292 = vmatpush1.msra.mxu0 0.0
    %1293 = vmatprep.subr.mxu0 0.0
    %1294 = vmatpush1.msra.mxu0 0.0
    %1295 = vmatprep.subr.mxu0 0.0
    %1296 = vmatpush1.msra.mxu0 0.0
    %1297 = vmatprep.subr.mxu0 0.0
    %1298 = vmatpush1.msra.mxu0 0.0
    %1299 = vmatprep.subr.mxu0 0.0
    %1300 = vmatpush1.msra.mxu0 0.0
    %1301 = vmatprep.subr.mxu0 0.0
    %1302 = vmatpush1.msra.mxu0 0.0
    %1303 = vmatprep.subr.mxu0 0.0
    %1304 = vmatpush1.msra.mxu0 0.0
    %1305 = vmatprep.subr.mxu0 0.0
    %1306 = vmatpush1.msra.mxu0 0.0
    %1307 = vmatprep.subr.mxu0 0.0
    %1308 = vmatpush1.msra.mxu0 0.0
    %1309 = vmatprep.subr.mxu0 0.0
    %1310 = vmatpush1.msra.mxu0 0.0
    %1311 = vmatprep.subr.mxu0 0.0
    %1312 = vmatpush1.msra.mxu0 0.0
    %1313 = vmatprep.subr.mxu0 0.0
    %1314 = vmatpush1.msra.mxu0 0.0
    %1315 = vmatprep.subr.mxu0 0.0
    %1316 = vmatpush1.msra.mxu0 0.0
    %1317 = vmatprep.subr.mxu0 0.0
    %1318 = vmatpush1.msra.mxu0 0.0
    %1319 = vmatprep.subr.mxu0 0.0
    %1320 = vmatpush1.msra.mxu0 0.0
    %1321 = vmatprep.mubr.f32.mxu0 0.0
    %1322 = vmatmul.mubr.f32.gmra.mrb[0].mxu0 %v1255
    %v1323 = vpop.f32.mrb[0].mxu0
    %v1324 = vadd.f32 %v46, %v1323
    %v1325 = vpop.f32.mrb[0].mxu0
    %1326 = vdwg.mxu0
    %v1327 = vxor.u32 %v1324, 2147483648
    %v1328 = vmul.f32 %v1327, 1.442695
    %v1329 = vpow.pop %v1328
    %v1330 = vadd.f32 %v1329, 1.0
    %v1331 = vrcp.pop %v1330
    %v1332 = vmul.f32 1.0, %v1331
    %v1333 = vtanh.pop %v1324
    %v1334 = vmul.f32 %v1332, %v1128
    %1336 = vrot.lane.b32.xlu0 %v1333, 32
    %v1337 = vpop.permute.xlu0 %1336
    %v1339 = vmul.f32 %v1332, %v1337
    %1341 = vrot.lane.b32.xlu0 %v1339, 32
    %v1342 = vpop.permute.xlu0 %1341
    %v1344 = vadd.f32 %v1334, %v1342
    %v1345 = vtanh.pop %v1344
    %1347 = vrot.lane.b32.xlu0 %v1345, 32
    %v1348 = vpop.permute.xlu0 %1347
    %v1350 = vmul.f32 %v1332, %v1348
    %1352 = vrot.lane.b32.xlu0 %v1239, 64
    %v1353 = vpop.permute.xlu0 %1352
    %1355 = vrot.lane.b32.xlu0 %v1134, 96
    %v1356 = vpop.permute.xlu0 %1355
    %v1358 = vsel %vm41, %v1353, %v1356
    %v1360 = vsel %vm278, %v1358, 0
    %1362 = vmatprep.subr.mxu0 0.0
    %1363 = vmatpush1.msra.mxu0 %v261
    %1364 = vmatprep.subr.mxu0 0.0
    %1365 = vmatpush1.msra.mxu0 %v262
    %1366 = vmatprep.subr.mxu0 0.0
    %1367 = vmatpush1.msra.mxu0 %v263
    %1368 = vmatprep.subr.mxu0 0.0
    %1369 = vmatpush1.msra.mxu0 %v264
    %1370 = vmatprep.subr.mxu0 0.0
    %1371 = vmatpush1.msra.mxu0 %v265
    %1372 = vmatprep.subr.mxu0 0.0
    %1373 = vmatpush1.msra.mxu0 %v266
    %1374 = vmatprep.subr.mxu0 0.0
    %1375 = vmatpush1.msra.mxu0 %v267
    %1376 = vmatprep.subr.mxu0 0.0
    %1377 = vmatpush1.msra.mxu0 %v268
    %1378 = vmatprep.subr.mxu0 0.0
    %1379 = vmatpush1.msra.mxu0 0.0
    %1380 = vmatprep.subr.mxu0 0.0
    %1381 = vmatpush1.msra.mxu0 0.0
    %1382 = vmatprep.subr.mxu0 0.0
    %1383 = vmatpush1.msra.mxu0 0.0
    %1384 = vmatprep.subr.mxu0 0.0
    %1385 = vmatpush1.msra.mxu0 0.0
    %1386 = vmatprep.subr.mxu0 0.0
    %1387 = vmatpush1.msra.mxu0 0.0
    %1388 = vmatprep.subr.mxu0 0.0
    %1389 = vmatpush1.msra.mxu0 0.0
    %1390 = vmatprep.subr.mxu0 0.0
    %1391 = vmatpush1.msra.mxu0 0.0
    %1392 = vmatprep.subr.mxu0 0.0
    %1393 = vmatpush1.msra.mxu0 0.0
    %1394 = vmatprep.subr.mxu0 0.0
    %1395 = vmatpush1.msra.mxu0 0.0
    %1396 = vmatprep.subr.mxu0 0.0
    %1397 = vmatpush1.msra.mxu0 0.0
    %1398 = vmatprep.subr.mxu0 0.0
    %1399 = vmatpush1.msra.mxu0 0.0
    %1400 = vmatprep.subr.mxu0 0.0
    %1401 = vmatpush1.msra.mxu0 0.0
    %1402 = vmatprep.subr.mxu0 0.0
    %1403 = vmatpush1.msra.mxu0 0.0
    %1404 = vmatprep.subr.mxu0 0.0
    %1405 = vmatpush1.msra.mxu0 0.0
    %1406 = vmatprep.subr.mxu0 0.0
    %1407 = vmatpush1.msra.mxu0 0.0
    %1408 = vmatprep.subr.mxu0 0.0
    %1409 = vmatpush1.msra.mxu0 0.0
    %1410 = vmatprep.subr.mxu0 0.0
    %1411 = vmatpush1.msra.mxu0 0.0
    %1412 = vmatprep.subr.mxu0 0.0
    %1413 = vmatpush1.msra.mxu0 0.0
    %1414 = vmatprep.subr.mxu0 0.0
    %1415 = vmatpush1.msra.mxu0 0.0
    %1416 = vmatprep.subr.mxu0 0.0
    %1417 = vmatpush1.msra.mxu0 0.0
    %1418 = vmatprep.subr.mxu0 0.0
    %1419 = vmatpush1.msra.mxu0 0.0
    %1420 = vmatprep.subr.mxu0 0.0
    %1421 = vmatpush1.msra.mxu0 0.0
    %1422 = vmatprep.subr.mxu0 0.0
    %1423 = vmatpush1.msra.mxu0 0.0
    %1424 = vmatprep.subr.mxu0 0.0
    %1425 = vmatpush1.msra.mxu0 0.0
    %1426 = vmatprep.mubr.f32.mxu0 0.0
    %1427 = vmatmul.mubr.f32.gmra.mrb[0].mxu0 %v1360
    %v1428 = vpop.f32.mrb[0].mxu0
    %v1429 = vadd.f32 %v277, %v1428
    %v1430 = vpop.f32.mrb[0].mxu0
    %1431 = vdwg.mxu0
    %v1432 = vxor.u32 %v1429, 2147483648
    %v1433 = vmul.f32 %v1432, 1.442695
    %v1434 = vpow.pop %v1433
    %v1435 = vadd.f32 %v1434, 1.0
    %v1436 = vrcp.pop %v1435
    %v1437 = vmul.f32 1.0, %v1436
    %v1438 = vtanh.pop %v1429
    %v1439 = vmul.f32 %v1437, %v1233
    %1441 = vrot.lane.b32.xlu0 %v1438, 32
    %v1442 = vpop.permute.xlu0 %1441
    %v1444 = vmul.f32 %v1437, %v1442
    %1446 = vrot.lane.b32.xlu0 %v1444, 32
    %v1447 = vpop.permute.xlu0 %1446
    %v1449 = vadd.f32 %v1439, %v1447
    %v1450 = vtanh.pop %v1449
    %1452 = vrot.lane.b32.xlu0 %v1450, 32
    %v1453 = vpop.permute.xlu0 %1452
    %v1455 = vmul.f32 %v1437, %v1453
    %v1456 = vld [vmem:[%s0 + $0x7] sm:$0x1]
    %v1457 = vld [vmem:[%s0 + $0xf] sm:$0x1]
    %1459 = vrot.lane.b32.xlu0 %v1350, 64
    %v1460 = vpop.permute.xlu0 %1459
    %v1464 = vrot.slane %v1457, 7
    %v1465 = vsel %vm36, %v1464, %v1456
    %1466 = vrot.lane.b32.xlu0 %v1465, 32
    %v1467 = vpop.permute.xlu0 %1466
    %v1469 = vsel %vm41, %v1460, %v1467
    %v1471 = vsel %vm47, %v1469, 0
    %1473 = vmatprep.subr.mxu0 0.0
    %1474 = vmatpush1.msra.mxu0 %v27
    %1475 = vmatprep.subr.mxu0 0.0
    %1476 = vmatpush1.msra.mxu0 %v28
    %1477 = vmatprep.subr.mxu0 0.0
    %1478 = vmatpush1.msra.mxu0 %v29
    %1479 = vmatprep.subr.mxu0 0.0
    %1480 = vmatpush1.msra.mxu0 %v30
    %1481 = vmatprep.subr.mxu0 0.0
    %1482 = vmatpush1.msra.mxu0 %v53
    %1483 = vmatprep.subr.mxu0 0.0
    %1484 = vmatpush1.msra.mxu0 0.0
    %1485 = vmatprep.subr.mxu0 0.0
    %1486 = vmatpush1.msra.mxu0 0.0
    %1487 = vmatprep.subr.mxu0 0.0
    %1488 = vmatpush1.msra.mxu0 0.0
    %1489 = vmatprep.subr.mxu0 0.0
    %1490 = vmatpush1.msra.mxu0 0.0
    %1491 = vmatprep.subr.mxu0 0.0
    %1492 = vmatpush1.msra.mxu0 0.0
    %1493 = vmatprep.subr.mxu0 0.0
    %1494 = vmatpush1.msra.mxu0 0.0
    %1495 = vmatprep.subr.mxu0 0.0
    %1496 = vmatpush1.msra.mxu0 0.0
    %1497 = vmatprep.subr.mxu0 0.0
    %1498 = vmatpush1.msra.mxu0 0.0
    %1499 = vmatprep.subr.mxu0 0.0
    %1500 = vmatpush1.msra.mxu0 0.0
    %1501 = vmatprep.subr.mxu0 0.0
    %1502 = vmatpush1.msra.mxu0 0.0
    %1503 = vmatprep.subr.mxu0 0.0
    %1504 = vmatpush1.msra.mxu0 0.0
    %1505 = vmatprep.subr.mxu0 0.0
    %1506 = vmatpush1.msra.mxu0 0.0
    %1507 = vmatprep.subr.mxu0 0.0
    %1508 = vmatpush1.msra.mxu0 0.0
    %1509 = vmatprep.subr.mxu0 0.0
    %1510 = vmatpush1.msra.mxu0 0.0
    %1511 = vmatprep.subr.mxu0 0.0
    %1512 = vmatpush1.msra.mxu0 0.0
    %1513 = vmatprep.subr.mxu0 0.0
    %1514 = vmatpush1.msra.mxu0 0.0
    %1515 = vmatprep.subr.mxu0 0.0
    %1516 = vmatpush1.msra.mxu0 0.0
    %1517 = vmatprep.subr.mxu0 0.0
    %1518 = vmatpush1.msra.mxu0 0.0
    %1519 = vmatprep.subr.mxu0 0.0
    %1520 = vmatpush1.msra.mxu0 0.0
    %1521 = vmatprep.subr.mxu0 0.0
    %1522 = vmatpush1.msra.mxu0 0.0
    %1523 = vmatprep.subr.mxu0 0.0
    %1524 = vmatpush1.msra.mxu0 0.0
    %1525 = vmatprep.subr.mxu0 0.0
    %1526 = vmatpush1.msra.mxu0 0.0
    %1527 = vmatprep.subr.mxu0 0.0
    %1528 = vmatpush1.msra.mxu0 0.0
    %1529 = vmatprep.subr.mxu0 0.0
    %1530 = vmatpush1.msra.mxu0 0.0
    %1531 = vmatprep.subr.mxu0 0.0
    %1532 = vmatpush1.msra.mxu0 0.0
    %1533 = vmatprep.subr.mxu0 0.0
    %1534 = vmatpush1.msra.mxu0 0.0
    %1535 = vmatprep.subr.mxu0 0.0
    %1536 = vmatpush1.msra.mxu0 0.0
    %1537 = vmatprep.mubr.f32.mxu0 0.0
    %1538 = vmatmul.mubr.f32.gmra.mrb[0].mxu0 %v1471
    %v1539 = vpop.f32.mrb[0].mxu0
    %v1540 = vadd.f32 %v46, %v1539
    %v1541 = vpop.f32.mrb[0].mxu0
    %1542 = vdwg.mxu0
    %v1543 = vxor.u32 %v1540, 2147483648
    %v1544 = vmul.f32 %v1543, 1.442695
    %v1545 = vpow.pop %v1544
    %v1546 = vadd.f32 %v1545, 1.0
    %v1547 = vrcp.pop %v1546
    %v1548 = vmul.f32 1.0, %v1547
    %v1549 = vtanh.pop %v1540
    %v1550 = vmul.f32 %v1548, %v1344
    %1552 = vrot.lane.b32.xlu0 %v1549, 32
    %v1553 = vpop.permute.xlu0 %1552
    %v1555 = vmul.f32 %v1548, %v1553
    %1557 = vrot.lane.b32.xlu0 %v1555, 32
    %v1558 = vpop.permute.xlu0 %1557
    %v1560 = vadd.f32 %v1550, %v1558
    %v1561 = vtanh.pop %v1560
    %1563 = vrot.lane.b32.xlu0 %v1561, 32
    %v1564 = vpop.permute.xlu0 %1563
    %v1566 = vmul.f32 %v1548, %v1564
    %1568 = vrot.lane.b32.xlu0 %v1455, 64
    %v1569 = vpop.permute.xlu0 %1568
    %1571 = vrot.lane.b32.xlu0 %v1350, 96
    %v1572 = vpop.permute.xlu0 %1571
    %v1574 = vsel %vm41, %v1569, %v1572
    %v1576 = vsel %vm278, %v1574, 0
    %1578 = vmatprep.subr.mxu0 0.0
    %1579 = vmatpush1.msra.mxu0 %v261
    %1580 = vmatprep.subr.mxu0 0.0
    %1581 = vmatpush1.msra.mxu0 %v262
    %1582 = vmatprep.subr.mxu0 0.0
    %1583 = vmatpush1.msra.mxu0 %v263
    %1584 = vmatprep.subr.mxu0 0.0
    %1585 = vmatpush1.msra.mxu0 %v264
    %1586 = vmatprep.subr.mxu0 0.0
    %1587 = vmatpush1.msra.mxu0 %v265
    %1588 = vmatprep.subr.mxu0 0.0
    %1589 = vmatpush1.msra.mxu0 %v266
    %1590 = vmatprep.subr.mxu0 0.0
    %1591 = vmatpush1.msra.mxu0 %v267
    %1592 = vmatprep.subr.mxu0 0.0
    %1593 = vmatpush1.msra.mxu0 %v268
    %1594 = vmatprep.subr.mxu0 0.0
    %1595 = vmatpush1.msra.mxu0 0.0
    %1596 = vmatprep.subr.mxu0 0.0
    %1597 = vmatpush1.msra.mxu0 0.0
    %1598 = vmatprep.subr.mxu0 0.0
    %1599 = vmatpush1.msra.mxu0 0.0
    %1600 = vmatprep.subr.mxu0 0.0
    %1601 = vmatpush1.msra.mxu0 0.0
    %1602 = vmatprep.subr.mxu0 0.0
    %1603 = vmatpush1.msra.mxu0 0.0
    %1604 = vmatprep.subr.mxu0 0.0
    %1605 = vmatpush1.msra.mxu0 0.0
    %1606 = vmatprep.subr.mxu0 0.0
    %1607 = vmatpush1.msra.mxu0 0.0
    %1608 = vmatprep.subr.mxu0 0.0
    %1609 = vmatpush1.msra.mxu0 0.0
    %1610 = vmatprep.subr.mxu0 0.0
    %1611 = vmatpush1.msra.mxu0 0.0
    %1612 = vmatprep.subr.mxu0 0.0
    %1613 = vmatpush1.msra.mxu0 0.0
    %1614 = vmatprep.subr.mxu0 0.0
    %1615 = vmatpush1.msra.mxu0 0.0
    %1616 = vmatprep.subr.mxu0 0.0
    %1617 = vmatpush1.msra.mxu0 0.0
    %1618 = vmatprep.subr.mxu0 0.0
    %1619 = vmatpush1.msra.mxu0 0.0
    %1620 = vmatprep.subr.mxu0 0.0
    %1621 = vmatpush1.msra.mxu0 0.0
    %1622 = vmatprep.subr.mxu0 0.0
    %1623 = vmatpush1.msra.mxu0 0.0
    %1624 = vmatprep.subr.mxu0 0.0
    %1625 = vmatpush1.msra.mxu0 0.0
    %1626 = vmatprep.subr.mxu0 0.0
    %1627 = vmatpush1.msra.mxu0 0.0
    %1628 = vmatprep.subr.mxu0 0.0
    %1629 = vmatpush1.msra.mxu0 0.0
    %1630 = vmatprep.subr.mxu0 0.0
    %1631 = vmatpush1.msra.mxu0 0.0
    %1632 = vmatprep.subr.mxu0 0.0
    %1633 = vmatpush1.msra.mxu0 0.0
    %1634 = vmatprep.subr.mxu0 0.0
    %1635 = vmatpush1.msra.mxu0 0.0
    %1636 = vmatprep.subr.mxu0 0.0
    %1637 = vmatpush1.msra.mxu0 0.0
    %1638 = vmatprep.subr.mxu0 0.0
    %1639 = vmatpush1.msra.mxu0 0.0
    %1640 = vmatprep.subr.mxu0 0.0
    %1641 = vmatpush1.msra.mxu0 0.0
    %1642 = vmatprep.mubr.f32.mxu0 0.0
    %1643 = vmatmul.mubr.f32.gmra.mrb[0].mxu0 %v1576
    %v1644 = vpop.f32.mrb[0].mxu0
    %v1645 = vadd.f32 %v277, %v1644
    %v1646 = vpop.f32.mrb[0].mxu0
    %1647 = vdwg.mxu0
    %v1648 = vxor.u32 %v1645, 2147483648
    %v1649 = vmul.f32 %v1648, 1.442695
    %v1650 = vpow.pop %v1649
    %v1651 = vadd.f32 %v1650, 1.0
    %v1652 = vrcp.pop %v1651
    %v1653 = vmul.f32 1.0, %v1652
    %v1654 = vtanh.pop %v1645
    %v1655 = vmul.f32 %v1653, %v1449
    %1657 = vrot.lane.b32.xlu0 %v1654, 32
    %v1658 = vpop.permute.xlu0 %1657
    %v1660 = vmul.f32 %v1653, %v1658
    %1662 = vrot.lane.b32.xlu0 %v1660, 32
    %v1663 = vpop.permute.xlu0 %1662
    %v1665 = vadd.f32 %v1655, %v1663
    %v1666 = vtanh.pop %v1665
    %1668 = vrot.lane.b32.xlu0 %v1666, 32
    %v1669 = vpop.permute.xlu0 %1668
    %v1671 = vmul.f32 %v1653, %v1669
    %1673 = vrot.lane.b32.xlu0 %v1671, 64
    %v1674 = vpop.permute.xlu0 %1673
    %1677 = vrot.lane.b32.xlu0 %v1566, 96
    %v1678 = vpop.permute.xlu0 %1677
    %v1680 = vsel %vm41, %v1674, %v1678
    %v1682 = vsel %vm278, %v1680, 0
    %1684 = vmatprep.subr.mxu0 0.0
    %1685 = vmatpush1.msra.mxu0 %v261
    %1686 = vmatprep.subr.mxu0 0.0
    %1687 = vmatpush1.msra.mxu0 %v262
    %1688 = vmatprep.subr.mxu0 0.0
    %1689 = vmatpush1.msra.mxu0 %v263
    %1690 = vmatprep.subr.mxu0 0.0
    %1691 = vmatpush1.msra.mxu0 %v264
    %1692 = vmatprep.subr.mxu0 0.0
    %1693 = vmatpush1.msra.mxu0 %v265
    %1694 = vmatprep.subr.mxu0 0.0
    %1695 = vmatpush1.msra.mxu0 %v266
    %1696 = vmatprep.subr.mxu0 0.0
    %1697 = vmatpush1.msra.mxu0 %v267
    %1698 = vmatprep.subr.mxu0 0.0
    %1699 = vmatpush1.msra.mxu0 %v268
    %1700 = vmatprep.subr.mxu0 0.0
    %1701 = vmatpush1.msra.mxu0 0.0
    %1702 = vmatprep.subr.mxu0 0.0
    %1703 = vmatpush1.msra.mxu0 0.0
    %1704 = vmatprep.subr.mxu0 0.0
    %1705 = vmatpush1.msra.mxu0 0.0
    %1706 = vmatprep.subr.mxu0 0.0
    %1707 = vmatpush1.msra.mxu0 0.0
    %1708 = vmatprep.subr.mxu0 0.0
    %1709 = vmatpush1.msra.mxu0 0.0
    %1710 = vmatprep.subr.mxu0 0.0
    %1711 = vmatpush1.msra.mxu0 0.0
    %1712 = vmatprep.subr.mxu0 0.0
    %1713 = vmatpush1.msra.mxu0 0.0
    %1714 = vmatprep.subr.mxu0 0.0
    %1715 = vmatpush1.msra.mxu0 0.0
    %1716 = vmatprep.subr.mxu0 0.0
    %1717 = vmatpush1.msra.mxu0 0.0
    %1718 = vmatprep.subr.mxu0 0.0
    %1719 = vmatpush1.msra.mxu0 0.0
    %1720 = vmatprep.subr.mxu0 0.0
    %1721 = vmatpush1.msra.mxu0 0.0
    %1722 = vmatprep.subr.mxu0 0.0
    %1723 = vmatpush1.msra.mxu0 0.0
    %1724 = vmatprep.subr.mxu0 0.0
    %1725 = vmatpush1.msra.mxu0 0.0
    %1726 = vmatprep.subr.mxu0 0.0
    %1727 = vmatpush1.msra.mxu0 0.0
    %1728 = vmatprep.subr.mxu0 0.0
    %1729 = vmatpush1.msra.mxu0 0.0
    %1730 = vmatprep.subr.mxu0 0.0
    %1731 = vmatpush1.msra.mxu0 0.0
    %1732 = vmatprep.subr.mxu0 0.0
    %1733 = vmatpush1.msra.mxu0 0.0
    %1734 = vmatprep.subr.mxu0 0.0
    %1735 = vmatpush1.msra.mxu0 0.0
    %1736 = vmatprep.subr.mxu0 0.0
    %1737 = vmatpush1.msra.mxu0 0.0
    %1738 = vmatprep.subr.mxu0 0.0
    %1739 = vmatpush1.msra.mxu0 0.0
    %1740 = vmatprep.subr.mxu0 0.0
    %1741 = vmatpush1.msra.mxu0 0.0
    %1742 = vmatprep.subr.mxu0 0.0
    %1743 = vmatpush1.msra.mxu0 0.0
    %1744 = vmatprep.subr.mxu0 0.0
    %1745 = vmatpush1.msra.mxu0 0.0
    %1746 = vmatprep.subr.mxu0 0.0
    %1747 = vmatpush1.msra.mxu0 0.0
    %1748 = vmatprep.mubr.f32.mxu0 0.0
    %1749 = vmatmul.mubr.f32.gmra.mrb[0].mxu0 %v1682
    %v1750 = vpop.f32.mrb[0].mxu0
    %v1751 = vadd.f32 %v277, %v1750
    %v1752 = vpop.f32.mrb[0].mxu0
    %1753 = vdwg.mxu0
    %v1754 = vxor.u32 %v1751, 2147483648
    %v1755 = vmul.f32 %v1754, 1.442695
    %v1756 = vpow.pop %v1755
    %v1757 = vadd.f32 %v1756, 1.0
    %v1758 = vrcp.pop %v1757
    %v1759 = vmul.f32 1.0, %v1758
    %v1760 = vtanh.pop %v1751
    %v1761 = vmul.f32 %v1759, %v1665
    %1763 = vrot.lane.b32.xlu0 %v1760, 32
    %v1764 = vpop.permute.xlu0 %1763
    %v1766 = vmul.f32 %v1759, %v1764
    %1768 = vrot.lane.b32.xlu0 %v1766, 32
    %v1769 = vpop.permute.xlu0 %1768
    %v1771 = vadd.f32 %v1761, %v1769
    %v1772 = vtanh.pop %v1771
    %1774 = vrot.lane.b32.xlu0 %v1772, 32
    %v1775 = vpop.permute.xlu0 %1774
    %v1777 = vmul.f32 %v1759, %v1775
    %s1778 = scalar_lea.vmem [#allocation2], 288
    %v1779 = vld [vmem:[%s1778] sm:$0xff]
    %v1780 = vld [vmem:[%s1778 + $0x8] sm:$0xff]
    %v1781 = vld [vmem:[%s1778 + $0x10] sm:$0xff]
    %v1782 = vld [vmem:[%s1778 + $0x18] sm:$0xff]
    %v1783 = vld [vmem:[%s1778 + $0x20] sm:$0x1]
    %s1784 = scalar_lea.vmem [#allocation2], 144
    %v1785 = vld [vmem:[%s1784] sm:$0xff]
    %v1786 = vld [vmem:[%s1784 + $0x8] sm:$0xff]
    %v1787 = vld [vmem:[%s1784 + $0x10] sm:$0xff]
    %v1788 = vld [vmem:[%s1784 + $0x18] sm:$0xff]
    %v1789 = vld [vmem:[%s1784 + $0x20] sm:$0xff]
    %v1790 = vld [vmem:[%s1784 + $0x28] sm:$0xff]
    %v1791 = vld [vmem:[%s1784 + $0x30] sm:$0xff]
    %v1792 = vld [vmem:[%s1784 + $0x38] sm:$0xff]
    %v1793 = vld [vmem:[%s1784 + $0x40] sm:$0x1]
    %1794 = vrot.lane.b32.xlu0 %v1566, 64
    %v1795 = vpop.permute.xlu0 %1794
    %1797 = vrot.lane.b32.xlu0 %v375, 96
    %v1798 = vpop.permute.xlu0 %1797
    %v1800 = vsel %vm41, %v1795, %v1798
    %v1801 = vlaneseq
    %v1802 = vshrl.u32 %v1801, 7
    %v1803 = vsub.s32 0, %v1802
    %v1804 = vrot.slane %v1793, %v1803
    %v1806 = vsel %vm278, %v1800, 0
    %1808 = vmatprep.subr.mxu0 0.0
    %1809 = vmatpush1.msra.mxu0 %v1785
    %1810 = vmatprep.subr.mxu0 0.0
    %1811 = vmatpush1.msra.mxu0 %v1786
    %1812 = vmatprep.subr.mxu0 0.0
    %1813 = vmatpush1.msra.mxu0 %v1787
    %1814 = vmatprep.subr.mxu0 0.0
    %1815 = vmatpush1.msra.mxu0 %v1788
    %1816 = vmatprep.subr.mxu0 0.0
    %1817 = vmatpush1.msra.mxu0 %v1789
    %1818 = vmatprep.subr.mxu0 0.0
    %1819 = vmatpush1.msra.mxu0 %v1790
    %1820 = vmatprep.subr.mxu0 0.0
    %1821 = vmatpush1.msra.mxu0 %v1791
    %1822 = vmatprep.subr.mxu0 0.0
    %1823 = vmatpush1.msra.mxu0 %v1792
    %1824 = vmatprep.subr.mxu0 0.0
    %1825 = vmatpush1.msra.mxu0 0.0
    %1826 = vmatprep.subr.mxu0 0.0
    %1827 = vmatpush1.msra.mxu0 0.0
    %1828 = vmatprep.subr.mxu0 0.0
    %1829 = vmatpush1.msra.mxu0 0.0
    %1830 = vmatprep.subr.mxu0 0.0
    %1831 = vmatpush1.msra.mxu0 0.0
    %1832 = vmatprep.subr.mxu0 0.0
    %1833 = vmatpush1.msra.mxu0 0.0
    %1834 = vmatprep.subr.mxu0 0.0
    %1835 = vmatpush1.msra.mxu0 0.0
    %1836 = vmatprep.subr.mxu0 0.0
    %1837 = vmatpush1.msra.mxu0 0.0
    %1838 = vmatprep.subr.mxu0 0.0
    %1839 = vmatpush1.msra.mxu0 0.0
    %1840 = vmatprep.subr.mxu0 0.0
    %1841 = vmatpush1.msra.mxu0 0.0
    %1842 = vmatprep.subr.mxu0 0.0
    %1843 = vmatpush1.msra.mxu0 0.0
    %1844 = vmatprep.subr.mxu0 0.0
    %1845 = vmatpush1.msra.mxu0 0.0
    %1846 = vmatprep.subr.mxu0 0.0
    %1847 = vmatpush1.msra.mxu0 0.0
    %1848 = vmatprep.subr.mxu0 0.0
    %1849 = vmatpush1.msra.mxu0 0.0
    %1850 = vmatprep.subr.mxu0 0.0
    %1851 = vmatpush1.msra.mxu0 0.0
    %1852 = vmatprep.subr.mxu0 0.0
    %1853 = vmatpush1.msra.mxu0 0.0
    %1854 = vmatprep.subr.mxu0 0.0
    %1855 = vmatpush1.msra.mxu0 0.0
    %1856 = vmatprep.subr.mxu0 0.0
    %1857 = vmatpush1.msra.mxu0 0.0
    %1858 = vmatprep.subr.mxu0 0.0
    %1859 = vmatpush1.msra.mxu0 0.0
    %1860 = vmatprep.subr.mxu0 0.0
    %1861 = vmatpush1.msra.mxu0 0.0
    %1862 = vmatprep.subr.mxu0 0.0
    %1863 = vmatpush1.msra.mxu0 0.0
    %1864 = vmatprep.subr.mxu0 0.0
    %1865 = vmatpush1.msra.mxu0 0.0
    %1866 = vmatprep.subr.mxu0 0.0
    %1867 = vmatpush1.msra.mxu0 0.0
    %1868 = vmatprep.subr.mxu0 0.0
    %1869 = vmatpush1.msra.mxu0 0.0
    %1870 = vmatprep.subr.mxu0 0.0
    %1871 = vmatpush1.msra.mxu0 0.0
    %1872 = vmatprep.mubr.f32.mxu0 0.0
    %1873 = vmatmul.mubr.f32.gmra.mrb[0].mxu0 %v1806
    %v1874 = vpop.f32.mrb[0].mxu0
    %v1875 = vadd.f32 %v1804, %v1874
    %v1876 = vpop.f32.mrb[0].mxu0
    %1877 = vdwg.mxu0
    %v1878 = vxor.u32 %v1875, 2147483648
    %v1879 = vmul.f32 %v1878, 1.442695
    %v1880 = vpow.pop %v1879
    %v1881 = vadd.f32 %v1880, 1.0
    %v1882 = vrcp.pop %v1881
    %v1883 = vmul.f32 1.0, %v1882
    %v1884 = vtanh.pop %v1875
    %v1885 = vmul.f32 %v1883, %v1560
    %1887 = vrot.lane.b32.xlu0 %v1884, 32
    %v1888 = vpop.permute.xlu0 %1887
    %v1890 = vmul.f32 %v1883, %v1888
    %1892 = vrot.lane.b32.xlu0 %v1890, 32
    %v1893 = vpop.permute.xlu0 %1892
    %v1895 = vadd.f32 %v1885, %v1893
    %v1896 = vtanh.pop %v1895
    %1898 = vrot.lane.b32.xlu0 %v1896, 32
    %v1899 = vpop.permute.xlu0 %1898
    %v1901 = vmul.f32 %v1883, %v1899
    %1903 = vrot.lane.b32.xlu0 %v1901, 64
    %v1904 = vpop.permute.xlu0 %1903
    %1906 = vrot.lane.b32.xlu0 %v591, 96
    %v1907 = vpop.permute.xlu0 %1906
    %v1909 = vsel %vm41, %v1904, %v1907
    %v1911 = vsel %vm278, %v1909, 0
    %1913 = vmatprep.subr.mxu0 0.0
    %1914 = vmatpush1.msra.mxu0 %v1785
    %1915 = vmatprep.subr.mxu0 0.0
    %1916 = vmatpush1.msra.mxu0 %v1786
    %1917 = vmatprep.subr.mxu0 0.0
    %1918 = vmatpush1.msra.mxu0 %v1787
    %1919 = vmatprep.subr.mxu0 0.0
    %1920 = vmatpush1.msra.mxu0 %v1788
    %1921 = vmatprep.subr.mxu0 0.0
    %1922 = vmatpush1.msra.mxu0 %v1789
    %1923 = vmatprep.subr.mxu0 0.0
    %1924 = vmatpush1.msra.mxu0 %v1790
    %1925 = vmatprep.subr.mxu0 0.0
    %1926 = vmatpush1.msra.mxu0 %v1791
    %1927 = vmatprep.subr.mxu0 0.0
    %1928 = vmatpush1.msra.mxu0 %v1792
    %1929 = vmatprep.subr.mxu0 0.0
    %1930 = vmatpush1.msra.mxu0 0.0
    %1931 = vmatprep.subr.mxu0 0.0
    %1932 = vmatpush1.msra.mxu0 0.0
    %1933 = vmatprep.subr.mxu0 0.0
    %1934 = vmatpush1.msra.mxu0 0.0
    %1935 = vmatprep.subr.mxu0 0.0
    %1936 = vmatpush1.msra.mxu0 0.0
    %1937 = vmatprep.subr.mxu0 0.0
    %1938 = vmatpush1.msra.mxu0 0.0
    %1939 = vmatprep.subr.mxu0 0.0
    %1940 = vmatpush1.msra.mxu0 0.0
    %1941 = vmatprep.subr.mxu0 0.0
    %1942 = vmatpush1.msra.mxu0 0.0
    %1943 = vmatprep.subr.mxu0 0.0
    %1944 = vmatpush1.msra.mxu0 0.0
    %1945 = vmatprep.subr.mxu0 0.0
    %1946 = vmatpush1.msra.mxu0 0.0
    %1947 = vmatprep.subr.mxu0 0.0
    %1948 = vmatpush1.msra.mxu0 0.0
    %1949 = vmatprep.subr.mxu0 0.0
    %1950 = vmatpush1.msra.mxu0 0.0
    %1951 = vmatprep.subr.mxu0 0.0
    %1952 = vmatpush1.msra.mxu0 0.0
    %1953 = vmatprep.subr.mxu0 0.0
    %1954 = vmatpush1.msra.mxu0 0.0
    %1955 = vmatprep.subr.mxu0 0.0
    %1956 = vmatpush1.msra.mxu0 0.0
    %1957 = vmatprep.subr.mxu0 0.0
    %1958 = vmatpush1.msra.mxu0 0.0
    %1959 = vmatprep.subr.mxu0 0.0
    %1960 = vmatpush1.msra.mxu0 0.0
    %1961 = vmatprep.subr.mxu0 0.0
    %1962 = vmatpush1.msra.mxu0 0.0
    %1963 = vmatprep.subr.mxu0 0.0
    %1964 = vmatpush1.msra.mxu0 0.0
    %1965 = vmatprep.subr.mxu0 0.0
    %1966 = vmatpush1.msra.mxu0 0.0
    %1967 = vmatprep.subr.mxu0 0.0
    %1968 = vmatpush1.msra.mxu0 0.0
    %1969 = vmatprep.subr.mxu0 0.0
    %1970 = vmatpush1.msra.mxu0 0.0
    %1971 = vmatprep.subr.mxu0 0.0
    %1972 = vmatpush1.msra.mxu0 0.0
    %1973 = vmatprep.subr.mxu0 0.0
    %1974 = vmatpush1.msra.mxu0 0.0
    %1975 = vmatprep.subr.mxu0 0.0
    %1976 = vmatpush1.msra.mxu0 0.0
    %1977 = vmatprep.mubr.f32.mxu0 0.0
    %1978 = vmatmul.mubr.f32.gmra.mrb[0].mxu0 %v1911
    %v1979 = vpop.f32.mrb[0].mxu0
    %v1980 = vadd.f32 %v1804, %v1979
    %v1981 = vpop.f32.mrb[0].mxu0
    %1982 = vdwg.mxu0
    %v1983 = vxor.u32 %v1980, 2147483648
    %v1984 = vmul.f32 %v1983, 1.442695
    %v1985 = vpow.pop %v1984
    %v1986 = vadd.f32 %v1985, 1.0
    %v1987 = vrcp.pop %v1986
    %v1988 = vmul.f32 1.0, %v1987
    %v1989 = vtanh.pop %v1980
    %v1990 = vmul.f32 %v1988, %v1895
    %1992 = vrot.lane.b32.xlu0 %v1989, 32
    %v1993 = vpop.permute.xlu0 %1992
    %v1995 = vmul.f32 %v1988, %v1993
    %1997 = vrot.lane.b32.xlu0 %v1995, 32
    %v1998 = vpop.permute.xlu0 %1997
    %v2000 = vadd.f32 %v1990, %v1998
    %v2001 = vtanh.pop %v2000
    %2003 = vrot.lane.b32.xlu0 %v2001, 32
    %v2004 = vpop.permute.xlu0 %2003
    %v2006 = vmul.f32 %v1988, %v2004
    %s2007 = scalar_lea.vmem [#allocation2], 216
    %v2008 = vld [vmem:[%s2007] sm:$0xff]
    %v2009 = vld [vmem:[%s2007 + $0x8] sm:$0xff]
    %v2010 = vld [vmem:[%s2007 + $0x10] sm:$0xff]
    %v2011 = vld [vmem:[%s2007 + $0x18] sm:$0xff]
    %v2012 = vld [vmem:[%s2007 + $0x20] sm:$0xff]
    %v2013 = vld [vmem:[%s2007 + $0x28] sm:$0xff]
    %v2014 = vld [vmem:[%s2007 + $0x30] sm:$0xff]
    %v2015 = vld [vmem:[%s2007 + $0x38] sm:$0xff]
    %v2016 = vld [vmem:[%s2007 + $0x40] sm:$0x1]
    %2018 = vrot.lane.b32.xlu0 %v1777, 64
    %v2019 = vpop.permute.xlu0 %2018
    %2021 = vrot.lane.b32.xlu0 %v1901, 96
    %v2022 = vpop.permute.xlu0 %2021
    %v2024 = vsel %vm41, %v2019, %v2022
    %v2025 = vlaneseq
    %v2026 = vshrl.u32 %v2025, 7
    %v2027 = vsub.s32 0, %v2026
    %v2028 = vrot.slane %v2016, %v2027
    %v2030 = vsel %vm278, %v2024, 0
    %2032 = vmatprep.subr.mxu0 0.0
    %2033 = vmatpush1.msra.mxu0 %v2008
    %2034 = vmatprep.subr.mxu0 0.0
    %2035 = vmatpush1.msra.mxu0 %v2009
    %2036 = vmatprep.subr.mxu0 0.0
    %2037 = vmatpush1.msra.mxu0 %v2010
    %2038 = vmatprep.subr.mxu0 0.0
    %2039 = vmatpush1.msra.mxu0 %v2011
    %2040 = vmatprep.subr.mxu0 0.0
    %2041 = vmatpush1.msra.mxu0 %v2012
    %2042 = vmatprep.subr.mxu0 0.0
    %2043 = vmatpush1.msra.mxu0 %v2013
    %2044 = vmatprep.subr.mxu0 0.0
    %2045 = vmatpush1.msra.mxu0 %v2014
    %2046 = vmatprep.subr.mxu0 0.0
    %2047 = vmatpush1.msra.mxu0 %v2015
    %2048 = vmatprep.subr.mxu0 0.0
    %2049 = vmatpush1.msra.mxu0 0.0
    %2050 = vmatprep.subr.mxu0 0.0
    %2051 = vmatpush1.msra.mxu0 0.0
    %2052 = vmatprep.subr.mxu0 0.0
    %2053 = vmatpush1.msra.mxu0 0.0
    %2054 = vmatprep.subr.mxu0 0.0
    %2055 = vmatpush1.msra.mxu0 0.0
    %2056 = vmatprep.subr.mxu0 0.0
    %2057 = vmatpush1.msra.mxu0 0.0
    %2058 = vmatprep.subr.mxu0 0.0
    %2059 = vmatpush1.msra.mxu0 0.0
    %2060 = vmatprep.subr.mxu0 0.0
    %2061 = vmatpush1.msra.mxu0 0.0
    %2062 = vmatprep.subr.mxu0 0.0
    %2063 = vmatpush1.msra.mxu0 0.0
    %2064 = vmatprep.subr.mxu0 0.0
    %2065 = vmatpush1.msra.mxu0 0.0
    %2066 = vmatprep.subr.mxu0 0.0
    %2067 = vmatpush1.msra.mxu0 0.0
    %2068 = vmatprep.subr.mxu0 0.0
    %2069 = vmatpush1.msra.mxu0 0.0
    %2070 = vmatprep.subr.mxu0 0.0
    %2071 = vmatpush1.msra.mxu0 0.0
    %2072 = vmatprep.subr.mxu0 0.0
    %2073 = vmatpush1.msra.mxu0 0.0
    %2074 = vmatprep.subr.mxu0 0.0
    %2075 = vmatpush1.msra.mxu0 0.0
    %2076 = vmatprep.subr.mxu0 0.0
    %2077 = vmatpush1.msra.mxu0 0.0
    %2078 = vmatprep.subr.mxu0 0.0
    %2079 = vmatpush1.msra.mxu0 0.0
    %2080 = vmatprep.subr.mxu0 0.0
    %2081 = vmatpush1.msra.mxu0 0.0
    %2082 = vmatprep.subr.mxu0 0.0
    %2083 = vmatpush1.msra.mxu0 0.0
    %2084 = vmatprep.subr.mxu0 0.0
    %2085 = vmatpush1.msra.mxu0 0.0
    %2086 = vmatprep.subr.mxu0 0.0
    %2087 = vmatpush1.msra.mxu0 0.0
    %2088 = vmatprep.subr.mxu0 0.0
    %2089 = vmatpush1.msra.mxu0 0.0
    %2090 = vmatprep.subr.mxu0 0.0
    %2091 = vmatpush1.msra.mxu0 0.0
    %2092 = vmatprep.subr.mxu0 0.0
    %2093 = vmatpush1.msra.mxu0 0.0
    %2094 = vmatprep.subr.mxu0 0.0
    %2095 = vmatpush1.msra.mxu0 0.0
    %2096 = vmatprep.mubr.f32.mxu0 0.0
    %2097 = vmatmul.mubr.f32.gmra.mrb[0].mxu0 %v2030
    %v2098 = vpop.f32.mrb[0].mxu0
    %v2099 = vadd.f32 %v2028, %v2098
    %v2100 = vpop.f32.mrb[0].mxu0
    %2101 = vdwg.mxu0
    %v2102 = vxor.u32 %v2099, 2147483648
    %v2103 = vmul.f32 %v2102, 1.442695
    %v2104 = vpow.pop %v2103
    %v2105 = vadd.f32 %v2104, 1.0
    %v2106 = vrcp.pop %v2105
    %v2107 = vmul.f32 1.0, %v2106
    %v2108 = vtanh.pop %v2099
    %v2109 = vmul.f32 %v2107, %v1771
    %2111 = vrot.lane.b32.xlu0 %v2108, 32
    %v2112 = vpop.permute.xlu0 %2111
    %v2114 = vmul.f32 %v2107, %v2112
    %2116 = vrot.lane.b32.xlu0 %v2114, 32
    %v2117 = vpop.permute.xlu0 %2116
    %v2119 = vadd.f32 %v2109, %v2117
    %v2120 = vtanh.pop %v2119
    %2122 = vrot.lane.b32.xlu0 %v2120, 32
    %v2123 = vpop.permute.xlu0 %2122
    %v2125 = vmul.f32 %v2107, %v2123
    %v2126 = vlaneseq
    %v2127 = vshrl.u32 %v2126, 7
    %v2128 = vsub.s32 0, %v2127
    %v2129 = vrot.slane %v1783, %v2128
    %2131 = vrot.lane.b32.xlu0 %v2125, 64
    %v2132 = vpop.permute.xlu0 %2131
    %v2133 = vsel %vm41, %v2132, 0
    %2135 = vmatprep.subr.mxu0 0.0
    %2136 = vmatpush1.msra.mxu0 %v1779
    %2137 = vmatprep.subr.mxu0 0.0
    %2138 = vmatpush1.msra.mxu0 %v1780
    %2139 = vmatprep.subr.mxu0 0.0
    %2140 = vmatpush1.msra.mxu0 %v1781
    %2141 = vmatprep.subr.mxu0 0.0
    %2142 = vmatpush1.msra.mxu0 %v1782
    %2143 = vmatprep.subr.mxu0 0.0
    %2144 = vmatpush1.msra.mxu0 0.0
    %2145 = vmatprep.subr.mxu0 0.0
    %2146 = vmatpush1.msra.mxu0 0.0
    %2147 = vmatprep.subr.mxu0 0.0
    %2148 = vmatpush1.msra.mxu0 0.0
    %2149 = vmatprep.subr.mxu0 0.0
    %2150 = vmatpush1.msra.mxu0 0.0
    %2151 = vmatprep.subr.mxu0 0.0
    %2152 = vmatpush1.msra.mxu0 0.0
    %2153 = vmatprep.subr.mxu0 0.0
    %2154 = vmatpush1.msra.mxu0 0.0
    %2155 = vmatprep.subr.mxu0 0.0
    %2156 = vmatpush1.msra.mxu0 0.0
    %2157 = vmatprep.subr.mxu0 0.0
    %2158 = vmatpush1.msra.mxu0 0.0
    %2159 = vmatprep.subr.mxu0 0.0
    %2160 = vmatpush1.msra.mxu0 0.0
    %2161 = vmatprep.subr.mxu0 0.0
    %2162 = vmatpush1.msra.mxu0 0.0
    %2163 = vmatprep.subr.mxu0 0.0
    %2164 = vmatpush1.msra.mxu0 0.0
    %2165 = vmatprep.subr.mxu0 0.0
    %2166 = vmatpush1.msra.mxu0 0.0
    %2167 = vmatprep.subr.mxu0 0.0
    %2168 = vmatpush1.msra.mxu0 0.0
    %2169 = vmatprep.subr.mxu0 0.0
    %2170 = vmatpush1.msra.mxu0 0.0
    %2171 = vmatprep.subr.mxu0 0.0
    %2172 = vmatpush1.msra.mxu0 0.0
    %2173 = vmatprep.subr.mxu0 0.0
    %2174 = vmatpush1.msra.mxu0 0.0
    %2175 = vmatprep.subr.mxu0 0.0
    %2176 = vmatpush1.msra.mxu0 0.0
    %2177 = vmatprep.subr.mxu0 0.0
    %2178 = vmatpush1.msra.mxu0 0.0
    %2179 = vmatprep.subr.mxu0 0.0
    %2180 = vmatpush1.msra.mxu0 0.0
    %2181 = vmatprep.subr.mxu0 0.0
    %2182 = vmatpush1.msra.mxu0 0.0
    %2183 = vmatprep.subr.mxu0 0.0
    %2184 = vmatpush1.msra.mxu0 0.0
    %2185 = vmatprep.subr.mxu0 0.0
    %2186 = vmatpush1.msra.mxu0 0.0
    %2187 = vmatprep.subr.mxu0 0.0
    %2188 = vmatpush1.msra.mxu0 0.0
    %2189 = vmatprep.subr.mxu0 0.0
    %2190 = vmatpush1.msra.mxu0 0.0
    %2191 = vmatprep.subr.mxu0 0.0
    %2192 = vmatpush1.msra.mxu0 0.0
    %2193 = vmatprep.subr.mxu0 0.0
    %2194 = vmatpush1.msra.mxu0 0.0
    %2195 = vmatprep.subr.mxu0 0.0
    %2196 = vmatpush1.msra.mxu0 0.0
    %2197 = vmatprep.subr.mxu0 0.0
    %2198 = vmatpush1.msra.mxu0 0.0
    %2199 = vmatprep.mubr.f32.mxu0 0.0
    %2200 = vmatmul.mubr.f32.gmra.mrb[0].mxu0 %v2133
    %v2201 = vpop.f32.mrb[0].mxu0
    %v2202 = vadd.f32 %v2129, %v2201
    %v2203 = vpop.f32.mrb[0].mxu0
    %2204 = vdwg.mxu0
    %v2207 = vunpack.c.l.s4 1966171168
    %v2208 = vunpack.c.0.s8 %v2207
    %v2209 = vlaneseq
    %v2210 = vshrl.u32 %v2209, 7
    %v2211 = vsub.s32 %v2208, %v2210
    %v2212 = vrot.slane %v2202, %v2211
    %v2213 = vcombine.high %v2212, %v2212
    %v2215 = vunpack.c.l.s4 1966171168
    %v2216 = vunpack.c.0.s8 %v2215
    %v2217 = vlaneseq
    %v2218 = vshrl.u32 %v2217, 7
    %v2219 = vsub.s32 %v2216, %v2218
    %v2220 = vrot.slane %v2212, %v2219
    %v2222 = vunpack.c.l.s4 1966171168
    %v2223 = vunpack.c.0.s8 %v2222
    %v2224 = vlaneseq
    %v2225 = vshrl.u32 %v2224, 7
    %v2226 = vsub.s32 %v2223, %v2225
    %v2227 = vrot.slane %v2213, %v2226
    %vm2230 = vcmask 24576
    %2231 = vst.msk [vmem:[%s2] sm:$0x1] %vm2230, %v2220
    %2232 = vst.msk [vmem:[%s2 + $0x8] sm:$0x1] %vm2230, %v2227
    %v2233 = vld [vmem:[%s1784] sm:$0xff]
    %v2234 = vld [vmem:[%s1784 + $0x8] sm:$0xff]
    %v2235 = vld [vmem:[%s1784 + $0x10] sm:$0xff]
    %v2236 = vld [vmem:[%s1784 + $0x18] sm:$0xff]
    %v2237 = vld [vmem:[%s1784 + $0x20] sm:$0xff]
    %v2238 = vld [vmem:[%s1784 + $0x28] sm:$0xff]
    %v2239 = vld [vmem:[%s1784 + $0x30] sm:$0xff]
    %v2240 = vld [vmem:[%s1784 + $0x38] sm:$0xff]
    %v2241 = vld [vmem:[%s1784 + $0x40] sm:$0x1]
    %2243 = vrot.lane.b32.xlu0 %v2006, 64
    %v2244 = vpop.permute.xlu0 %2243
    %2246 = vrot.lane.b32.xlu0 %v807, 96
    %v2247 = vpop.permute.xlu0 %2246
    %v2249 = vsel %vm41, %v2244, %v2247
    %v2250 = vlaneseq
    %v2251 = vshrl.u32 %v2250, 7
    %v2252 = vsub.s32 0, %v2251
    %v2253 = vrot.slane %v2241, %v2252
    %v2255 = vsel %vm278, %v2249, 0
    %2257 = vmatprep.subr.mxu0 0.0
    %2258 = vmatpush1.msra.mxu0 %v2233
    %2259 = vmatprep.subr.mxu0 0.0
    %2260 = vmatpush1.msra.mxu0 %v2234
    %2261 = vmatprep.subr.mxu0 0.0
    %2262 = vmatpush1.msra.mxu0 %v2235
    %2263 = vmatprep.subr.mxu0 0.0
    %2264 = vmatpush1.msra.mxu0 %v2236
    %2265 = vmatprep.subr.mxu0 0.0
    %2266 = vmatpush1.msra.mxu0 %v2237
    %2267 = vmatprep.subr.mxu0 0.0
    %2268 = vmatpush1.msra.mxu0 %v2238
    %2269 = vmatprep.subr.mxu0 0.0
    %2270 = vmatpush1.msra.mxu0 %v2239
    %2271 = vmatprep.subr.mxu0 0.0
    %2272 = vmatpush1.msra.mxu0 %v2240
    %2273 = vmatprep.subr.mxu0 0.0
    %2274 = vmatpush1.msra.mxu0 0.0
    %2275 = vmatprep.subr.mxu0 0.0
    %2276 = vmatpush1.msra.mxu0 0.0
    %2277 = vmatprep.subr.mxu0 0.0
    %2278 = vmatpush1.msra.mxu0 0.0
    %2279 = vmatprep.subr.mxu0 0.0
    %2280 = vmatpush1.msra.mxu0 0.0
    %2281 = vmatprep.subr.mxu0 0.0
    %2282 = vmatpush1.msra.mxu0 0.0
    %2283 = vmatprep.subr.mxu0 0.0
    %2284 = vmatpush1.msra.mxu0 0.0
    %2285 = vmatprep.subr.mxu0 0.0
    %2286 = vmatpush1.msra.mxu0 0.0
    %2287 = vmatprep.subr.mxu0 0.0
    %2288 = vmatpush1.msra.mxu0 0.0
    %2289 = vmatprep.subr.mxu0 0.0
    %2290 = vmatpush1.msra.mxu0 0.0
    %2291 = vmatprep.subr.mxu0 0.0
    %2292 = vmatpush1.msra.mxu0 0.0
    %2293 = vmatprep.subr.mxu0 0.0
    %2294 = vmatpush1.msra.mxu0 0.0
    %2295 = vmatprep.subr.mxu0 0.0
    %2296 = vmatpush1.msra.mxu0 0.0
    %2297 = vmatprep.subr.mxu0 0.0
    %2298 = vmatpush1.msra.mxu0 0.0
    %2299 = vmatprep.subr.mxu0 0.0
    %2300 = vmatpush1.msra.mxu0 0.0
    %2301 = vmatprep.subr.mxu0 0.0
    %2302 = vmatpush1.msra.mxu0 0.0
    %2303 = vmatprep.subr.mxu0 0.0
    %2304 = vmatpush1.msra.mxu0 0.0
    %2305 = vmatprep.subr.mxu0 0.0
    %2306 = vmatpush1.msra.mxu0 0.0
    %2307 = vmatprep.subr.mxu0 0.0
    %2308 = vmatpush1.msra.mxu0 0.0
    %2309 = vmatprep.subr.mxu0 0.0
    %2310 = vmatpush1.msra.mxu0 0.0
    %2311 = vmatprep.subr.mxu0 0.0
    %2312 = vmatpush1.msra.mxu0 0.0
    %2313 = vmatprep.subr.mxu0 0.0
    %2314 = vmatpush1.msra.mxu0 0.0
    %2315 = vmatprep.subr.mxu0 0.0
    %2316 = vmatpush1.msra.mxu0 0.0
    %2317 = vmatprep.subr.mxu0 0.0
    %2318 = vmatpush1.msra.mxu0 0.0
    %2319 = vmatprep.subr.mxu0 0.0
    %2320 = vmatpush1.msra.mxu0 0.0
    %2321 = vmatprep.mubr.f32.mxu0 0.0
    %2322 = vmatmul.mubr.f32.gmra.mrb[0].mxu0 %v2255
    %v2323 = vpop.f32.mrb[0].mxu0
    %v2324 = vadd.f32 %v2253, %v2323
    %v2325 = vpop.f32.mrb[0].mxu0
    %2326 = vdwg.mxu0
    %v2327 = vxor.u32 %v2324, 2147483648
    %v2328 = vmul.f32 %v2327, 1.442695
    %v2329 = vpow.pop %v2328
    %v2330 = vadd.f32 %v2329, 1.0
    %v2331 = vrcp.pop %v2330
    %v2332 = vmul.f32 1.0, %v2331
    %v2333 = vtanh.pop %v2324
    %v2334 = vmul.f32 %v2332, %v2000
    %2336 = vrot.lane.b32.xlu0 %v2333, 32
    %v2337 = vpop.permute.xlu0 %2336
    %v2339 = vmul.f32 %v2332, %v2337
    %2341 = vrot.lane.b32.xlu0 %v2339, 32
    %v2342 = vpop.permute.xlu0 %2341
    %v2344 = vadd.f32 %v2334, %v2342
    %v2345 = vtanh.pop %v2344
    %2347 = vrot.lane.b32.xlu0 %v2345, 32
    %v2348 = vpop.permute.xlu0 %2347
    %v2350 = vmul.f32 %v2332, %v2348
    %v2351 = vld [vmem:[%s2007] sm:$0xff]
    %v2352 = vld [vmem:[%s2007 + $0x8] sm:$0xff]
    %v2353 = vld [vmem:[%s2007 + $0x10] sm:$0xff]
    %v2354 = vld [vmem:[%s2007 + $0x18] sm:$0xff]
    %v2355 = vld [vmem:[%s2007 + $0x20] sm:$0xff]
    %v2356 = vld [vmem:[%s2007 + $0x28] sm:$0xff]
    %v2357 = vld [vmem:[%s2007 + $0x30] sm:$0xff]
    %v2358 = vld [vmem:[%s2007 + $0x38] sm:$0xff]
    %v2359 = vld [vmem:[%s2007 + $0x40] sm:$0x1]
    %2361 = vrot.lane.b32.xlu0 %v2006, 96
    %v2362 = vpop.permute.xlu0 %2361
    %v2364 = vsel %vm41, %v2132, %v2362
    %v2365 = vlaneseq
    %v2366 = vshrl.u32 %v2365, 7
    %v2367 = vsub.s32 0, %v2366
    %v2368 = vrot.slane %v2359, %v2367
    %v2370 = vsel %vm278, %v2364, 0
    %2372 = vmatprep.subr.mxu0 0.0
    %2373 = vmatpush1.msra.mxu0 %v2351
    %2374 = vmatprep.subr.mxu0 0.0
    %2375 = vmatpush1.msra.mxu0 %v2352
    %2376 = vmatprep.subr.mxu0 0.0
    %2377 = vmatpush1.msra.mxu0 %v2353
    %2378 = vmatprep.subr.mxu0 0.0
    %2379 = vmatpush1.msra.mxu0 %v2354
    %2380 = vmatprep.subr.mxu0 0.0
    %2381 = vmatpush1.msra.mxu0 %v2355
    %2382 = vmatprep.subr.mxu0 0.0
    %2383 = vmatpush1.msra.mxu0 %v2356
    %2384 = vmatprep.subr.mxu0 0.0
    %2385 = vmatpush1.msra.mxu0 %v2357
    %2386 = vmatprep.subr.mxu0 0.0
    %2387 = vmatpush1.msra.mxu0 %v2358
    %2388 = vmatprep.subr.mxu0 0.0
    %2389 = vmatpush1.msra.mxu0 0.0
    %2390 = vmatprep.subr.mxu0 0.0
    %2391 = vmatpush1.msra.mxu0 0.0
    %2392 = vmatprep.subr.mxu0 0.0
    %2393 = vmatpush1.msra.mxu0 0.0
    %2394 = vmatprep.subr.mxu0 0.0
    %2395 = vmatpush1.msra.mxu0 0.0
    %2396 = vmatprep.subr.mxu0 0.0
    %2397 = vmatpush1.msra.mxu0 0.0
    %2398 = vmatprep.subr.mxu0 0.0
    %2399 = vmatpush1.msra.mxu0 0.0
    %2400 = vmatprep.subr.mxu0 0.0
    %2401 = vmatpush1.msra.mxu0 0.0
    %2402 = vmatprep.subr.mxu0 0.0
    %2403 = vmatpush1.msra.mxu0 0.0
    %2404 = vmatprep.subr.mxu0 0.0
    %2405 = vmatpush1.msra.mxu0 0.0
    %2406 = vmatprep.subr.mxu0 0.0
    %2407 = vmatpush1.msra.mxu0 0.0
    %2408 = vmatprep.subr.mxu0 0.0
    %2409 = vmatpush1.msra.mxu0 0.0
    %2410 = vmatprep.subr.mxu0 0.0
    %2411 = vmatpush1.msra.mxu0 0.0
    %2412 = vmatprep.subr.mxu0 0.0
    %2413 = vmatpush1.msra.mxu0 0.0
    %2414 = vmatprep.subr.mxu0 0.0
    %2415 = vmatpush1.msra.mxu0 0.0
    %2416 = vmatprep.subr.mxu0 0.0
    %2417 = vmatpush1.msra.mxu0 0.0
    %2418 = vmatprep.subr.mxu0 0.0
    %2419 = vmatpush1.msra.mxu0 0.0
    %2420 = vmatprep.subr.mxu0 0.0
    %2421 = vmatpush1.msra.mxu0 0.0
    %2422 = vmatprep.subr.mxu0 0.0
    %2423 = vmatpush1.msra.mxu0 0.0
    %2424 = vmatprep.subr.mxu0 0.0
    %2425 = vmatpush1.msra.mxu0 0.0
    %2426 = vmatprep.subr.mxu0 0.0
    %2427 = vmatpush1.msra.mxu0 0.0
    %2428 = vmatprep.subr.mxu0 0.0
    %2429 = vmatpush1.msra.mxu0 0.0
    %2430 = vmatprep.subr.mxu0 0.0
    %2431 = vmatpush1.msra.mxu0 0.0
    %2432 = vmatprep.subr.mxu0 0.0
    %2433 = vmatpush1.msra.mxu0 0.0
    %2434 = vmatprep.subr.mxu0 0.0
    %2435 = vmatpush1.msra.mxu0 0.0
    %2436 = vmatprep.mubr.f32.mxu0 0.0
    %2437 = vmatmul.mubr.f32.gmra.mrb[0].mxu0 %v2370
    %v2438 = vpop.f32.mrb[0].mxu0
    %v2439 = vadd.f32 %v2368, %v2438
    %v2440 = vpop.f32.mrb[0].mxu0
    %2441 = vdwg.mxu0
    %v2442 = vxor.u32 %v2439, 2147483648
    %v2443 = vmul.f32 %v2442, 1.442695
    %v2444 = vpow.pop %v2443
    %v2445 = vadd.f32 %v2444, 1.0
    %v2446 = vrcp.pop %v2445
    %v2447 = vmul.f32 1.0, %v2446
    %v2448 = vtanh.pop %v2439
    %v2449 = vmul.f32 %v2447, %v2119
    %2451 = vrot.lane.b32.xlu0 %v2448, 32
    %v2452 = vpop.permute.xlu0 %2451
    %v2454 = vmul.f32 %v2447, %v2452
    %2456 = vrot.lane.b32.xlu0 %v2454, 32
    %v2457 = vpop.permute.xlu0 %2456
    %v2459 = vadd.f32 %v2449, %v2457
    %v2460 = vtanh.pop %v2459
    %2462 = vrot.lane.b32.xlu0 %v2460, 32
    %v2463 = vpop.permute.xlu0 %2462
    %v2465 = vmul.f32 %v2447, %v2463
    %2467 = vrot.lane.b32.xlu0 %v2465, 64
    %v2468 = vpop.permute.xlu0 %2467
    %v2469 = vsel %vm41, %v2468, 0
    %2471 = vmatprep.subr.mxu0 0.0
    %2472 = vmatpush1.msra.mxu0 %v1779
    %2473 = vmatprep.subr.mxu0 0.0
    %2474 = vmatpush1.msra.mxu0 %v1780
    %2475 = vmatprep.subr.mxu0 0.0
    %2476 = vmatpush1.msra.mxu0 %v1781
    %2477 = vmatprep.subr.mxu0 0.0
    %2478 = vmatpush1.msra.mxu0 %v1782
    %2479 = vmatprep.subr.mxu0 0.0
    %2480 = vmatpush1.msra.mxu0 0.0
    %2481 = vmatprep.subr.mxu0 0.0
    %2482 = vmatpush1.msra.mxu0 0.0
    %2483 = vmatprep.subr.mxu0 0.0
    %2484 = vmatpush1.msra.mxu0 0.0
    %2485 = vmatprep.subr.mxu0 0.0
    %2486 = vmatpush1.msra.mxu0 0.0
    %2487 = vmatprep.subr.mxu0 0.0
    %2488 = vmatpush1.msra.mxu0 0.0
    %2489 = vmatprep.subr.mxu0 0.0
    %2490 = vmatpush1.msra.mxu0 0.0
    %2491 = vmatprep.subr.mxu0 0.0
    %2492 = vmatpush1.msra.mxu0 0.0
    %2493 = vmatprep.subr.mxu0 0.0
    %2494 = vmatpush1.msra.mxu0 0.0
    %2495 = vmatprep.subr.mxu0 0.0
    %2496 = vmatpush1.msra.mxu0 0.0
    %2497 = vmatprep.subr.mxu0 0.0
    %2498 = vmatpush1.msra.mxu0 0.0
    %2499 = vmatprep.subr.mxu0 0.0
    %2500 = vmatpush1.msra.mxu0 0.0
    %2501 = vmatprep.subr.mxu0 0.0
    %2502 = vmatpush1.msra.mxu0 0.0
    %2503 = vmatprep.subr.mxu0 0.0
    %2504 = vmatpush1.msra.mxu0 0.0
    %2505 = vmatprep.subr.mxu0 0.0
    %2506 = vmatpush1.msra.mxu0 0.0
    %2507 = vmatprep.subr.mxu0 0.0
    %2508 = vmatpush1.msra.mxu0 0.0
    %2509 = vmatprep.subr.mxu0 0.0
    %2510 = vmatpush1.msra.mxu0 0.0
    %2511 = vmatprep.subr.mxu0 0.0
    %2512 = vmatpush1.msra.mxu0 0.0
    %2513 = vmatprep.subr.mxu0 0.0
    %2514 = vmatpush1.msra.mxu0 0.0
    %2515 = vmatprep.subr.mxu0 0.0
    %2516 = vmatpush1.msra.mxu0 0.0
    %2517 = vmatprep.subr.mxu0 0.0
    %2518 = vmatpush1.msra.mxu0 0.0
    %2519 = vmatprep.subr.mxu0 0.0
    %2520 = vmatpush1.msra.mxu0 0.0
    %2521 = vmatprep.subr.mxu0 0.0
    %2522 = vmatpush1.msra.mxu0 0.0
    %2523 = vmatprep.subr.mxu0 0.0
    %2524 = vmatpush1.msra.mxu0 0.0
    %2525 = vmatprep.subr.mxu0 0.0
    %2526 = vmatpush1.msra.mxu0 0.0
    %2527 = vmatprep.subr.mxu0 0.0
    %2528 = vmatpush1.msra.mxu0 0.0
    %2529 = vmatprep.subr.mxu0 0.0
    %2530 = vmatpush1.msra.mxu0 0.0
    %2531 = vmatprep.subr.mxu0 0.0
    %2532 = vmatpush1.msra.mxu0 0.0
    %2533 = vmatprep.subr.mxu0 0.0
    %2534 = vmatpush1.msra.mxu0 0.0
    %2535 = vmatprep.mubr.f32.mxu0 0.0
    %2536 = vmatmul.mubr.f32.gmra.mrb[0].mxu0 %v2469
    %v2537 = vpop.f32.mrb[0].mxu0
    %v2538 = vadd.f32 %v2129, %v2537
    %v2539 = vpop.f32.mrb[0].mxu0
    %2540 = vdwg.mxu0
    %v2543 = vunpack.c.l.s4 1966171168
    %v2544 = vunpack.c.0.s8 %v2543
    %v2545 = vlaneseq
    %v2546 = vshrl.u32 %v2545, 7
    %v2547 = vsub.s32 %v2544, %v2546
    %v2548 = vrot.slane %v2538, %v2547
    %v2549 = vcombine.high %v2548, %v2548
    %v2551 = vunpack.c.l.s4 1966171168
    %v2552 = vunpack.c.0.s8 %v2551
    %v2553 = vlaneseq
    %v2554 = vshrl.u32 %v2553, 7
    %v2555 = vsub.s32 %v2552, %v2554
    %v2556 = vrot.slane %v2548, %v2555
    %v2558 = vunpack.c.l.s4 1966171168
    %v2559 = vunpack.c.0.s8 %v2558
    %v2560 = vlaneseq
    %v2561 = vshrl.u32 %v2560, 7
    %v2562 = vsub.s32 %v2559, %v2561
    %v2563 = vrot.slane %v2549, %v2562
    %2566 = vst.msk [vmem:[%s2 + $0x1] sm:$0x1] %vm2230, %v2556
    %2567 = vst.msk [vmem:[%s2 + $0x9] sm:$0x1] %vm2230, %v2563
    %v2568 = vld [vmem:[%s1784] sm:$0xff]
    %v2569 = vld [vmem:[%s1784 + $0x8] sm:$0xff]
    %v2570 = vld [vmem:[%s1784 + $0x10] sm:$0xff]
    %v2571 = vld [vmem:[%s1784 + $0x18] sm:$0xff]
    %v2572 = vld [vmem:[%s1784 + $0x20] sm:$0xff]
    %v2573 = vld [vmem:[%s1784 + $0x28] sm:$0xff]
    %v2574 = vld [vmem:[%s1784 + $0x30] sm:$0xff]
    %v2575 = vld [vmem:[%s1784 + $0x38] sm:$0xff]
    %v2576 = vld [vmem:[%s1784 + $0x40] sm:$0x1]
    %2578 = vrot.lane.b32.xlu0 %v2350, 64
    %v2579 = vpop.permute.xlu0 %2578
    %2581 = vrot.lane.b32.xlu0 %v1023, 96
    %v2582 = vpop.permute.xlu0 %2581
    %v2584 = vsel %vm41, %v2579, %v2582
    %v2585 = vlaneseq
    %v2586 = vshrl.u32 %v2585, 7
    %v2587 = vsub.s32 0, %v2586
    %v2588 = vrot.slane %v2576, %v2587
    %v2590 = vsel %vm278, %v2584, 0
    %2592 = vmatprep.subr.mxu0 0.0
    %2593 = vmatpush1.msra.mxu0 %v2568
    %2594 = vmatprep.subr.mxu0 0.0
    %2595 = vmatpush1.msra.mxu0 %v2569
    %2596 = vmatprep.subr.mxu0 0.0
    %2597 = vmatpush1.msra.mxu0 %v2570
    %2598 = vmatprep.subr.mxu0 0.0
    %2599 = vmatpush1.msra.mxu0 %v2571
    %2600 = vmatprep.subr.mxu0 0.0
    %2601 = vmatpush1.msra.mxu0 %v2572
    %2602 = vmatprep.subr.mxu0 0.0
    %2603 = vmatpush1.msra.mxu0 %v2573
    %2604 = vmatprep.subr.mxu0 0.0
    %2605 = vmatpush1.msra.mxu0 %v2574
    %2606 = vmatprep.subr.mxu0 0.0
    %2607 = vmatpush1.msra.mxu0 %v2575
    %2608 = vmatprep.subr.mxu0 0.0
    %2609 = vmatpush1.msra.mxu0 0.0
    %2610 = vmatprep.subr.mxu0 0.0
    %2611 = vmatpush1.msra.mxu0 0.0
    %2612 = vmatprep.subr.mxu0 0.0
    %2613 = vmatpush1.msra.mxu0 0.0
    %2614 = vmatprep.subr.mxu0 0.0
    %2615 = vmatpush1.msra.mxu0 0.0
    %2616 = vmatprep.subr.mxu0 0.0
    %2617 = vmatpush1.msra.mxu0 0.0
    %2618 = vmatprep.subr.mxu0 0.0
    %2619 = vmatpush1.msra.mxu0 0.0
    %2620 = vmatprep.subr.mxu0 0.0
    %2621 = vmatpush1.msra.mxu0 0.0
    %2622 = vmatprep.subr.mxu0 0.0
    %2623 = vmatpush1.msra.mxu0 0.0
    %2624 = vmatprep.subr.mxu0 0.0
    %2625 = vmatpush1.msra.mxu0 0.0
    %2626 = vmatprep.subr.mxu0 0.0
    %2627 = vmatpush1.msra.mxu0 0.0
    %2628 = vmatprep.subr.mxu0 0.0
    %2629 = vmatpush1.msra.mxu0 0.0
    %2630 = vmatprep.subr.mxu0 0.0
    %2631 = vmatpush1.msra.mxu0 0.0
    %2632 = vmatprep.subr.mxu0 0.0
    %2633 = vmatpush1.msra.mxu0 0.0
    %2634 = vmatprep.subr.mxu0 0.0
    %2635 = vmatpush1.msra.mxu0 0.0
    %2636 = vmatprep.subr.mxu0 0.0
    %2637 = vmatpush1.msra.mxu0 0.0
    %2638 = vmatprep.subr.mxu0 0.0
    %2639 = vmatpush1.msra.mxu0 0.0
    %2640 = vmatprep.subr.mxu0 0.0
    %2641 = vmatpush1.msra.mxu0 0.0
    %2642 = vmatprep.subr.mxu0 0.0
    %2643 = vmatpush1.msra.mxu0 0.0
    %2644 = vmatprep.subr.mxu0 0.0
    %2645 = vmatpush1.msra.mxu0 0.0
    %2646 = vmatprep.subr.mxu0 0.0
    %2647 = vmatpush1.msra.mxu0 0.0
    %2648 = vmatprep.subr.mxu0 0.0
    %2649 = vmatpush1.msra.mxu0 0.0
    %2650 = vmatprep.subr.mxu0 0.0
    %2651 = vmatpush1.msra.mxu0 0.0
    %2652 = vmatprep.subr.mxu0 0.0
    %2653 = vmatpush1.msra.mxu0 0.0
    %2654 = vmatprep.subr.mxu0 0.0
    %2655 = vmatpush1.msra.mxu0 0.0
    %2656 = vmatprep.mubr.f32.mxu0 0.0
    %2657 = vmatmul.mubr.f32.gmra.mrb[0].mxu0 %v2590
    %v2658 = vpop.f32.mrb[0].mxu0
    %v2659 = vadd.f32 %v2588, %v2658
    %v2660 = vpop.f32.mrb[0].mxu0
    %2661 = vdwg.mxu0
    %v2662 = vxor.u32 %v2659, 2147483648
    %v2663 = vmul.f32 %v2662, 1.442695
    %v2664 = vpow.pop %v2663
    %v2665 = vadd.f32 %v2664, 1.0
    %v2666 = vrcp.pop %v2665
    %v2667 = vmul.f32 1.0, %v2666
    %v2668 = vtanh.pop %v2659
    %v2669 = vmul.f32 %v2667, %v2344
    %2671 = vrot.lane.b32.xlu0 %v2668, 32
    %v2672 = vpop.permute.xlu0 %2671
    %v2674 = vmul.f32 %v2667, %v2672
    %2676 = vrot.lane.b32.xlu0 %v2674, 32
    %v2677 = vpop.permute.xlu0 %2676
    %v2679 = vadd.f32 %v2669, %v2677
    %v2680 = vtanh.pop %v2679
    %2682 = vrot.lane.b32.xlu0 %v2680, 32
    %v2683 = vpop.permute.xlu0 %2682
    %v2685 = vmul.f32 %v2667, %v2683
    %v2686 = vld [vmem:[%s2007] sm:$0xff]
    %v2687 = vld [vmem:[%s2007 + $0x8] sm:$0xff]
    %v2688 = vld [vmem:[%s2007 + $0x10] sm:$0xff]
    %v2689 = vld [vmem:[%s2007 + $0x18] sm:$0xff]
    %v2690 = vld [vmem:[%s2007 + $0x20] sm:$0xff]
    %v2691 = vld [vmem:[%s2007 + $0x28] sm:$0xff]
    %v2692 = vld [vmem:[%s2007 + $0x30] sm:$0xff]
    %v2693 = vld [vmem:[%s2007 + $0x38] sm:$0xff]
    %v2694 = vld [vmem:[%s2007 + $0x40] sm:$0x1]
    %2696 = vrot.lane.b32.xlu0 %v2350, 96
    %v2697 = vpop.permute.xlu0 %2696
    %v2699 = vsel %vm41, %v2468, %v2697
    %v2700 = vlaneseq
    %v2701 = vshrl.u32 %v2700, 7
    %v2702 = vsub.s32 0, %v2701
    %v2703 = vrot.slane %v2694, %v2702
    %v2705 = vsel %vm278, %v2699, 0
    %2707 = vmatprep.subr.mxu0 0.0
    %2708 = vmatpush1.msra.mxu0 %v2686
    %2709 = vmatprep.subr.mxu0 0.0
    %2710 = vmatpush1.msra.mxu0 %v2687
    %2711 = vmatprep.subr.mxu0 0.0
    %2712 = vmatpush1.msra.mxu0 %v2688
    %2713 = vmatprep.subr.mxu0 0.0
    %2714 = vmatpush1.msra.mxu0 %v2689
    %2715 = vmatprep.subr.mxu0 0.0
    %2716 = vmatpush1.msra.mxu0 %v2690
    %2717 = vmatprep.subr.mxu0 0.0
    %2718 = vmatpush1.msra.mxu0 %v2691
    %2719 = vmatprep.subr.mxu0 0.0
    %2720 = vmatpush1.msra.mxu0 %v2692
    %2721 = vmatprep.subr.mxu0 0.0
    %2722 = vmatpush1.msra.mxu0 %v2693
    %2723 = vmatprep.subr.mxu0 0.0
    %2724 = vmatpush1.msra.mxu0 0.0
    %2725 = vmatprep.subr.mxu0 0.0
    %2726 = vmatpush1.msra.mxu0 0.0
    %2727 = vmatprep.subr.mxu0 0.0
    %2728 = vmatpush1.msra.mxu0 0.0
    %2729 = vmatprep.subr.mxu0 0.0
    %2730 = vmatpush1.msra.mxu0 0.0
    %2731 = vmatprep.subr.mxu0 0.0
    %2732 = vmatpush1.msra.mxu0 0.0
    %2733 = vmatprep.subr.mxu0 0.0
    %2734 = vmatpush1.msra.mxu0 0.0
    %2735 = vmatprep.subr.mxu0 0.0
    %2736 = vmatpush1.msra.mxu0 0.0
    %2737 = vmatprep.subr.mxu0 0.0
    %2738 = vmatpush1.msra.mxu0 0.0
    %2739 = vmatprep.subr.mxu0 0.0
    %2740 = vmatpush1.msra.mxu0 0.0
    %2741 = vmatprep.subr.mxu0 0.0
    %2742 = vmatpush1.msra.mxu0 0.0
    %2743 = vmatprep.subr.mxu0 0.0
    %2744 = vmatpush1.msra.mxu0 0.0
    %2745 = vmatprep.subr.mxu0 0.0
    %2746 = vmatpush1.msra.mxu0 0.0
    %2747 = vmatprep.subr.mxu0 0.0
    %2748 = vmatpush1.msra.mxu0 0.0
    %2749 = vmatprep.subr.mxu0 0.0
    %2750 = vmatpush1.msra.mxu0 0.0
    %2751 = vmatprep.subr.mxu0 0.0
    %2752 = vmatpush1.msra.mxu0 0.0
    %2753 = vmatprep.subr.mxu0 0.0
    %2754 = vmatpush1.msra.mxu0 0.0
    %2755 = vmatprep.subr.mxu0 0.0
    %2756 = vmatpush1.msra.mxu0 0.0
    %2757 = vmatprep.subr.mxu0 0.0
    %2758 = vmatpush1.msra.mxu0 0.0
    %2759 = vmatprep.subr.mxu0 0.0
    %2760 = vmatpush1.msra.mxu0 0.0
    %2761 = vmatprep.subr.mxu0 0.0
    %2762 = vmatpush1.msra.mxu0 0.0
    %2763 = vmatprep.subr.mxu0 0.0
    %2764 = vmatpush1.msra.mxu0 0.0
    %2765 = vmatprep.subr.mxu0 0.0
    %2766 = vmatpush1.msra.mxu0 0.0
    %2767 = vmatprep.subr.mxu0 0.0
    %2768 = vmatpush1.msra.mxu0 0.0
    %2769 = vmatprep.subr.mxu0 0.0
    %2770 = vmatpush1.msra.mxu0 0.0
    %2771 = vmatprep.mubr.f32.mxu0 0.0
    %2772 = vmatmul.mubr.f32.gmra.mrb[0].mxu0 %v2705
    %v2773 = vpop.f32.mrb[0].mxu0
    %v2774 = vadd.f32 %v2703, %v2773
    %v2775 = vpop.f32.mrb[0].mxu0
    %2776 = vdwg.mxu0
    %v2777 = vxor.u32 %v2774, 2147483648
    %v2778 = vmul.f32 %v2777, 1.442695
    %v2779 = vpow.pop %v2778
    %v2780 = vadd.f32 %v2779, 1.0
    %v2781 = vrcp.pop %v2780
    %v2782 = vmul.f32 1.0, %v2781
    %v2783 = vtanh.pop %v2774
    %v2784 = vmul.f32 %v2782, %v2459
    %2786 = vrot.lane.b32.xlu0 %v2783, 32
    %v2787 = vpop.permute.xlu0 %2786
    %v2789 = vmul.f32 %v2782, %v2787
    %2791 = vrot.lane.b32.xlu0 %v2789, 32
    %v2792 = vpop.permute.xlu0 %2791
    %v2794 = vadd.f32 %v2784, %v2792
    %v2795 = vtanh.pop %v2794
    %2797 = vrot.lane.b32.xlu0 %v2795, 32
    %v2798 = vpop.permute.xlu0 %2797
    %v2800 = vmul.f32 %v2782, %v2798
    %2802 = vrot.lane.b32.xlu0 %v2800, 64
    %v2803 = vpop.permute.xlu0 %2802
    %v2804 = vsel %vm41, %v2803, 0
    %2806 = vmatprep.subr.mxu0 0.0
    %2807 = vmatpush1.msra.mxu0 %v1779
    %2808 = vmatprep.subr.mxu0 0.0
    %2809 = vmatpush1.msra.mxu0 %v1780
    %2810 = vmatprep.subr.mxu0 0.0
    %2811 = vmatpush1.msra.mxu0 %v1781
    %2812 = vmatprep.subr.mxu0 0.0
    %2813 = vmatpush1.msra.mxu0 %v1782
    %2814 = vmatprep.subr.mxu0 0.0
    %2815 = vmatpush1.msra.mxu0 0.0
    %2816 = vmatprep.subr.mxu0 0.0
    %2817 = vmatpush1.msra.mxu0 0.0
    %2818 = vmatprep.subr.mxu0 0.0
    %2819 = vmatpush1.msra.mxu0 0.0
    %2820 = vmatprep.subr.mxu0 0.0
    %2821 = vmatpush1.msra.mxu0 0.0
    %2822 = vmatprep.subr.mxu0 0.0
    %2823 = vmatpush1.msra.mxu0 0.0
    %2824 = vmatprep.subr.mxu0 0.0
    %2825 = vmatpush1.msra.mxu0 0.0
    %2826 = vmatprep.subr.mxu0 0.0
    %2827 = vmatpush1.msra.mxu0 0.0
    %2828 = vmatprep.subr.mxu0 0.0
    %2829 = vmatpush1.msra.mxu0 0.0
    %2830 = vmatprep.subr.mxu0 0.0
    %2831 = vmatpush1.msra.mxu0 0.0
    %2832 = vmatprep.subr.mxu0 0.0
    %2833 = vmatpush1.msra.mxu0 0.0
    %2834 = vmatprep.subr.mxu0 0.0
    %2835 = vmatpush1.msra.mxu0 0.0
    %2836 = vmatprep.subr.mxu0 0.0
    %2837 = vmatpush1.msra.mxu0 0.0
    %2838 = vmatprep.subr.mxu0 0.0
    %2839 = vmatpush1.msra.mxu0 0.0
    %2840 = vmatprep.subr.mxu0 0.0
    %2841 = vmatpush1.msra.mxu0 0.0
    %2842 = vmatprep.subr.mxu0 0.0
    %2843 = vmatpush1.msra.mxu0 0.0
    %2844 = vmatprep.subr.mxu0 0.0
    %2845 = vmatpush1.msra.mxu0 0.0
    %2846 = vmatprep.subr.mxu0 0.0
    %2847 = vmatpush1.msra.mxu0 0.0
    %2848 = vmatprep.subr.mxu0 0.0
    %2849 = vmatpush1.msra.mxu0 0.0
    %2850 = vmatprep.subr.mxu0 0.0
    %2851 = vmatpush1.msra.mxu0 0.0
    %2852 = vmatprep.subr.mxu0 0.0
    %2853 = vmatpush1.msra.mxu0 0.0
    %2854 = vmatprep.subr.mxu0 0.0
    %2855 = vmatpush1.msra.mxu0 0.0
    %2856 = vmatprep.subr.mxu0 0.0
    %2857 = vmatpush1.msra.mxu0 0.0
    %2858 = vmatprep.subr.mxu0 0.0
    %2859 = vmatpush1.msra.mxu0 0.0
    %2860 = vmatprep.subr.mxu0 0.0
    %2861 = vmatpush1.msra.mxu0 0.0
    %2862 = vmatprep.subr.mxu0 0.0
    %2863 = vmatpush1.msra.mxu0 0.0
    %2864 = vmatprep.subr.mxu0 0.0
    %2865 = vmatpush1.msra.mxu0 0.0
    %2866 = vmatprep.subr.mxu0 0.0
    %2867 = vmatpush1.msra.mxu0 0.0
    %2868 = vmatprep.subr.mxu0 0.0
    %2869 = vmatpush1.msra.mxu0 0.0
    %2870 = vmatprep.mubr.f32.mxu0 0.0
    %2871 = vmatmul.mubr.f32.gmra.mrb[0].mxu0 %v2804
    %v2872 = vpop.f32.mrb[0].mxu0
    %v2873 = vadd.f32 %v2129, %v2872
    %v2874 = vpop.f32.mrb[0].mxu0
    %2875 = vdwg.mxu0
    %v2878 = vunpack.c.l.s4 1966171168
    %v2879 = vunpack.c.0.s8 %v2878
    %v2880 = vlaneseq
    %v2881 = vshrl.u32 %v2880, 7
    %v2882 = vsub.s32 %v2879, %v2881
    %v2883 = vrot.slane %v2873, %v2882
    %v2884 = vcombine.high %v2883, %v2883
    %v2886 = vunpack.c.l.s4 1966171168
    %v2887 = vunpack.c.0.s8 %v2886
    %v2888 = vlaneseq
    %v2889 = vshrl.u32 %v2888, 7
    %v2890 = vsub.s32 %v2887, %v2889
    %v2891 = vrot.slane %v2883, %v2890
    %v2893 = vunpack.c.l.s4 1966171168
    %v2894 = vunpack.c.0.s8 %v2893
    %v2895 = vlaneseq
    %v2896 = vshrl.u32 %v2895, 7
    %v2897 = vsub.s32 %v2894, %v2896
    %v2898 = vrot.slane %v2884, %v2897
    %2901 = vst.msk [vmem:[%s2 + $0x2] sm:$0x1] %vm2230, %v2891
    %2902 = vst.msk [vmem:[%s2 + $0xa] sm:$0x1] %vm2230, %v2898
    %v2903 = vld [vmem:[%s1784] sm:$0xff]
    %v2904 = vld [vmem:[%s1784 + $0x8] sm:$0xff]
    %v2905 = vld [vmem:[%s1784 + $0x10] sm:$0xff]
    %v2906 = vld [vmem:[%s1784 + $0x18] sm:$0xff]
    %v2907 = vld [vmem:[%s1784 + $0x20] sm:$0xff]
    %v2908 = vld [vmem:[%s1784 + $0x28] sm:$0xff]
    %v2909 = vld [vmem:[%s1784 + $0x30] sm:$0xff]
    %v2910 = vld [vmem:[%s1784 + $0x38] sm:$0xff]
    %v2911 = vld [vmem:[%s1784 + $0x40] sm:$0x1]
    %2913 = vrot.lane.b32.xlu0 %v2685, 64
    %v2914 = vpop.permute.xlu0 %2913
    %2916 = vrot.lane.b32.xlu0 %v1239, 96
    %v2917 = vpop.permute.xlu0 %2916
    %v2919 = vsel %vm41, %v2914, %v2917
    %v2920 = vlaneseq
    %v2921 = vshrl.u32 %v2920, 7
    %v2922 = vsub.s32 0, %v2921
    %v2923 = vrot.slane %v2911, %v2922
    %v2925 = vsel %vm278, %v2919, 0
    %2927 = vmatprep.subr.mxu0 0.0
    %2928 = vmatpush1.msra.mxu0 %v2903
    %2929 = vmatprep.subr.mxu0 0.0
    %2930 = vmatpush1.msra.mxu0 %v2904
    %2931 = vmatprep.subr.mxu0 0.0
    %2932 = vmatpush1.msra.mxu0 %v2905
    %2933 = vmatprep.subr.mxu0 0.0
    %2934 = vmatpush1.msra.mxu0 %v2906
    %2935 = vmatprep.subr.mxu0 0.0
    %2936 = vmatpush1.msra.mxu0 %v2907
    %2937 = vmatprep.subr.mxu0 0.0
    %2938 = vmatpush1.msra.mxu0 %v2908
    %2939 = vmatprep.subr.mxu0 0.0
    %2940 = vmatpush1.msra.mxu0 %v2909
    %2941 = vmatprep.subr.mxu0 0.0
    %2942 = vmatpush1.msra.mxu0 %v2910
    %2943 = vmatprep.subr.mxu0 0.0
    %2944 = vmatpush1.msra.mxu0 0.0
    %2945 = vmatprep.subr.mxu0 0.0
    %2946 = vmatpush1.msra.mxu0 0.0
    %2947 = vmatprep.subr.mxu0 0.0
    %2948 = vmatpush1.msra.mxu0 0.0
    %2949 = vmatprep.subr.mxu0 0.0
    %2950 = vmatpush1.msra.mxu0 0.0
    %2951 = vmatprep.subr.mxu0 0.0
    %2952 = vmatpush1.msra.mxu0 0.0
    %2953 = vmatprep.subr.mxu0 0.0
    %2954 = vmatpush1.msra.mxu0 0.0
    %2955 = vmatprep.subr.mxu0 0.0
    %2956 = vmatpush1.msra.mxu0 0.0
    %2957 = vmatprep.subr.mxu0 0.0
    %2958 = vmatpush1.msra.mxu0 0.0
    %2959 = vmatprep.subr.mxu0 0.0
    %2960 = vmatpush1.msra.mxu0 0.0
    %2961 = vmatprep.subr.mxu0 0.0
    %2962 = vmatpush1.msra.mxu0 0.0
    %2963 = vmatprep.subr.mxu0 0.0
    %2964 = vmatpush1.msra.mxu0 0.0
    %2965 = vmatprep.subr.mxu0 0.0
    %2966 = vmatpush1.msra.mxu0 0.0
    %2967 = vmatprep.subr.mxu0 0.0
    %2968 = vmatpush1.msra.mxu0 0.0
    %2969 = vmatprep.subr.mxu0 0.0
    %2970 = vmatpush1.msra.mxu0 0.0
    %2971 = vmatprep.subr.mxu0 0.0
    %2972 = vmatpush1.msra.mxu0 0.0
    %2973 = vmatprep.subr.mxu0 0.0
    %2974 = vmatpush1.msra.mxu0 0.0
    %2975 = vmatprep.subr.mxu0 0.0
    %2976 = vmatpush1.msra.mxu0 0.0
    %2977 = vmatprep.subr.mxu0 0.0
    %2978 = vmatpush1.msra.mxu0 0.0
    %2979 = vmatprep.subr.mxu0 0.0
    %2980 = vmatpush1.msra.mxu0 0.0
    %2981 = vmatprep.subr.mxu0 0.0
    %2982 = vmatpush1.msra.mxu0 0.0
    %2983 = vmatprep.subr.mxu0 0.0
    %2984 = vmatpush1.msra.mxu0 0.0
    %2985 = vmatprep.subr.mxu0 0.0
    %2986 = vmatpush1.msra.mxu0 0.0
    %2987 = vmatprep.subr.mxu0 0.0
    %2988 = vmatpush1.msra.mxu0 0.0
    %2989 = vmatprep.subr.mxu0 0.0
    %2990 = vmatpush1.msra.mxu0 0.0
    %2991 = vmatprep.mubr.f32.mxu0 0.0
    %2992 = vmatmul.mubr.f32.gmra.mrb[0].mxu0 %v2925
    %v2993 = vpop.f32.mrb[0].mxu0
    %v2994 = vadd.f32 %v2923, %v2993
    %v2995 = vpop.f32.mrb[0].mxu0
    %2996 = vdwg.mxu0
    %v2997 = vxor.u32 %v2994, 2147483648
    %v2998 = vmul.f32 %v2997, 1.442695
    %v2999 = vpow.pop %v2998
    %v3000 = vadd.f32 %v2999, 1.0
    %v3001 = vrcp.pop %v3000
    %v3002 = vmul.f32 1.0, %v3001
    %v3003 = vtanh.pop %v2994
    %v3004 = vmul.f32 %v3002, %v2679
    %3006 = vrot.lane.b32.xlu0 %v3003, 32
    %v3007 = vpop.permute.xlu0 %3006
    %v3009 = vmul.f32 %v3002, %v3007
    %3011 = vrot.lane.b32.xlu0 %v3009, 32
    %v3012 = vpop.permute.xlu0 %3011
    %v3014 = vadd.f32 %v3004, %v3012
    %v3015 = vtanh.pop %v3014
    %3017 = vrot.lane.b32.xlu0 %v3015, 32
    %v3018 = vpop.permute.xlu0 %3017
    %v3020 = vmul.f32 %v3002, %v3018
    %v3021 = vld [vmem:[%s2007] sm:$0xff]
    %v3022 = vld [vmem:[%s2007 + $0x8] sm:$0xff]
    %v3023 = vld [vmem:[%s2007 + $0x10] sm:$0xff]
    %v3024 = vld [vmem:[%s2007 + $0x18] sm:$0xff]
    %v3025 = vld [vmem:[%s2007 + $0x20] sm:$0xff]
    %v3026 = vld [vmem:[%s2007 + $0x28] sm:$0xff]
    %v3027 = vld [vmem:[%s2007 + $0x30] sm:$0xff]
    %v3028 = vld [vmem:[%s2007 + $0x38] sm:$0xff]
    %v3029 = vld [vmem:[%s2007 + $0x40] sm:$0x1]
    %3031 = vrot.lane.b32.xlu0 %v2685, 96
    %v3032 = vpop.permute.xlu0 %3031
    %v3034 = vsel %vm41, %v2803, %v3032
    %v3035 = vlaneseq
    %v3036 = vshrl.u32 %v3035, 7
    %v3037 = vsub.s32 0, %v3036
    %v3038 = vrot.slane %v3029, %v3037
    %v3040 = vsel %vm278, %v3034, 0
    %3042 = vmatprep.subr.mxu0 0.0
    %3043 = vmatpush1.msra.mxu0 %v3021
    %3044 = vmatprep.subr.mxu0 0.0
    %3045 = vmatpush1.msra.mxu0 %v3022
    %3046 = vmatprep.subr.mxu0 0.0
    %3047 = vmatpush1.msra.mxu0 %v3023
    %3048 = vmatprep.subr.mxu0 0.0
    %3049 = vmatpush1.msra.mxu0 %v3024
    %3050 = vmatprep.subr.mxu0 0.0
    %3051 = vmatpush1.msra.mxu0 %v3025
    %3052 = vmatprep.subr.mxu0 0.0
    %3053 = vmatpush1.msra.mxu0 %v3026
    %3054 = vmatprep.subr.mxu0 0.0
    %3055 = vmatpush1.msra.mxu0 %v3027
    %3056 = vmatprep.subr.mxu0 0.0
    %3057 = vmatpush1.msra.mxu0 %v3028
    %3058 = vmatprep.subr.mxu0 0.0
    %3059 = vmatpush1.msra.mxu0 0.0
    %3060 = vmatprep.subr.mxu0 0.0
    %3061 = vmatpush1.msra.mxu0 0.0
    %3062 = vmatprep.subr.mxu0 0.0
    %3063 = vmatpush1.msra.mxu0 0.0
    %3064 = vmatprep.subr.mxu0 0.0
    %3065 = vmatpush1.msra.mxu0 0.0
    %3066 = vmatprep.subr.mxu0 0.0
    %3067 = vmatpush1.msra.mxu0 0.0
    %3068 = vmatprep.subr.mxu0 0.0
    %3069 = vmatpush1.msra.mxu0 0.0
    %3070 = vmatprep.subr.mxu0 0.0
    %3071 = vmatpush1.msra.mxu0 0.0
    %3072 = vmatprep.subr.mxu0 0.0
    %3073 = vmatpush1.msra.mxu0 0.0
    %3074 = vmatprep.subr.mxu0 0.0
    %3075 = vmatpush1.msra.mxu0 0.0
    %3076 = vmatprep.subr.mxu0 0.0
    %3077 = vmatpush1.msra.mxu0 0.0
    %3078 = vmatprep.subr.mxu0 0.0
    %3079 = vmatpush1.msra.mxu0 0.0
    %3080 = vmatprep.subr.mxu0 0.0
    %3081 = vmatpush1.msra.mxu0 0.0
    %3082 = vmatprep.subr.mxu0 0.0
    %3083 = vmatpush1.msra.mxu0 0.0
    %3084 = vmatprep.subr.mxu0 0.0
    %3085 = vmatpush1.msra.mxu0 0.0
    %3086 = vmatprep.subr.mxu0 0.0
    %3087 = vmatpush1.msra.mxu0 0.0
    %3088 = vmatprep.subr.mxu0 0.0
    %3089 = vmatpush1.msra.mxu0 0.0
    %3090 = vmatprep.subr.mxu0 0.0
    %3091 = vmatpush1.msra.mxu0 0.0
    %3092 = vmatprep.subr.mxu0 0.0
    %3093 = vmatpush1.msra.mxu0 0.0
    %3094 = vmatprep.subr.mxu0 0.0
    %3095 = vmatpush1.msra.mxu0 0.0
    %3096 = vmatprep.subr.mxu0 0.0
    %3097 = vmatpush1.msra.mxu0 0.0
    %3098 = vmatprep.subr.mxu0 0.0
    %3099 = vmatpush1.msra.mxu0 0.0
    %3100 = vmatprep.subr.mxu0 0.0
    %3101 = vmatpush1.msra.mxu0 0.0
    %3102 = vmatprep.subr.mxu0 0.0
    %3103 = vmatpush1.msra.mxu0 0.0
    %3104 = vmatprep.subr.mxu0 0.0
    %3105 = vmatpush1.msra.mxu0 0.0
    %3106 = vmatprep.mubr.f32.mxu0 0.0
    %3107 = vmatmul.mubr.f32.gmra.mrb[0].mxu0 %v3040
    %v3108 = vpop.f32.mrb[0].mxu0
    %v3109 = vadd.f32 %v3038, %v3108
    %v3110 = vpop.f32.mrb[0].mxu0
    %3111 = vdwg.mxu0
    %v3112 = vxor.u32 %v3109, 2147483648
    %v3113 = vmul.f32 %v3112, 1.442695
    %v3114 = vpow.pop %v3113
    %v3115 = vadd.f32 %v3114, 1.0
    %v3116 = vrcp.pop %v3115
    %v3117 = vmul.f32 1.0, %v3116
    %v3118 = vtanh.pop %v3109
    %v3119 = vmul.f32 %v3117, %v2794
    %3121 = vrot.lane.b32.xlu0 %v3118, 32
    %v3122 = vpop.permute.xlu0 %3121
    %v3124 = vmul.f32 %v3117, %v3122
    %3126 = vrot.lane.b32.xlu0 %v3124, 32
    %v3127 = vpop.permute.xlu0 %3126
    %v3129 = vadd.f32 %v3119, %v3127
    %v3130 = vtanh.pop %v3129
    %3132 = vrot.lane.b32.xlu0 %v3130, 32
    %v3133 = vpop.permute.xlu0 %3132
    %v3135 = vmul.f32 %v3117, %v3133
    %3137 = vrot.lane.b32.xlu0 %v3135, 64
    %v3138 = vpop.permute.xlu0 %3137
    %v3139 = vsel %vm41, %v3138, 0
    %3141 = vmatprep.subr.mxu0 0.0
    %3142 = vmatpush1.msra.mxu0 %v1779
    %3143 = vmatprep.subr.mxu0 0.0
    %3144 = vmatpush1.msra.mxu0 %v1780
    %3145 = vmatprep.subr.mxu0 0.0
    %3146 = vmatpush1.msra.mxu0 %v1781
    %3147 = vmatprep.subr.mxu0 0.0
    %3148 = vmatpush1.msra.mxu0 %v1782
    %3149 = vmatprep.subr.mxu0 0.0
    %3150 = vmatpush1.msra.mxu0 0.0
    %3151 = vmatprep.subr.mxu0 0.0
    %3152 = vmatpush1.msra.mxu0 0.0
    %3153 = vmatprep.subr.mxu0 0.0
    %3154 = vmatpush1.msra.mxu0 0.0
    %3155 = vmatprep.subr.mxu0 0.0
    %3156 = vmatpush1.msra.mxu0 0.0
    %3157 = vmatprep.subr.mxu0 0.0
    %3158 = vmatpush1.msra.mxu0 0.0
    %3159 = vmatprep.subr.mxu0 0.0
    %3160 = vmatpush1.msra.mxu0 0.0
    %3161 = vmatprep.subr.mxu0 0.0
    %3162 = vmatpush1.msra.mxu0 0.0
    %3163 = vmatprep.subr.mxu0 0.0
    %3164 = vmatpush1.msra.mxu0 0.0
    %3165 = vmatprep.subr.mxu0 0.0
    %3166 = vmatpush1.msra.mxu0 0.0
    %3167 = vmatprep.subr.mxu0 0.0
    %3168 = vmatpush1.msra.mxu0 0.0
    %3169 = vmatprep.subr.mxu0 0.0
    %3170 = vmatpush1.msra.mxu0 0.0
    %3171 = vmatprep.subr.mxu0 0.0
    %3172 = vmatpush1.msra.mxu0 0.0
    %3173 = vmatprep.subr.mxu0 0.0
    %3174 = vmatpush1.msra.mxu0 0.0
    %3175 = vmatprep.subr.mxu0 0.0
    %3176 = vmatpush1.msra.mxu0 0.0
    %3177 = vmatprep.subr.mxu0 0.0
    %3178 = vmatpush1.msra.mxu0 0.0
    %3179 = vmatprep.subr.mxu0 0.0
    %3180 = vmatpush1.msra.mxu0 0.0
    %3181 = vmatprep.subr.mxu0 0.0
    %3182 = vmatpush1.msra.mxu0 0.0
    %3183 = vmatprep.subr.mxu0 0.0
    %3184 = vmatpush1.msra.mxu0 0.0
    %3185 = vmatprep.subr.mxu0 0.0
    %3186 = vmatpush1.msra.mxu0 0.0
    %3187 = vmatprep.subr.mxu0 0.0
    %3188 = vmatpush1.msra.mxu0 0.0
    %3189 = vmatprep.subr.mxu0 0.0
    %3190 = vmatpush1.msra.mxu0 0.0
    %3191 = vmatprep.subr.mxu0 0.0
    %3192 = vmatpush1.msra.mxu0 0.0
    %3193 = vmatprep.subr.mxu0 0.0
    %3194 = vmatpush1.msra.mxu0 0.0
    %3195 = vmatprep.subr.mxu0 0.0
    %3196 = vmatpush1.msra.mxu0 0.0
    %3197 = vmatprep.subr.mxu0 0.0
    %3198 = vmatpush1.msra.mxu0 0.0
    %3199 = vmatprep.subr.mxu0 0.0
    %3200 = vmatpush1.msra.mxu0 0.0
    %3201 = vmatprep.subr.mxu0 0.0
    %3202 = vmatpush1.msra.mxu0 0.0
    %3203 = vmatprep.subr.mxu0 0.0
    %3204 = vmatpush1.msra.mxu0 0.0
    %3205 = vmatprep.mubr.f32.mxu0 0.0
    %3206 = vmatmul.mubr.f32.gmra.mrb[0].mxu0 %v3139
    %v3207 = vpop.f32.mrb[0].mxu0
    %v3208 = vadd.f32 %v2129, %v3207
    %v3209 = vpop.f32.mrb[0].mxu0
    %3210 = vdwg.mxu0
    %v3213 = vunpack.c.l.s4 1966171168
    %v3214 = vunpack.c.0.s8 %v3213
    %v3215 = vlaneseq
    %v3216 = vshrl.u32 %v3215, 7
    %v3217 = vsub.s32 %v3214, %v3216
    %v3218 = vrot.slane %v3208, %v3217
    %v3219 = vcombine.high %v3218, %v3218
    %v3221 = vunpack.c.l.s4 1966171168
    %v3222 = vunpack.c.0.s8 %v3221
    %v3223 = vlaneseq
    %v3224 = vshrl.u32 %v3223, 7
    %v3225 = vsub.s32 %v3222, %v3224
    %v3226 = vrot.slane %v3218, %v3225
    %v3228 = vunpack.c.l.s4 1966171168
    %v3229 = vunpack.c.0.s8 %v3228
    %v3230 = vlaneseq
    %v3231 = vshrl.u32 %v3230, 7
    %v3232 = vsub.s32 %v3229, %v3231
    %v3233 = vrot.slane %v3219, %v3232
    %3236 = vst.msk [vmem:[%s2 + $0x3] sm:$0x1] %vm2230, %v3226
    %3237 = vst.msk [vmem:[%s2 + $0xb] sm:$0x1] %vm2230, %v3233
    %v3238 = vld [vmem:[%s1784] sm:$0xff]
    %v3239 = vld [vmem:[%s1784 + $0x8] sm:$0xff]
    %v3240 = vld [vmem:[%s1784 + $0x10] sm:$0xff]
    %v3241 = vld [vmem:[%s1784 + $0x18] sm:$0xff]
    %v3242 = vld [vmem:[%s1784 + $0x20] sm:$0xff]
    %v3243 = vld [vmem:[%s1784 + $0x28] sm:$0xff]
    %v3244 = vld [vmem:[%s1784 + $0x30] sm:$0xff]
    %v3245 = vld [vmem:[%s1784 + $0x38] sm:$0xff]
    %v3246 = vld [vmem:[%s1784 + $0x40] sm:$0x1]
    %3248 = vrot.lane.b32.xlu0 %v3020, 64
    %v3249 = vpop.permute.xlu0 %3248
    %3251 = vrot.lane.b32.xlu0 %v1455, 96
    %v3252 = vpop.permute.xlu0 %3251
    %v3254 = vsel %vm41, %v3249, %v3252
    %v3255 = vlaneseq
    %v3256 = vshrl.u32 %v3255, 7
    %v3257 = vsub.s32 0, %v3256
    %v3258 = vrot.slane %v3246, %v3257
    %v3260 = vsel %vm278, %v3254, 0
    %3262 = vmatprep.subr.mxu0 0.0
    %3263 = vmatpush1.msra.mxu0 %v3238
    %3264 = vmatprep.subr.mxu0 0.0
    %3265 = vmatpush1.msra.mxu0 %v3239
    %3266 = vmatprep.subr.mxu0 0.0
    %3267 = vmatpush1.msra.mxu0 %v3240
    %3268 = vmatprep.subr.mxu0 0.0
    %3269 = vmatpush1.msra.mxu0 %v3241
    %3270 = vmatprep.subr.mxu0 0.0
    %3271 = vmatpush1.msra.mxu0 %v3242
    %3272 = vmatprep.subr.mxu0 0.0
    %3273 = vmatpush1.msra.mxu0 %v3243
    %3274 = vmatprep.subr.mxu0 0.0
    %3275 = vmatpush1.msra.mxu0 %v3244
    %3276 = vmatprep.subr.mxu0 0.0
    %3277 = vmatpush1.msra.mxu0 %v3245
    %3278 = vmatprep.subr.mxu0 0.0
    %3279 = vmatpush1.msra.mxu0 0.0
    %3280 = vmatprep.subr.mxu0 0.0
    %3281 = vmatpush1.msra.mxu0 0.0
    %3282 = vmatprep.subr.mxu0 0.0
    %3283 = vmatpush1.msra.mxu0 0.0
    %3284 = vmatprep.subr.mxu0 0.0
    %3285 = vmatpush1.msra.mxu0 0.0
    %3286 = vmatprep.subr.mxu0 0.0
    %3287 = vmatpush1.msra.mxu0 0.0
    %3288 = vmatprep.subr.mxu0 0.0
    %3289 = vmatpush1.msra.mxu0 0.0
    %3290 = vmatprep.subr.mxu0 0.0
    %3291 = vmatpush1.msra.mxu0 0.0
    %3292 = vmatprep.subr.mxu0 0.0
    %3293 = vmatpush1.msra.mxu0 0.0
    %3294 = vmatprep.subr.mxu0 0.0
    %3295 = vmatpush1.msra.mxu0 0.0
    %3296 = vmatprep.subr.mxu0 0.0
    %3297 = vmatpush1.msra.mxu0 0.0
    %3298 = vmatprep.subr.mxu0 0.0
    %3299 = vmatpush1.msra.mxu0 0.0
    %3300 = vmatprep.subr.mxu0 0.0
    %3301 = vmatpush1.msra.mxu0 0.0
    %3302 = vmatprep.subr.mxu0 0.0
    %3303 = vmatpush1.msra.mxu0 0.0
    %3304 = vmatprep.subr.mxu0 0.0
    %3305 = vmatpush1.msra.mxu0 0.0
    %3306 = vmatprep.subr.mxu0 0.0
    %3307 = vmatpush1.msra.mxu0 0.0
    %3308 = vmatprep.subr.mxu0 0.0
    %3309 = vmatpush1.msra.mxu0 0.0
    %3310 = vmatprep.subr.mxu0 0.0
    %3311 = vmatpush1.msra.mxu0 0.0
    %3312 = vmatprep.subr.mxu0 0.0
    %3313 = vmatpush1.msra.mxu0 0.0
    %3314 = vmatprep.subr.mxu0 0.0
    %3315 = vmatpush1.msra.mxu0 0.0
    %3316 = vmatprep.subr.mxu0 0.0
    %3317 = vmatpush1.msra.mxu0 0.0
    %3318 = vmatprep.subr.mxu0 0.0
    %3319 = vmatpush1.msra.mxu0 0.0
    %3320 = vmatprep.subr.mxu0 0.0
    %3321 = vmatpush1.msra.mxu0 0.0
    %3322 = vmatprep.subr.mxu0 0.0
    %3323 = vmatpush1.msra.mxu0 0.0
    %3324 = vmatprep.subr.mxu0 0.0
    %3325 = vmatpush1.msra.mxu0 0.0
    %3326 = vmatprep.mubr.f32.mxu0 0.0
    %3327 = vmatmul.mubr.f32.gmra.mrb[0].mxu0 %v3260
    %v3328 = vpop.f32.mrb[0].mxu0
    %v3329 = vadd.f32 %v3258, %v3328
    %v3330 = vpop.f32.mrb[0].mxu0
    %3331 = vdwg.mxu0
    %v3332 = vxor.u32 %v3329, 2147483648
    %v3333 = vmul.f32 %v3332, 1.442695
    %v3334 = vpow.pop %v3333
    %v3335 = vadd.f32 %v3334, 1.0
    %v3336 = vrcp.pop %v3335
    %v3337 = vmul.f32 1.0, %v3336
    %v3338 = vtanh.pop %v3329
    %v3339 = vmul.f32 %v3337, %v3014
    %3341 = vrot.lane.b32.xlu0 %v3338, 32
    %v3342 = vpop.permute.xlu0 %3341
    %v3344 = vmul.f32 %v3337, %v3342
    %3346 = vrot.lane.b32.xlu0 %v3344, 32
    %v3347 = vpop.permute.xlu0 %3346
    %v3349 = vadd.f32 %v3339, %v3347
    %v3350 = vtanh.pop %v3349
    %3352 = vrot.lane.b32.xlu0 %v3350, 32
    %v3353 = vpop.permute.xlu0 %3352
    %v3355 = vmul.f32 %v3337, %v3353
    %v3356 = vld [vmem:[%s2007] sm:$0xff]
    %v3357 = vld [vmem:[%s2007 + $0x8] sm:$0xff]
    %v3358 = vld [vmem:[%s2007 + $0x10] sm:$0xff]
    %v3359 = vld [vmem:[%s2007 + $0x18] sm:$0xff]
    %v3360 = vld [vmem:[%s2007 + $0x20] sm:$0xff]
    %v3361 = vld [vmem:[%s2007 + $0x28] sm:$0xff]
    %v3362 = vld [vmem:[%s2007 + $0x30] sm:$0xff]
    %v3363 = vld [vmem:[%s2007 + $0x38] sm:$0xff]
    %v3364 = vld [vmem:[%s2007 + $0x40] sm:$0x1]
    %3366 = vrot.lane.b32.xlu0 %v3020, 96
    %v3367 = vpop.permute.xlu0 %3366
    %v3369 = vsel %vm41, %v3138, %v3367
    %v3370 = vlaneseq
    %v3371 = vshrl.u32 %v3370, 7
    %v3372 = vsub.s32 0, %v3371
    %v3373 = vrot.slane %v3364, %v3372
    %v3375 = vsel %vm278, %v3369, 0
    %3377 = vmatprep.subr.mxu0 0.0
    %3378 = vmatpush1.msra.mxu0 %v3356
    %3379 = vmatprep.subr.mxu0 0.0
    %3380 = vmatpush1.msra.mxu0 %v3357
    %3381 = vmatprep.subr.mxu0 0.0
    %3382 = vmatpush1.msra.mxu0 %v3358
    %3383 = vmatprep.subr.mxu0 0.0
    %3384 = vmatpush1.msra.mxu0 %v3359
    %3385 = vmatprep.subr.mxu0 0.0
    %3386 = vmatpush1.msra.mxu0 %v3360
    %3387 = vmatprep.subr.mxu0 0.0
    %3388 = vmatpush1.msra.mxu0 %v3361
    %3389 = vmatprep.subr.mxu0 0.0
    %3390 = vmatpush1.msra.mxu0 %v3362
    %3391 = vmatprep.subr.mxu0 0.0
    %3392 = vmatpush1.msra.mxu0 %v3363
    %3393 = vmatprep.subr.mxu0 0.0
    %3394 = vmatpush1.msra.mxu0 0.0
    %3395 = vmatprep.subr.mxu0 0.0
    %3396 = vmatpush1.msra.mxu0 0.0
    %3397 = vmatprep.subr.mxu0 0.0
    %3398 = vmatpush1.msra.mxu0 0.0
    %3399 = vmatprep.subr.mxu0 0.0
    %3400 = vmatpush1.msra.mxu0 0.0
    %3401 = vmatprep.subr.mxu0 0.0
    %3402 = vmatpush1.msra.mxu0 0.0
    %3403 = vmatprep.subr.mxu0 0.0
    %3404 = vmatpush1.msra.mxu0 0.0
    %3405 = vmatprep.subr.mxu0 0.0
    %3406 = vmatpush1.msra.mxu0 0.0
    %3407 = vmatprep.subr.mxu0 0.0
    %3408 = vmatpush1.msra.mxu0 0.0
    %3409 = vmatprep.subr.mxu0 0.0
    %3410 = vmatpush1.msra.mxu0 0.0
    %3411 = vmatprep.subr.mxu0 0.0
    %3412 = vmatpush1.msra.mxu0 0.0
    %3413 = vmatprep.subr.mxu0 0.0
    %3414 = vmatpush1.msra.mxu0 0.0
    %3415 = vmatprep.subr.mxu0 0.0
    %3416 = vmatpush1.msra.mxu0 0.0
    %3417 = vmatprep.subr.mxu0 0.0
    %3418 = vmatpush1.msra.mxu0 0.0
    %3419 = vmatprep.subr.mxu0 0.0
    %3420 = vmatpush1.msra.mxu0 0.0
    %3421 = vmatprep.subr.mxu0 0.0
    %3422 = vmatpush1.msra.mxu0 0.0
    %3423 = vmatprep.subr.mxu0 0.0
    %3424 = vmatpush1.msra.mxu0 0.0
    %3425 = vmatprep.subr.mxu0 0.0
    %3426 = vmatpush1.msra.mxu0 0.0
    %3427 = vmatprep.subr.mxu0 0.0
    %3428 = vmatpush1.msra.mxu0 0.0
    %3429 = vmatprep.subr.mxu0 0.0
    %3430 = vmatpush1.msra.mxu0 0.0
    %3431 = vmatprep.subr.mxu0 0.0
    %3432 = vmatpush1.msra.mxu0 0.0
    %3433 = vmatprep.subr.mxu0 0.0
    %3434 = vmatpush1.msra.mxu0 0.0
    %3435 = vmatprep.subr.mxu0 0.0
    %3436 = vmatpush1.msra.mxu0 0.0
    %3437 = vmatprep.subr.mxu0 0.0
    %3438 = vmatpush1.msra.mxu0 0.0
    %3439 = vmatprep.subr.mxu0 0.0
    %3440 = vmatpush1.msra.mxu0 0.0
    %3441 = vmatprep.mubr.f32.mxu0 0.0
    %3442 = vmatmul.mubr.f32.gmra.mrb[0].mxu0 %v3375
    %v3443 = vpop.f32.mrb[0].mxu0
    %v3444 = vadd.f32 %v3373, %v3443
    %v3445 = vpop.f32.mrb[0].mxu0
    %3446 = vdwg.mxu0
    %v3447 = vxor.u32 %v3444, 2147483648
    %v3448 = vmul.f32 %v3447, 1.442695
    %v3449 = vpow.pop %v3448
    %v3450 = vadd.f32 %v3449, 1.0
    %v3451 = vrcp.pop %v3450
    %v3452 = vmul.f32 1.0, %v3451
    %v3453 = vtanh.pop %v3444
    %v3454 = vmul.f32 %v3452, %v3129
    %3456 = vrot.lane.b32.xlu0 %v3453, 32
    %v3457 = vpop.permute.xlu0 %3456
    %v3459 = vmul.f32 %v3452, %v3457
    %3461 = vrot.lane.b32.xlu0 %v3459, 32
    %v3462 = vpop.permute.xlu0 %3461
    %v3464 = vadd.f32 %v3454, %v3462
    %v3465 = vtanh.pop %v3464
    %3467 = vrot.lane.b32.xlu0 %v3465, 32
    %v3468 = vpop.permute.xlu0 %3467
    %v3470 = vmul.f32 %v3452, %v3468
    %3472 = vrot.lane.b32.xlu0 %v3470, 64
    %v3473 = vpop.permute.xlu0 %3472
    %v3474 = vsel %vm41, %v3473, 0
    %3476 = vmatprep.subr.mxu0 0.0
    %3477 = vmatpush1.msra.mxu0 %v1779
    %3478 = vmatprep.subr.mxu0 0.0
    %3479 = vmatpush1.msra.mxu0 %v1780
    %3480 = vmatprep.subr.mxu0 0.0
    %3481 = vmatpush1.msra.mxu0 %v1781
    %3482 = vmatprep.subr.mxu0 0.0
    %3483 = vmatpush1.msra.mxu0 %v1782
    %3484 = vmatprep.subr.mxu0 0.0
    %3485 = vmatpush1.msra.mxu0 0.0
    %3486 = vmatprep.subr.mxu0 0.0
    %3487 = vmatpush1.msra.mxu0 0.0
    %3488 = vmatprep.subr.mxu0 0.0
    %3489 = vmatpush1.msra.mxu0 0.0
    %3490 = vmatprep.subr.mxu0 0.0
    %3491 = vmatpush1.msra.mxu0 0.0
    %3492 = vmatprep.subr.mxu0 0.0
    %3493 = vmatpush1.msra.mxu0 0.0
    %3494 = vmatprep.subr.mxu0 0.0
    %3495 = vmatpush1.msra.mxu0 0.0
    %3496 = vmatprep.subr.mxu0 0.0
    %3497 = vmatpush1.msra.mxu0 0.0
    %3498 = vmatprep.subr.mxu0 0.0
    %3499 = vmatpush1.msra.mxu0 0.0
    %3500 = vmatprep.subr.mxu0 0.0
    %3501 = vmatpush1.msra.mxu0 0.0
    %3502 = vmatprep.subr.mxu0 0.0
    %3503 = vmatpush1.msra.mxu0 0.0
    %3504 = vmatprep.subr.mxu0 0.0
    %3505 = vmatpush1.msra.mxu0 0.0
    %3506 = vmatprep.subr.mxu0 0.0
    %3507 = vmatpush1.msra.mxu0 0.0
    %3508 = vmatprep.subr.mxu0 0.0
    %3509 = vmatpush1.msra.mxu0 0.0
    %3510 = vmatprep.subr.mxu0 0.0
    %3511 = vmatpush1.msra.mxu0 0.0
    %3512 = vmatprep.subr.mxu0 0.0
    %3513 = vmatpush1.msra.mxu0 0.0
    %3514 = vmatprep.subr.mxu0 0.0
    %3515 = vmatpush1.msra.mxu0 0.0
    %3516 = vmatprep.subr.mxu0 0.0
    %3517 = vmatpush1.msra.mxu0 0.0
    %3518 = vmatprep.subr.mxu0 0.0
    %3519 = vmatpush1.msra.mxu0 0.0
    %3520 = vmatprep.subr.mxu0 0.0
    %3521 = vmatpush1.msra.mxu0 0.0
    %3522 = vmatprep.subr.mxu0 0.0
    %3523 = vmatpush1.msra.mxu0 0.0
    %3524 = vmatprep.subr.mxu0 0.0
    %3525 = vmatpush1.msra.mxu0 0.0
    %3526 = vmatprep.subr.mxu0 0.0
    %3527 = vmatpush1.msra.mxu0 0.0
    %3528 = vmatprep.subr.mxu0 0.0
    %3529 = vmatpush1.msra.mxu0 0.0
    %3530 = vmatprep.subr.mxu0 0.0
    %3531 = vmatpush1.msra.mxu0 0.0
    %3532 = vmatprep.subr.mxu0 0.0
    %3533 = vmatpush1.msra.mxu0 0.0
    %3534 = vmatprep.subr.mxu0 0.0
    %3535 = vmatpush1.msra.mxu0 0.0
    %3536 = vmatprep.subr.mxu0 0.0
    %3537 = vmatpush1.msra.mxu0 0.0
    %3538 = vmatprep.subr.mxu0 0.0
    %3539 = vmatpush1.msra.mxu0 0.0
    %3540 = vmatprep.mubr.f32.mxu0 0.0
    %3541 = vmatmul.mubr.f32.gmra.mrb[0].mxu0 %v3474
    %v3542 = vpop.f32.mrb[0].mxu0
    %v3543 = vadd.f32 %v2129, %v3542
    %v3544 = vpop.f32.mrb[0].mxu0
    %3545 = vdwg.mxu0
    %v3548 = vunpack.c.l.s4 1966171168
    %v3549 = vunpack.c.0.s8 %v3548
    %v3550 = vlaneseq
    %v3551 = vshrl.u32 %v3550, 7
    %v3552 = vsub.s32 %v3549, %v3551
    %v3553 = vrot.slane %v3543, %v3552
    %v3554 = vcombine.high %v3553, %v3553
    %v3556 = vunpack.c.l.s4 1966171168
    %v3557 = vunpack.c.0.s8 %v3556
    %v3558 = vlaneseq
    %v3559 = vshrl.u32 %v3558, 7
    %v3560 = vsub.s32 %v3557, %v3559
    %v3561 = vrot.slane %v3553, %v3560
    %v3563 = vunpack.c.l.s4 1966171168
    %v3564 = vunpack.c.0.s8 %v3563
    %v3565 = vlaneseq
    %v3566 = vshrl.u32 %v3565, 7
    %v3567 = vsub.s32 %v3564, %v3566
    %v3568 = vrot.slane %v3554, %v3567
    %3571 = vst.msk [vmem:[%s2 + $0x4] sm:$0x1] %vm2230, %v3561
    %3572 = vst.msk [vmem:[%s2 + $0xc] sm:$0x1] %vm2230, %v3568
    %v3573 = vld [vmem:[%s1784] sm:$0xff]
    %v3574 = vld [vmem:[%s1784 + $0x8] sm:$0xff]
    %v3575 = vld [vmem:[%s1784 + $0x10] sm:$0xff]
    %v3576 = vld [vmem:[%s1784 + $0x18] sm:$0xff]
    %v3577 = vld [vmem:[%s1784 + $0x20] sm:$0xff]
    %v3578 = vld [vmem:[%s1784 + $0x28] sm:$0xff]
    %v3579 = vld [vmem:[%s1784 + $0x30] sm:$0xff]
    %v3580 = vld [vmem:[%s1784 + $0x38] sm:$0xff]
    %v3581 = vld [vmem:[%s1784 + $0x40] sm:$0x1]
    %3583 = vrot.lane.b32.xlu0 %v3355, 64
    %v3584 = vpop.permute.xlu0 %3583
    %3586 = vrot.lane.b32.xlu0 %v1671, 96
    %v3587 = vpop.permute.xlu0 %3586
    %v3589 = vsel %vm41, %v3584, %v3587
    %v3590 = vlaneseq
    %v3591 = vshrl.u32 %v3590, 7
    %v3592 = vsub.s32 0, %v3591
    %v3593 = vrot.slane %v3581, %v3592
    %v3595 = vsel %vm278, %v3589, 0
    %3597 = vmatprep.subr.mxu0 0.0
    %3598 = vmatpush1.msra.mxu0 %v3573
    %3599 = vmatprep.subr.mxu0 0.0
    %3600 = vmatpush1.msra.mxu0 %v3574
    %3601 = vmatprep.subr.mxu0 0.0
    %3602 = vmatpush1.msra.mxu0 %v3575
    %3603 = vmatprep.subr.mxu0 0.0
    %3604 = vmatpush1.msra.mxu0 %v3576
    %3605 = vmatprep.subr.mxu0 0.0
    %3606 = vmatpush1.msra.mxu0 %v3577
    %3607 = vmatprep.subr.mxu0 0.0
    %3608 = vmatpush1.msra.mxu0 %v3578
    %3609 = vmatprep.subr.mxu0 0.0
    %3610 = vmatpush1.msra.mxu0 %v3579
    %3611 = vmatprep.subr.mxu0 0.0
    %3612 = vmatpush1.msra.mxu0 %v3580
    %3613 = vmatprep.subr.mxu0 0.0
    %3614 = vmatpush1.msra.mxu0 0.0
    %3615 = vmatprep.subr.mxu0 0.0
    %3616 = vmatpush1.msra.mxu0 0.0
    %3617 = vmatprep.subr.mxu0 0.0
    %3618 = vmatpush1.msra.mxu0 0.0
    %3619 = vmatprep.subr.mxu0 0.0
    %3620 = vmatpush1.msra.mxu0 0.0
    %3621 = vmatprep.subr.mxu0 0.0
    %3622 = vmatpush1.msra.mxu0 0.0
    %3623 = vmatprep.subr.mxu0 0.0
    %3624 = vmatpush1.msra.mxu0 0.0
    %3625 = vmatprep.subr.mxu0 0.0
    %3626 = vmatpush1.msra.mxu0 0.0
    %3627 = vmatprep.subr.mxu0 0.0
    %3628 = vmatpush1.msra.mxu0 0.0
    %3629 = vmatprep.subr.mxu0 0.0
    %3630 = vmatpush1.msra.mxu0 0.0
    %3631 = vmatprep.subr.mxu0 0.0
    %3632 = vmatpush1.msra.mxu0 0.0
    %3633 = vmatprep.subr.mxu0 0.0
    %3634 = vmatpush1.msra.mxu0 0.0
    %3635 = vmatprep.subr.mxu0 0.0
    %3636 = vmatpush1.msra.mxu0 0.0
    %3637 = vmatprep.subr.mxu0 0.0
    %3638 = vmatpush1.msra.mxu0 0.0
    %3639 = vmatprep.subr.mxu0 0.0
    %3640 = vmatpush1.msra.mxu0 0.0
    %3641 = vmatprep.subr.mxu0 0.0
    %3642 = vmatpush1.msra.mxu0 0.0
    %3643 = vmatprep.subr.mxu0 0.0
    %3644 = vmatpush1.msra.mxu0 0.0
    %3645 = vmatprep.subr.mxu0 0.0
    %3646 = vmatpush1.msra.mxu0 0.0
    %3647 = vmatprep.subr.mxu0 0.0
    %3648 = vmatpush1.msra.mxu0 0.0
    %3649 = vmatprep.subr.mxu0 0.0
    %3650 = vmatpush1.msra.mxu0 0.0
    %3651 = vmatprep.subr.mxu0 0.0
    %3652 = vmatpush1.msra.mxu0 0.0
    %3653 = vmatprep.subr.mxu0 0.0
    %3654 = vmatpush1.msra.mxu0 0.0
    %3655 = vmatprep.subr.mxu0 0.0
    %3656 = vmatpush1.msra.mxu0 0.0
    %3657 = vmatprep.subr.mxu0 0.0
    %3658 = vmatpush1.msra.mxu0 0.0
    %3659 = vmatprep.subr.mxu0 0.0
    %3660 = vmatpush1.msra.mxu0 0.0
    %3661 = vmatprep.mubr.f32.mxu0 0.0
    %3662 = vmatmul.mubr.f32.gmra.mrb[0].mxu0 %v3595
    %v3663 = vpop.f32.mrb[0].mxu0
    %v3664 = vadd.f32 %v3593, %v3663
    %v3665 = vpop.f32.mrb[0].mxu0
    %3666 = vdwg.mxu0
    %v3667 = vxor.u32 %v3664, 2147483648
    %v3668 = vmul.f32 %v3667, 1.442695
    %v3669 = vpow.pop %v3668
    %v3670 = vadd.f32 %v3669, 1.0
    %v3671 = vrcp.pop %v3670
    %v3672 = vmul.f32 1.0, %v3671
    %v3673 = vtanh.pop %v3664
    %v3674 = vmul.f32 %v3672, %v3349
    %3676 = vrot.lane.b32.xlu0 %v3673, 32
    %v3677 = vpop.permute.xlu0 %3676
    %v3679 = vmul.f32 %v3672, %v3677
    %3681 = vrot.lane.b32.xlu0 %v3679, 32
    %v3682 = vpop.permute.xlu0 %3681
    %v3684 = vadd.f32 %v3674, %v3682
    %v3685 = vtanh.pop %v3684
    %3687 = vrot.lane.b32.xlu0 %v3685, 32
    %v3688 = vpop.permute.xlu0 %3687
    %v3690 = vmul.f32 %v3672, %v3688
    %v3691 = vld [vmem:[%s2007] sm:$0xff]
    %v3692 = vld [vmem:[%s2007 + $0x8] sm:$0xff]
    %v3693 = vld [vmem:[%s2007 + $0x10] sm:$0xff]
    %v3694 = vld [vmem:[%s2007 + $0x18] sm:$0xff]
    %v3695 = vld [vmem:[%s2007 + $0x20] sm:$0xff]
    %v3696 = vld [vmem:[%s2007 + $0x28] sm:$0xff]
    %v3697 = vld [vmem:[%s2007 + $0x30] sm:$0xff]
    %v3698 = vld [vmem:[%s2007 + $0x38] sm:$0xff]
    %v3699 = vld [vmem:[%s2007 + $0x40] sm:$0x1]
    %3701 = vrot.lane.b32.xlu0 %v3355, 96
    %v3702 = vpop.permute.xlu0 %3701
    %v3704 = vsel %vm41, %v3473, %v3702
    %v3705 = vlaneseq
    %v3706 = vshrl.u32 %v3705, 7
    %v3707 = vsub.s32 0, %v3706
    %v3708 = vrot.slane %v3699, %v3707
    %v3710 = vsel %vm278, %v3704, 0
    %3712 = vmatprep.subr.mxu0 0.0
    %3713 = vmatpush1.msra.mxu0 %v3691
    %3714 = vmatprep.subr.mxu0 0.0
    %3715 = vmatpush1.msra.mxu0 %v3692
    %3716 = vmatprep.subr.mxu0 0.0
    %3717 = vmatpush1.msra.mxu0 %v3693
    %3718 = vmatprep.subr.mxu0 0.0
    %3719 = vmatpush1.msra.mxu0 %v3694
    %3720 = vmatprep.subr.mxu0 0.0
    %3721 = vmatpush1.msra.mxu0 %v3695
    %3722 = vmatprep.subr.mxu0 0.0
    %3723 = vmatpush1.msra.mxu0 %v3696
    %3724 = vmatprep.subr.mxu0 0.0
    %3725 = vmatpush1.msra.mxu0 %v3697
    %3726 = vmatprep.subr.mxu0 0.0
    %3727 = vmatpush1.msra.mxu0 %v3698
    %3728 = vmatprep.subr.mxu0 0.0
    %3729 = vmatpush1.msra.mxu0 0.0
    %3730 = vmatprep.subr.mxu0 0.0
    %3731 = vmatpush1.msra.mxu0 0.0
    %3732 = vmatprep.subr.mxu0 0.0
    %3733 = vmatpush1.msra.mxu0 0.0
    %3734 = vmatprep.subr.mxu0 0.0
    %3735 = vmatpush1.msra.mxu0 0.0
    %3736 = vmatprep.subr.mxu0 0.0
    %3737 = vmatpush1.msra.mxu0 0.0
    %3738 = vmatprep.subr.mxu0 0.0
    %3739 = vmatpush1.msra.mxu0 0.0
    %3740 = vmatprep.subr.mxu0 0.0
    %3741 = vmatpush1.msra.mxu0 0.0
    %3742 = vmatprep.subr.mxu0 0.0
    %3743 = vmatpush1.msra.mxu0 0.0
    %3744 = vmatprep.subr.mxu0 0.0
    %3745 = vmatpush1.msra.mxu0 0.0
    %3746 = vmatprep.subr.mxu0 0.0
    %3747 = vmatpush1.msra.mxu0 0.0
    %3748 = vmatprep.subr.mxu0 0.0
    %3749 = vmatpush1.msra.mxu0 0.0
    %3750 = vmatprep.subr.mxu0 0.0
    %3751 = vmatpush1.msra.mxu0 0.0
    %3752 = vmatprep.subr.mxu0 0.0
    %3753 = vmatpush1.msra.mxu0 0.0
    %3754 = vmatprep.subr.mxu0 0.0
    %3755 = vmatpush1.msra.mxu0 0.0
    %3756 = vmatprep.subr.mxu0 0.0
    %3757 = vmatpush1.msra.mxu0 0.0
    %3758 = vmatprep.subr.mxu0 0.0
    %3759 = vmatpush1.msra.mxu0 0.0
    %3760 = vmatprep.subr.mxu0 0.0
    %3761 = vmatpush1.msra.mxu0 0.0
    %3762 = vmatprep.subr.mxu0 0.0
    %3763 = vmatpush1.msra.mxu0 0.0
    %3764 = vmatprep.subr.mxu0 0.0
    %3765 = vmatpush1.msra.mxu0 0.0
    %3766 = vmatprep.subr.mxu0 0.0
    %3767 = vmatpush1.msra.mxu0 0.0
    %3768 = vmatprep.subr.mxu0 0.0
    %3769 = vmatpush1.msra.mxu0 0.0
    %3770 = vmatprep.subr.mxu0 0.0
    %3771 = vmatpush1.msra.mxu0 0.0
    %3772 = vmatprep.subr.mxu0 0.0
    %3773 = vmatpush1.msra.mxu0 0.0
    %3774 = vmatprep.subr.mxu0 0.0
    %3775 = vmatpush1.msra.mxu0 0.0
    %3776 = vmatprep.mubr.f32.mxu0 0.0
    %3777 = vmatmul.mubr.f32.gmra.mrb[0].mxu0 %v3710
    %v3778 = vpop.f32.mrb[0].mxu0
    %v3779 = vadd.f32 %v3708, %v3778
    %v3780 = vpop.f32.mrb[0].mxu0
    %3781 = vdwg.mxu0
    %v3782 = vxor.u32 %v3779, 2147483648
    %v3783 = vmul.f32 %v3782, 1.442695
    %v3784 = vpow.pop %v3783
    %v3785 = vadd.f32 %v3784, 1.0
    %v3786 = vrcp.pop %v3785
    %v3787 = vmul.f32 1.0, %v3786
    %v3788 = vtanh.pop %v3779
    %v3789 = vmul.f32 %v3787, %v3464
    %3791 = vrot.lane.b32.xlu0 %v3788, 32
    %v3792 = vpop.permute.xlu0 %3791
    %v3794 = vmul.f32 %v3787, %v3792
    %3796 = vrot.lane.b32.xlu0 %v3794, 32
    %v3797 = vpop.permute.xlu0 %3796
    %v3799 = vadd.f32 %v3789, %v3797
    %v3800 = vtanh.pop %v3799
    %3802 = vrot.lane.b32.xlu0 %v3800, 32
    %v3803 = vpop.permute.xlu0 %3802
    %v3805 = vmul.f32 %v3787, %v3803
    %3807 = vrot.lane.b32.xlu0 %v3805, 64
    %v3808 = vpop.permute.xlu0 %3807
    %v3809 = vsel %vm41, %v3808, 0
    %3811 = vmatprep.subr.mxu0 0.0
    %3812 = vmatpush1.msra.mxu0 %v1779
    %3813 = vmatprep.subr.mxu0 0.0
    %3814 = vmatpush1.msra.mxu0 %v1780
    %3815 = vmatprep.subr.mxu0 0.0
    %3816 = vmatpush1.msra.mxu0 %v1781
    %3817 = vmatprep.subr.mxu0 0.0
    %3818 = vmatpush1.msra.mxu0 %v1782
    %3819 = vmatprep.subr.mxu0 0.0
    %3820 = vmatpush1.msra.mxu0 0.0
    %3821 = vmatprep.subr.mxu0 0.0
    %3822 = vmatpush1.msra.mxu0 0.0
    %3823 = vmatprep.subr.mxu0 0.0
    %3824 = vmatpush1.msra.mxu0 0.0
    %3825 = vmatprep.subr.mxu0 0.0
    %3826 = vmatpush1.msra.mxu0 0.0
    %3827 = vmatprep.subr.mxu0 0.0
    %3828 = vmatpush1.msra.mxu0 0.0
    %3829 = vmatprep.subr.mxu0 0.0
    %3830 = vmatpush1.msra.mxu0 0.0
    %3831 = vmatprep.subr.mxu0 0.0
    %3832 = vmatpush1.msra.mxu0 0.0
    %3833 = vmatprep.subr.mxu0 0.0
    %3834 = vmatpush1.msra.mxu0 0.0
    %3835 = vmatprep.subr.mxu0 0.0
    %3836 = vmatpush1.msra.mxu0 0.0
    %3837 = vmatprep.subr.mxu0 0.0
    %3838 = vmatpush1.msra.mxu0 0.0
    %3839 = vmatprep.subr.mxu0 0.0
    %3840 = vmatpush1.msra.mxu0 0.0
    %3841 = vmatprep.subr.mxu0 0.0
    %3842 = vmatpush1.msra.mxu0 0.0
    %3843 = vmatprep.subr.mxu0 0.0
    %3844 = vmatpush1.msra.mxu0 0.0
    %3845 = vmatprep.subr.mxu0 0.0
    %3846 = vmatpush1.msra.mxu0 0.0
    %3847 = vmatprep.subr.mxu0 0.0
    %3848 = vmatpush1.msra.mxu0 0.0
    %3849 = vmatprep.subr.mxu0 0.0
    %3850 = vmatpush1.msra.mxu0 0.0
    %3851 = vmatprep.subr.mxu0 0.0
    %3852 = vmatpush1.msra.mxu0 0.0
    %3853 = vmatprep.subr.mxu0 0.0
    %3854 = vmatpush1.msra.mxu0 0.0
    %3855 = vmatprep.subr.mxu0 0.0
    %3856 = vmatpush1.msra.mxu0 0.0
    %3857 = vmatprep.subr.mxu0 0.0
    %3858 = vmatpush1.msra.mxu0 0.0
    %3859 = vmatprep.subr.mxu0 0.0
    %3860 = vmatpush1.msra.mxu0 0.0
    %3861 = vmatprep.subr.mxu0 0.0
    %3862 = vmatpush1.msra.mxu0 0.0
    %3863 = vmatprep.subr.mxu0 0.0
    %3864 = vmatpush1.msra.mxu0 0.0
    %3865 = vmatprep.subr.mxu0 0.0
    %3866 = vmatpush1.msra.mxu0 0.0
    %3867 = vmatprep.subr.mxu0 0.0
    %3868 = vmatpush1.msra.mxu0 0.0
    %3869 = vmatprep.subr.mxu0 0.0
    %3870 = vmatpush1.msra.mxu0 0.0
    %3871 = vmatprep.subr.mxu0 0.0
    %3872 = vmatpush1.msra.mxu0 0.0
    %3873 = vmatprep.subr.mxu0 0.0
    %3874 = vmatpush1.msra.mxu0 0.0
    %3875 = vmatprep.mubr.f32.mxu0 0.0
    %3876 = vmatmul.mubr.f32.gmra.mrb[0].mxu0 %v3809
    %v3877 = vpop.f32.mrb[0].mxu0
    %v3878 = vadd.f32 %v2129, %v3877
    %v3879 = vpop.f32.mrb[0].mxu0
    %3880 = vdwg.mxu0
    %v3883 = vunpack.c.l.s4 1966171168
    %v3884 = vunpack.c.0.s8 %v3883
    %v3885 = vlaneseq
    %v3886 = vshrl.u32 %v3885, 7
    %v3887 = vsub.s32 %v3884, %v3886
    %v3888 = vrot.slane %v3878, %v3887
    %v3889 = vcombine.high %v3888, %v3888
    %v3891 = vunpack.c.l.s4 1966171168
    %v3892 = vunpack.c.0.s8 %v3891
    %v3893 = vlaneseq
    %v3894 = vshrl.u32 %v3893, 7
    %v3895 = vsub.s32 %v3892, %v3894
    %v3896 = vrot.slane %v3888, %v3895
    %v3898 = vunpack.c.l.s4 1966171168
    %v3899 = vunpack.c.0.s8 %v3898
    %v3900 = vlaneseq
    %v3901 = vshrl.u32 %v3900, 7
    %v3902 = vsub.s32 %v3899, %v3901
    %v3903 = vrot.slane %v3889, %v3902
    %3906 = vst.msk [vmem:[%s2 + $0x5] sm:$0x1] %vm2230, %v3896
    %3907 = vst.msk [vmem:[%s2 + $0xd] sm:$0x1] %vm2230, %v3903
    %v3908 = vld [vmem:[%s1784] sm:$0xff]
    %v3909 = vld [vmem:[%s1784 + $0x8] sm:$0xff]
    %v3910 = vld [vmem:[%s1784 + $0x10] sm:$0xff]
    %v3911 = vld [vmem:[%s1784 + $0x18] sm:$0xff]
    %v3912 = vld [vmem:[%s1784 + $0x20] sm:$0xff]
    %v3913 = vld [vmem:[%s1784 + $0x28] sm:$0xff]
    %v3914 = vld [vmem:[%s1784 + $0x30] sm:$0xff]
    %v3915 = vld [vmem:[%s1784 + $0x38] sm:$0xff]
    %v3916 = vld [vmem:[%s1784 + $0x40] sm:$0x1]
    %3918 = vrot.lane.b32.xlu0 %v3690, 64
    %v3919 = vpop.permute.xlu0 %3918
    %3921 = vrot.lane.b32.xlu0 %v1777, 96
    %v3922 = vpop.permute.xlu0 %3921
    %v3924 = vsel %vm41, %v3919, %v3922
    %v3925 = vlaneseq
    %v3926 = vshrl.u32 %v3925, 7
    %v3927 = vsub.s32 0, %v3926
    %v3928 = vrot.slane %v3916, %v3927
    %v3930 = vsel %vm278, %v3924, 0
    %3932 = vmatprep.subr.mxu0 0.0
    %3933 = vmatpush1.msra.mxu0 %v3908
    %3934 = vmatprep.subr.mxu0 0.0
    %3935 = vmatpush1.msra.mxu0 %v3909
    %3936 = vmatprep.subr.mxu0 0.0
    %3937 = vmatpush1.msra.mxu0 %v3910
    %3938 = vmatprep.subr.mxu0 0.0
    %3939 = vmatpush1.msra.mxu0 %v3911
    %3940 = vmatprep.subr.mxu0 0.0
    %3941 = vmatpush1.msra.mxu0 %v3912
    %3942 = vmatprep.subr.mxu0 0.0
    %3943 = vmatpush1.msra.mxu0 %v3913
    %3944 = vmatprep.subr.mxu0 0.0
    %3945 = vmatpush1.msra.mxu0 %v3914
    %3946 = vmatprep.subr.mxu0 0.0
    %3947 = vmatpush1.msra.mxu0 %v3915
    %3948 = vmatprep.subr.mxu0 0.0
    %3949 = vmatpush1.msra.mxu0 0.0
    %3950 = vmatprep.subr.mxu0 0.0
    %3951 = vmatpush1.msra.mxu0 0.0
    %3952 = vmatprep.subr.mxu0 0.0
    %3953 = vmatpush1.msra.mxu0 0.0
    %3954 = vmatprep.subr.mxu0 0.0
    %3955 = vmatpush1.msra.mxu0 0.0
    %3956 = vmatprep.subr.mxu0 0.0
    %3957 = vmatpush1.msra.mxu0 0.0
    %3958 = vmatprep.subr.mxu0 0.0
    %3959 = vmatpush1.msra.mxu0 0.0
    %3960 = vmatprep.subr.mxu0 0.0
    %3961 = vmatpush1.msra.mxu0 0.0
    %3962 = vmatprep.subr.mxu0 0.0
    %3963 = vmatpush1.msra.mxu0 0.0
    %3964 = vmatprep.subr.mxu0 0.0
    %3965 = vmatpush1.msra.mxu0 0.0
    %3966 = vmatprep.subr.mxu0 0.0
    %3967 = vmatpush1.msra.mxu0 0.0
    %3968 = vmatprep.subr.mxu0 0.0
    %3969 = vmatpush1.msra.mxu0 0.0
    %3970 = vmatprep.subr.mxu0 0.0
    %3971 = vmatpush1.msra.mxu0 0.0
    %3972 = vmatprep.subr.mxu0 0.0
    %3973 = vmatpush1.msra.mxu0 0.0
    %3974 = vmatprep.subr.mxu0 0.0
    %3975 = vmatpush1.msra.mxu0 0.0
    %3976 = vmatprep.subr.mxu0 0.0
    %3977 = vmatpush1.msra.mxu0 0.0
    %3978 = vmatprep.subr.mxu0 0.0
    %3979 = vmatpush1.msra.mxu0 0.0
    %3980 = vmatprep.subr.mxu0 0.0
    %3981 = vmatpush1.msra.mxu0 0.0
    %3982 = vmatprep.subr.mxu0 0.0
    %3983 = vmatpush1.msra.mxu0 0.0
    %3984 = vmatprep.subr.mxu0 0.0
    %3985 = vmatpush1.msra.mxu0 0.0
    %3986 = vmatprep.subr.mxu0 0.0
    %3987 = vmatpush1.msra.mxu0 0.0
    %3988 = vmatprep.subr.mxu0 0.0
    %3989 = vmatpush1.msra.mxu0 0.0
    %3990 = vmatprep.subr.mxu0 0.0
    %3991 = vmatpush1.msra.mxu0 0.0
    %3992 = vmatprep.subr.mxu0 0.0
    %3993 = vmatpush1.msra.mxu0 0.0
    %3994 = vmatprep.subr.mxu0 0.0
    %3995 = vmatpush1.msra.mxu0 0.0
    %3996 = vmatprep.mubr.f32.mxu0 0.0
    %3997 = vmatmul.mubr.f32.gmra.mrb[0].mxu0 %v3930
    %v3998 = vpop.f32.mrb[0].mxu0
    %v3999 = vadd.f32 %v3928, %v3998
    %v4000 = vpop.f32.mrb[0].mxu0
    %4001 = vdwg.mxu0
    %v4002 = vxor.u32 %v3999, 2147483648
    %v4003 = vmul.f32 %v4002, 1.442695
    %v4004 = vpow.pop %v4003
    %v4005 = vadd.f32 %v4004, 1.0
    %v4006 = vrcp.pop %v4005
    %v4007 = vmul.f32 1.0, %v4006
    %v4008 = vtanh.pop %v3999
    %v4009 = vmul.f32 %v4007, %v3684
    %4011 = vrot.lane.b32.xlu0 %v4008, 32
    %v4012 = vpop.permute.xlu0 %4011
    %v4014 = vmul.f32 %v4007, %v4012
    %4016 = vrot.lane.b32.xlu0 %v4014, 32
    %v4017 = vpop.permute.xlu0 %4016
    %v4019 = vadd.f32 %v4009, %v4017
    %v4020 = vtanh.pop %v4019
    %4022 = vrot.lane.b32.xlu0 %v4020, 32
    %v4023 = vpop.permute.xlu0 %4022
    %v4025 = vmul.f32 %v4007, %v4023
    %v4026 = vld [vmem:[%s2007] sm:$0xff]
    %v4027 = vld [vmem:[%s2007 + $0x8] sm:$0xff]
    %v4028 = vld [vmem:[%s2007 + $0x10] sm:$0xff]
    %v4029 = vld [vmem:[%s2007 + $0x18] sm:$0xff]
    %v4030 = vld [vmem:[%s2007 + $0x20] sm:$0xff]
    %v4031 = vld [vmem:[%s2007 + $0x28] sm:$0xff]
    %v4032 = vld [vmem:[%s2007 + $0x30] sm:$0xff]
    %v4033 = vld [vmem:[%s2007 + $0x38] sm:$0xff]
    %v4034 = vld [vmem:[%s2007 + $0x40] sm:$0x1]
    %4036 = vrot.lane.b32.xlu0 %v3690, 96
    %v4037 = vpop.permute.xlu0 %4036
    %v4039 = vsel %vm41, %v3808, %v4037
    %v4040 = vlaneseq
    %v4041 = vshrl.u32 %v4040, 7
    %v4042 = vsub.s32 0, %v4041
    %v4043 = vrot.slane %v4034, %v4042
    %v4045 = vsel %vm278, %v4039, 0
    %4047 = vmatprep.subr.mxu0 0.0
    %4048 = vmatpush1.msra.mxu0 %v4026
    %4049 = vmatprep.subr.mxu0 0.0
    %4050 = vmatpush1.msra.mxu0 %v4027
    %4051 = vmatprep.subr.mxu0 0.0
    %4052 = vmatpush1.msra.mxu0 %v4028
    %4053 = vmatprep.subr.mxu0 0.0
    %4054 = vmatpush1.msra.mxu0 %v4029
    %4055 = vmatprep.subr.mxu0 0.0
    %4056 = vmatpush1.msra.mxu0 %v4030
    %4057 = vmatprep.subr.mxu0 0.0
    %4058 = vmatpush1.msra.mxu0 %v4031
    %4059 = vmatprep.subr.mxu0 0.0
    %4060 = vmatpush1.msra.mxu0 %v4032
    %4061 = vmatprep.subr.mxu0 0.0
    %4062 = vmatpush1.msra.mxu0 %v4033
    %4063 = vmatprep.subr.mxu0 0.0
    %4064 = vmatpush1.msra.mxu0 0.0
    %4065 = vmatprep.subr.mxu0 0.0
    %4066 = vmatpush1.msra.mxu0 0.0
    %4067 = vmatprep.subr.mxu0 0.0
    %4068 = vmatpush1.msra.mxu0 0.0
    %4069 = vmatprep.subr.mxu0 0.0
    %4070 = vmatpush1.msra.mxu0 0.0
    %4071 = vmatprep.subr.mxu0 0.0
    %4072 = vmatpush1.msra.mxu0 0.0
    %4073 = vmatprep.subr.mxu0 0.0
    %4074 = vmatpush1.msra.mxu0 0.0
    %4075 = vmatprep.subr.mxu0 0.0
    %4076 = vmatpush1.msra.mxu0 0.0
    %4077 = vmatprep.subr.mxu0 0.0
    %4078 = vmatpush1.msra.mxu0 0.0
    %4079 = vmatprep.subr.mxu0 0.0
    %4080 = vmatpush1.msra.mxu0 0.0
    %4081 = vmatprep.subr.mxu0 0.0
    %4082 = vmatpush1.msra.mxu0 0.0
    %4083 = vmatprep.subr.mxu0 0.0
    %4084 = vmatpush1.msra.mxu0 0.0
    %4085 = vmatprep.subr.mxu0 0.0
    %4086 = vmatpush1.msra.mxu0 0.0
    %4087 = vmatprep.subr.mxu0 0.0
    %4088 = vmatpush1.msra.mxu0 0.0
    %4089 = vmatprep.subr.mxu0 0.0
    %4090 = vmatpush1.msra.mxu0 0.0
    %4091 = vmatprep.subr.mxu0 0.0
    %4092 = vmatpush1.msra.mxu0 0.0
    %4093 = vmatprep.subr.mxu0 0.0
    %4094 = vmatpush1.msra.mxu0 0.0
    %4095 = vmatprep.subr.mxu0 0.0
    %4096 = vmatpush1.msra.mxu0 0.0
    %4097 = vmatprep.subr.mxu0 0.0
    %4098 = vmatpush1.msra.mxu0 0.0
    %4099 = vmatprep.subr.mxu0 0.0
    %4100 = vmatpush1.msra.mxu0 0.0
    %4101 = vmatprep.subr.mxu0 0.0
    %4102 = vmatpush1.msra.mxu0 0.0
    %4103 = vmatprep.subr.mxu0 0.0
    %4104 = vmatpush1.msra.mxu0 0.0
    %4105 = vmatprep.subr.mxu0 0.0
    %4106 = vmatpush1.msra.mxu0 0.0
    %4107 = vmatprep.subr.mxu0 0.0
    %4108 = vmatpush1.msra.mxu0 0.0
    %4109 = vmatprep.subr.mxu0 0.0
    %4110 = vmatpush1.msra.mxu0 0.0
    %4111 = vmatprep.mubr.f32.mxu0 0.0
    %4112 = vmatmul.mubr.f32.gmra.mrb[0].mxu0 %v4045
    %v4113 = vpop.f32.mrb[0].mxu0
    %v4114 = vadd.f32 %v4043, %v4113
    %v4115 = vpop.f32.mrb[0].mxu0
    %4116 = vdwg.mxu0
    %v4117 = vxor.u32 %v4114, 2147483648
    %v4118 = vmul.f32 %v4117, 1.442695
    %v4119 = vpow.pop %v4118
    %v4120 = vadd.f32 %v4119, 1.0
    %v4121 = vrcp.pop %v4120
    %v4122 = vmul.f32 1.0, %v4121
    %v4123 = vtanh.pop %v4114
    %v4124 = vmul.f32 %v4122, %v3799
    %4126 = vrot.lane.b32.xlu0 %v4123, 32
    %v4127 = vpop.permute.xlu0 %4126
    %v4129 = vmul.f32 %v4122, %v4127
    %4131 = vrot.lane.b32.xlu0 %v4129, 32
    %v4132 = vpop.permute.xlu0 %4131
    %v4134 = vadd.f32 %v4124, %v4132
    %v4135 = vtanh.pop %v4134
    %4137 = vrot.lane.b32.xlu0 %v4135, 32
    %v4138 = vpop.permute.xlu0 %4137
    %v4140 = vmul.f32 %v4122, %v4138
    %4142 = vrot.lane.b32.xlu0 %v4140, 64
    %v4143 = vpop.permute.xlu0 %4142
    %v4144 = vsel %vm41, %v4143, 0
    %4146 = vmatprep.subr.mxu0 0.0
    %4147 = vmatpush1.msra.mxu0 %v1779
    %4148 = vmatprep.subr.mxu0 0.0
    %4149 = vmatpush1.msra.mxu0 %v1780
    %4150 = vmatprep.subr.mxu0 0.0
    %4151 = vmatpush1.msra.mxu0 %v1781
    %4152 = vmatprep.subr.mxu0 0.0
    %4153 = vmatpush1.msra.mxu0 %v1782
    %4154 = vmatprep.subr.mxu0 0.0
    %4155 = vmatpush1.msra.mxu0 0.0
    %4156 = vmatprep.subr.mxu0 0.0
    %4157 = vmatpush1.msra.mxu0 0.0
    %4158 = vmatprep.subr.mxu0 0.0
    %4159 = vmatpush1.msra.mxu0 0.0
    %4160 = vmatprep.subr.mxu0 0.0
    %4161 = vmatpush1.msra.mxu0 0.0
    %4162 = vmatprep.subr.mxu0 0.0
    %4163 = vmatpush1.msra.mxu0 0.0
    %4164 = vmatprep.subr.mxu0 0.0
    %4165 = vmatpush1.msra.mxu0 0.0
    %4166 = vmatprep.subr.mxu0 0.0
    %4167 = vmatpush1.msra.mxu0 0.0
    %4168 = vmatprep.subr.mxu0 0.0
    %4169 = vmatpush1.msra.mxu0 0.0
    %4170 = vmatprep.subr.mxu0 0.0
    %4171 = vmatpush1.msra.mxu0 0.0
    %4172 = vmatprep.subr.mxu0 0.0
    %4173 = vmatpush1.msra.mxu0 0.0
    %4174 = vmatprep.subr.mxu0 0.0
    %4175 = vmatpush1.msra.mxu0 0.0
    %4176 = vmatprep.subr.mxu0 0.0
    %4177 = vmatpush1.msra.mxu0 0.0
    %4178 = vmatprep.subr.mxu0 0.0
    %4179 = vmatpush1.msra.mxu0 0.0
    %4180 = vmatprep.subr.mxu0 0.0
    %4181 = vmatpush1.msra.mxu0 0.0
    %4182 = vmatprep.subr.mxu0 0.0
    %4183 = vmatpush1.msra.mxu0 0.0
    %4184 = vmatprep.subr.mxu0 0.0
    %4185 = vmatpush1.msra.mxu0 0.0
    %4186 = vmatprep.subr.mxu0 0.0
    %4187 = vmatpush1.msra.mxu0 0.0
    %4188 = vmatprep.subr.mxu0 0.0
    %4189 = vmatpush1.msra.mxu0 0.0
    %4190 = vmatprep.subr.mxu0 0.0
    %4191 = vmatpush1.msra.mxu0 0.0
    %4192 = vmatprep.subr.mxu0 0.0
    %4193 = vmatpush1.msra.mxu0 0.0
    %4194 = vmatprep.subr.mxu0 0.0
    %4195 = vmatpush1.msra.mxu0 0.0
    %4196 = vmatprep.subr.mxu0 0.0
    %4197 = vmatpush1.msra.mxu0 0.0
    %4198 = vmatprep.subr.mxu0 0.0
    %4199 = vmatpush1.msra.mxu0 0.0
    %4200 = vmatprep.subr.mxu0 0.0
    %4201 = vmatpush1.msra.mxu0 0.0
    %4202 = vmatprep.subr.mxu0 0.0
    %4203 = vmatpush1.msra.mxu0 0.0
    %4204 = vmatprep.subr.mxu0 0.0
    %4205 = vmatpush1.msra.mxu0 0.0
    %4206 = vmatprep.subr.mxu0 0.0
    %4207 = vmatpush1.msra.mxu0 0.0
    %4208 = vmatprep.subr.mxu0 0.0
    %4209 = vmatpush1.msra.mxu0 0.0
    %4210 = vmatprep.mubr.f32.mxu0 0.0
    %4211 = vmatmul.mubr.f32.gmra.mrb[0].mxu0 %v4144
    %v4212 = vpop.f32.mrb[0].mxu0
    %v4213 = vadd.f32 %v2129, %v4212
    %v4214 = vpop.f32.mrb[0].mxu0
    %4215 = vdwg.mxu0
    %v4218 = vunpack.c.l.s4 1966171168
    %v4219 = vunpack.c.0.s8 %v4218
    %v4220 = vlaneseq
    %v4221 = vshrl.u32 %v4220, 7
    %v4222 = vsub.s32 %v4219, %v4221
    %v4223 = vrot.slane %v4213, %v4222
    %v4224 = vcombine.high %v4223, %v4223
    %v4226 = vunpack.c.l.s4 1966171168
    %v4227 = vunpack.c.0.s8 %v4226
    %v4228 = vlaneseq
    %v4229 = vshrl.u32 %v4228, 7
    %v4230 = vsub.s32 %v4227, %v4229
    %v4231 = vrot.slane %v4223, %v4230
    %v4233 = vunpack.c.l.s4 1966171168
    %v4234 = vunpack.c.0.s8 %v4233
    %v4235 = vlaneseq
    %v4236 = vshrl.u32 %v4235, 7
    %v4237 = vsub.s32 %v4234, %v4236
    %v4238 = vrot.slane %v4224, %v4237
    %4241 = vst.msk [vmem:[%s2 + $0x6] sm:$0x1] %vm2230, %v4231
    %4242 = vst.msk [vmem:[%s2 + $0xe] sm:$0x1] %vm2230, %v4238
    %v4243 = vld [vmem:[%s2007] sm:$0xff]
    %v4244 = vld [vmem:[%s2007 + $0x8] sm:$0xff]
    %v4245 = vld [vmem:[%s2007 + $0x10] sm:$0xff]
    %v4246 = vld [vmem:[%s2007 + $0x18] sm:$0xff]
    %v4247 = vld [vmem:[%s2007 + $0x20] sm:$0xff]
    %v4248 = vld [vmem:[%s2007 + $0x28] sm:$0xff]
    %v4249 = vld [vmem:[%s2007 + $0x30] sm:$0xff]
    %v4250 = vld [vmem:[%s2007 + $0x38] sm:$0xff]
    %v4251 = vld [vmem:[%s2007 + $0x40] sm:$0x1]
    %4254 = vrot.lane.b32.xlu0 %v4025, 96
    %v4255 = vpop.permute.xlu0 %4254
    %v4257 = vsel %vm41, %v4143, %v4255
    %v4258 = vlaneseq
    %v4259 = vshrl.u32 %v4258, 7
    %v4260 = vsub.s32 0, %v4259
    %v4261 = vrot.slane %v4251, %v4260
    %v4263 = vsel %vm278, %v4257, 0
    %4265 = vmatprep.subr.mxu0 0.0
    %4266 = vmatpush1.msra.mxu0 %v4243
    %4267 = vmatprep.subr.mxu0 0.0
    %4268 = vmatpush1.msra.mxu0 %v4244
    %4269 = vmatprep.subr.mxu0 0.0
    %4270 = vmatpush1.msra.mxu0 %v4245
    %4271 = vmatprep.subr.mxu0 0.0
    %4272 = vmatpush1.msra.mxu0 %v4246
    %4273 = vmatprep.subr.mxu0 0.0
    %4274 = vmatpush1.msra.mxu0 %v4247
    %4275 = vmatprep.subr.mxu0 0.0
    %4276 = vmatpush1.msra.mxu0 %v4248
    %4277 = vmatprep.subr.mxu0 0.0
    %4278 = vmatpush1.msra.mxu0 %v4249
    %4279 = vmatprep.subr.mxu0 0.0
    %4280 = vmatpush1.msra.mxu0 %v4250
    %4281 = vmatprep.subr.mxu0 0.0
    %4282 = vmatpush1.msra.mxu0 0.0
    %4283 = vmatprep.subr.mxu0 0.0
    %4284 = vmatpush1.msra.mxu0 0.0
    %4285 = vmatprep.subr.mxu0 0.0
    %4286 = vmatpush1.msra.mxu0 0.0
    %4287 = vmatprep.subr.mxu0 0.0
    %4288 = vmatpush1.msra.mxu0 0.0
    %4289 = vmatprep.subr.mxu0 0.0
    %4290 = vmatpush1.msra.mxu0 0.0
    %4291 = vmatprep.subr.mxu0 0.0
    %4292 = vmatpush1.msra.mxu0 0.0
    %4293 = vmatprep.subr.mxu0 0.0
    %4294 = vmatpush1.msra.mxu0 0.0
    %4295 = vmatprep.subr.mxu0 0.0
    %4296 = vmatpush1.msra.mxu0 0.0
    %4297 = vmatprep.subr.mxu0 0.0
    %4298 = vmatpush1.msra.mxu0 0.0
    %4299 = vmatprep.subr.mxu0 0.0
    %4300 = vmatpush1.msra.mxu0 0.0
    %4301 = vmatprep.subr.mxu0 0.0
    %4302 = vmatpush1.msra.mxu0 0.0
    %4303 = vmatprep.subr.mxu0 0.0
    %4304 = vmatpush1.msra.mxu0 0.0
    %4305 = vmatprep.subr.mxu0 0.0
    %4306 = vmatpush1.msra.mxu0 0.0
    %4307 = vmatprep.subr.mxu0 0.0
    %4308 = vmatpush1.msra.mxu0 0.0
    %4309 = vmatprep.subr.mxu0 0.0
    %4310 = vmatpush1.msra.mxu0 0.0
    %4311 = vmatprep.subr.mxu0 0.0
    %4312 = vmatpush1.msra.mxu0 0.0
    %4313 = vmatprep.subr.mxu0 0.0
    %4314 = vmatpush1.msra.mxu0 0.0
    %4315 = vmatprep.subr.mxu0 0.0
    %4316 = vmatpush1.msra.mxu0 0.0
    %4317 = vmatprep.subr.mxu0 0.0
    %4318 = vmatpush1.msra.mxu0 0.0
    %4319 = vmatprep.subr.mxu0 0.0
    %4320 = vmatpush1.msra.mxu0 0.0
    %4321 = vmatprep.subr.mxu0 0.0
    %4322 = vmatpush1.msra.mxu0 0.0
    %4323 = vmatprep.subr.mxu0 0.0
    %4324 = vmatpush1.msra.mxu0 0.0
    %4325 = vmatprep.subr.mxu0 0.0
    %4326 = vmatpush1.msra.mxu0 0.0
    %4327 = vmatprep.subr.mxu0 0.0
    %4328 = vmatpush1.msra.mxu0 0.0
    %4329 = vmatprep.mubr.f32.mxu0 0.0
    %4330 = vmatmul.mubr.f32.gmra.mrb[0].mxu0 %v4263
    %v4331 = vpop.f32.mrb[0].mxu0
    %v4332 = vadd.f32 %v4261, %v4331
    %v4333 = vpop.f32.mrb[0].mxu0
    %4334 = vdwg.mxu0
    %v4335 = vxor.u32 %v4332, 2147483648
    %v4336 = vmul.f32 %v4335, 1.442695
    %v4337 = vpow.pop %v4336
    %v4338 = vadd.f32 %v4337, 1.0
    %v4339 = vrcp.pop %v4338
    %v4340 = vmul.f32 1.0, %v4339
    %v4341 = vtanh.pop %v4332
    %v4342 = vmul.f32 %v4340, %v4134
    %4344 = vrot.lane.b32.xlu0 %v4341, 32
    %v4345 = vpop.permute.xlu0 %4344
    %v4347 = vmul.f32 %v4340, %v4345
    %4349 = vrot.lane.b32.xlu0 %v4347, 32
    %v4350 = vpop.permute.xlu0 %4349
    %v4352 = vadd.f32 %v4342, %v4350
    %v4353 = vtanh.pop %v4352
    %4355 = vrot.lane.b32.xlu0 %v4353, 32
    %v4356 = vpop.permute.xlu0 %4355
    %v4358 = vmul.f32 %v4340, %v4356
    %4360 = vrot.lane.b32.xlu0 %v4358, 64
    %v4361 = vpop.permute.xlu0 %4360
    %v4362 = vsel %vm41, %v4361, 0
    %4364 = vmatprep.subr.mxu0 0.0
    %4365 = vmatpush1.msra.mxu0 %v1779
    %4366 = vmatprep.subr.mxu0 0.0
    %4367 = vmatpush1.msra.mxu0 %v1780
    %4368 = vmatprep.subr.mxu0 0.0
    %4369 = vmatpush1.msra.mxu0 %v1781
    %4370 = vmatprep.subr.mxu0 0.0
    %4371 = vmatpush1.msra.mxu0 %v1782
    %4372 = vmatprep.subr.mxu0 0.0
    %4373 = vmatpush1.msra.mxu0 0.0
    %4374 = vmatprep.subr.mxu0 0.0
    %4375 = vmatpush1.msra.mxu0 0.0
    %4376 = vmatprep.subr.mxu0 0.0
    %4377 = vmatpush1.msra.mxu0 0.0
    %4378 = vmatprep.subr.mxu0 0.0
    %4379 = vmatpush1.msra.mxu0 0.0
    %4380 = vmatprep.subr.mxu0 0.0
    %4381 = vmatpush1.msra.mxu0 0.0
    %4382 = vmatprep.subr.mxu0 0.0
    %4383 = vmatpush1.msra.mxu0 0.0
    %4384 = vmatprep.subr.mxu0 0.0
    %4385 = vmatpush1.msra.mxu0 0.0
    %4386 = vmatprep.subr.mxu0 0.0
    %4387 = vmatpush1.msra.mxu0 0.0
    %4388 = vmatprep.subr.mxu0 0.0
    %4389 = vmatpush1.msra.mxu0 0.0
    %4390 = vmatprep.subr.mxu0 0.0
    %4391 = vmatpush1.msra.mxu0 0.0
    %4392 = vmatprep.subr.mxu0 0.0
    %4393 = vmatpush1.msra.mxu0 0.0
    %4394 = vmatprep.subr.mxu0 0.0
    %4395 = vmatpush1.msra.mxu0 0.0
    %4396 = vmatprep.subr.mxu0 0.0
    %4397 = vmatpush1.msra.mxu0 0.0
    %4398 = vmatprep.subr.mxu0 0.0
    %4399 = vmatpush1.msra.mxu0 0.0
    %4400 = vmatprep.subr.mxu0 0.0
    %4401 = vmatpush1.msra.mxu0 0.0
    %4402 = vmatprep.subr.mxu0 0.0
    %4403 = vmatpush1.msra.mxu0 0.0
    %4404 = vmatprep.subr.mxu0 0.0
    %4405 = vmatpush1.msra.mxu0 0.0
    %4406 = vmatprep.subr.mxu0 0.0
    %4407 = vmatpush1.msra.mxu0 0.0
    %4408 = vmatprep.subr.mxu0 0.0
    %4409 = vmatpush1.msra.mxu0 0.0
    %4410 = vmatprep.subr.mxu0 0.0
    %4411 = vmatpush1.msra.mxu0 0.0
    %4412 = vmatprep.subr.mxu0 0.0
    %4413 = vmatpush1.msra.mxu0 0.0
    %4414 = vmatprep.subr.mxu0 0.0
    %4415 = vmatpush1.msra.mxu0 0.0
    %4416 = vmatprep.subr.mxu0 0.0
    %4417 = vmatpush1.msra.mxu0 0.0
    %4418 = vmatprep.subr.mxu0 0.0
    %4419 = vmatpush1.msra.mxu0 0.0
    %4420 = vmatprep.subr.mxu0 0.0
    %4421 = vmatpush1.msra.mxu0 0.0
    %4422 = vmatprep.subr.mxu0 0.0
    %4423 = vmatpush1.msra.mxu0 0.0
    %4424 = vmatprep.subr.mxu0 0.0
    %4425 = vmatpush1.msra.mxu0 0.0
    %4426 = vmatprep.subr.mxu0 0.0
    %4427 = vmatpush1.msra.mxu0 0.0
    %4428 = vmatprep.mubr.f32.mxu0 0.0
    %4429 = vmatmul.mubr.f32.gmra.mrb[0].mxu0 %v4362
    %v4430 = vpop.f32.mrb[0].mxu0
    %v4431 = vadd.f32 %v2129, %v4430
    %v4432 = vpop.f32.mrb[0].mxu0
    %4433 = vdwg.mxu0
    %v4436 = vunpack.c.l.s4 1966171168
    %v4437 = vunpack.c.0.s8 %v4436
    %v4438 = vlaneseq
    %v4439 = vshrl.u32 %v4438, 7
    %v4440 = vsub.s32 %v4437, %v4439
    %v4441 = vrot.slane %v4431, %v4440
    %v4442 = vcombine.high %v4441, %v4441
    %v4444 = vunpack.c.l.s4 1966171168
    %v4445 = vunpack.c.0.s8 %v4444
    %v4446 = vlaneseq
    %v4447 = vshrl.u32 %v4446, 7
    %v4448 = vsub.s32 %v4445, %v4447
    %v4449 = vrot.slane %v4441, %v4448
    %v4451 = vunpack.c.l.s4 1966171168
    %v4452 = vunpack.c.0.s8 %v4451
    %v4453 = vlaneseq
    %v4454 = vshrl.u32 %v4453, 7
    %v4455 = vsub.s32 %v4452, %v4454
    %v4456 = vrot.slane %v4442, %v4455
    %4459 = vst.msk [vmem:[%s2 + $0x7] sm:$0x1] %vm2230, %v4449
    %4460 = vst.msk [vmem:[%s2 + $0xf] sm:$0x1] %vm2230, %v4456
    // Predicated region
    $region14: #{lstm_anomaly_detector_forward.1} parent=1 // pred_check
      _
    $region15: #{lstm_anomaly_detector_forward.1} parent=1 // pred_check_branch
      %4462 = sbr.rel (0) target = $region17
    $region16: #{lstm_anomaly_detector_forward.1} parent=1 // pred_region
      _
    $region17: #{lstm_anomaly_detector_forward.1} parent=1 // pred_fallthru
      _
    // Predicated region
    $region18: #{lstm_anomaly_detector_forward.1} parent=1 // pred_check
      _
    $region19: #{lstm_anomaly_detector_forward.1} parent=1 // pred_check_branch
      %4464 = sbr.rel (0) target = $region21
    $region20: #{lstm_anomaly_detector_forward.1} parent=1 // pred_region
      _
    $region21: #{lstm_anomaly_detector_forward.1} parent=1 // pred_fallthru
      _
    %4465 = vsyncpa [#allocation3], 1

</llo_original>
